<compile_context>
chip_gen: v7x
topology: tpu7x:2x2x1
jax: 0.10.0
libtpu: 0.0.40
codegen_flags: <defaults>
</compile_context>

<pallas_src>
import functools

import numpy as np
import jax
import jax.numpy as jnp
from jax.experimental import pallas as pl
from jax.experimental.pallas import tpu as pltpu


def _row_tile(n, pref=256):
    """Largest row-tile <= pref that divides n (multiple of 8), else whole n."""
    if n <= pref:
        return n
    for t in range(pref, 0, -8):
        if n % t == 0:
            return t
    return n


# --------------------------------------------------------------------------
# Kernel 1: per-node projection  feat = x @ W_all ,  alpha = feat @ A_stack
# Grid over node-row tiles, "parallel".
# --------------------------------------------------------------------------
def _proj_kernel(x_ref, w_ref, a_ref, feat_ref, alpha_ref):
    x = x_ref[...].astype(jnp.bfloat16)                       # (tile_n, F_in)
    feat = jnp.dot(x, w_ref[...], preferred_element_type=jnp.float32)   # (tile_n, H*C)
    alpha_ref[...] = jnp.dot(feat.astype(jnp.bfloat16), a_ref[...],
                             preferred_element_type=jnp.float32)        # (tile_n, 2H)
    feat_ref[...] = feat.astype(jnp.bfloat16)


def _proj_call(x, w_bf16, a_bf16, tile_n):
    N, f_in = x.shape
    hc = w_bf16.shape[1]
    two_h = a_bf16.shape[1]
    return pl.pallas_call(
        _proj_kernel,
        grid=(N // tile_n,),
        in_specs=[pl.BlockSpec((tile_n, f_in), lambda i: (i, 0)),
                  pl.BlockSpec((f_in, hc), lambda i: (0, 0)),
                  pl.BlockSpec((hc, two_h), lambda i: (0, 0))],
        out_specs=(pl.BlockSpec((tile_n, hc), lambda i: (i, 0)),
                   pl.BlockSpec((tile_n, two_h), lambda i: (i, 0))),
        out_shape=(jax.ShapeDtypeStruct((N, hc), jnp.bfloat16),
                   jax.ShapeDtypeStruct((N, two_h), jnp.float32)),
        compiler_params=pltpu.CompilerParams(
            dimension_semantics=("parallel",)),
    )(x, w_bf16, a_bf16)


# --------------------------------------------------------------------------
# Kernel 2: GAT attention over one destination-row tile.
# adj is row-tiled (the only O(N^2) operand), feat / alpha_src stay whole.
# --------------------------------------------------------------------------
def _attn_kernel(adj_ref, feat_ref, ad_ref, as_ref, bias_ref, out_ref,
                 *, num_heads, c, concat):
    adj = adj_ref[...]                                   # (tile_m, N) bf16 {0,1}
    mask = adj > 0
    feat = feat_ref[...]                                 # (N, H*c) bf16
    a_dst = ad_ref[...][:, :num_heads]                   # (tile_m, H) f32
    a_src_t = as_ref[...][:, num_heads:].T               # (H, N)     f32

    outs = []
    acc = None
    for h in range(num_heads):
        e = a_dst[:, h:h + 1] + a_src_t[h:h + 1, :]       # (tile_m, N)
        e = jnp.maximum(e, jnp.float32(0.2) * e)          # LeakyReLU(0.2)
        e = jnp.where(mask, e, jnp.float32(-1e30))        # single mask, pre-max
        e = e - jnp.max(e, axis=-1, keepdims=True)        # finite (self loops)
        p = jnp.exp(e)                                    # masked -> exact 0
        s = jnp.sum(p, axis=-1, keepdims=True)            # >= 1, no guard needed
        o = jnp.dot(p.astype(jnp.bfloat16), feat[:, h * c:(h + 1) * c],
                    preferred_element_type=jnp.float32)   # (tile_m, c)
        o = o * pl.reciprocal(s, approx=True)             # deferred normalize
        if concat:
            outs.append(o)
        else:
            acc = o if acc is None else acc + o

    if concat:
        res = jnp.concatenate(outs, axis=-1)              # one concat, in vregs
    else:
        res = acc * jnp.float32(1.0 / num_heads)
    out_ref[...] = res + bias_ref[...]


def _attn_call(adj_bf16, feat, alpha, bias, *, num_heads, c, concat, tile_m):
    N = adj_bf16.shape[0]
    width = num_heads * c if concat else c
    kernel = functools.partial(_attn_kernel, num_heads=num_heads, c=c,
                               concat=concat)
    return pl.pallas_call(
        kernel,
        grid=(N // tile_m,),
        in_specs=[pl.BlockSpec((tile_m, N), lambda i: (i, 0)),              # adj rows
                  pl.BlockSpec((N, num_heads * c), lambda i: (0, 0)),        # feat whole
                  pl.BlockSpec((tile_m, 2 * num_heads), lambda i: (i, 0)),   # alpha (dst rows)
                  pl.BlockSpec((N, 2 * num_heads), lambda i: (0, 0)),        # alpha (src, whole)
                  pl.BlockSpec((1, width), lambda i: (0, 0))],
        out_specs=pl.BlockSpec((tile_m, width), lambda i: (i, 0)),
        out_shape=jax.ShapeDtypeStruct((N, width), jnp.float32),
        compiler_params=pltpu.CompilerParams(
            dimension_semantics=("parallel",)),
    )(adj_bf16, feat, alpha, alpha, bias)


# --------------------------------------------------------------------------
# Kernel 3: GraphNorm (optionally fused with global mean pool).  O(N*F) work,
# all in f32 (scatter mean / var via one-hot assignment matmuls).
# --------------------------------------------------------------------------
def _graph_norm_kernel(x_ref, A_ref, AT_ref, inv_ref, prm_ref, out_ref, *, pool):
    x = x_ref[...]                                # (N, F)
    A = A_ref[...]                                # (G, N)
    AT = AT_ref[...]                              # (N, G)
    inv = inv_ref[...]                            # (G, 1)
    w = prm_ref[0:1, :]
    b = prm_ref[1:2, :]
    ms = prm_ref[2:3, :]

    mean_g = jnp.dot(A, x, preferred_element_type=jnp.float32) * inv      # (G, F)
    mean_n = jnp.dot(AT, mean_g, preferred_element_type=jnp.float32)      # (N, F)
    cen = x - mean_n * ms
    var_g = jnp.dot(A, cen * cen, preferred_element_type=jnp.float32) * inv
    var_n = jnp.dot(AT, var_g, preferred_element_type=jnp.float32)
    y = w * cen * jax.lax.rsqrt(var_n + jnp.float32(1e-5)) + b

    if pool:
        out_ref[...] = jnp.dot(A, y, preferred_element_type=jnp.float32) * inv
    else:
        out_ref[...] = y


def _norm_call(x, assign, assignT, invcnt, prm, *, pool):
    N, F = x.shape
    G = assign.shape[0]
    out_rows = G if pool else N
    kernel = functools.partial(_graph_norm_kernel, pool=pool)
    return pl.pallas_call(
        kernel,
        grid=(1,),
        in_specs=[pl.BlockSpec((N, F), lambda i: (0, 0)),
                  pl.BlockSpec((G, N), lambda i: (0, 0)),
                  pl.BlockSpec((N, G), lambda i: (0, 0)),
                  pl.BlockSpec((G, 1), lambda i: (0, 0)),
                  pl.BlockSpec((3, F), lambda i: (0, 0))],
        out_specs=pl.BlockSpec((out_rows, F), lambda i: (0, 0)),
        out_shape=jax.ShapeDtypeStruct((out_rows, F), jnp.float32),
        compiler_params=pltpu.CompilerParams(
            dimension_semantics=("arbitrary",)),
    )(x, assign, assignT, invcnt, prm)


# --------------------------------------------------------------------------
# Host-side parameter packing + forward.
# --------------------------------------------------------------------------
def _attn_stack(a_dst, a_src):
    """Pack per-head attention vectors into a block-structured (H*C, 2H) matrix
    so that feat_all @ A_stack yields [alpha_dst | alpha_src] in one matmul."""
    H, C = a_dst.shape
    eye = jnp.eye(H, dtype=a_dst.dtype)
    dst = (a_dst[:, :, None] * eye[:, None, :]).reshape(H * C, H)
    src = (a_src[:, :, None] * eye[:, None, :]).reshape(H * C, H)
    return jnp.concatenate([dst, src], axis=1)


def gat_model_forward(x, adj, assign, invcnt, params, *, tile_m=256):
    N, f_in = x.shape
    H, _, hid = params["w1"].shape
    f_out = params["w2"].shape[2]
    hid_tot = H * hid

    # Fuse per-head projections into single wide bf16 matmuls.
    w1 = jnp.transpose(params["w1"], (1, 0, 2)).reshape(f_in, hid_tot).astype(jnp.bfloat16)
    w2 = jnp.transpose(params["w2"], (1, 0, 2)).reshape(hid_tot, H * f_out).astype(jnp.bfloat16)
    a1 = _attn_stack(params["a1_dst"], params["a1_src"]).astype(jnp.bfloat16)
    a2 = _attn_stack(params["a2_dst"], params["a2_src"]).astype(jnp.bfloat16)
    b1 = params["b1"].reshape(1, hid_tot)
    b2 = params["b2"].reshape(1, f_out)
    n1 = jnp.stack([params["n1_w"], params["n1_b"], params["n1_ms"]])   # (3, hid_tot)
    n2 = jnp.stack([params["n2_w"], params["n2_b"], params["n2_ms"]])   # (3, f_out)

    adj_bf = adj.astype(jnp.bfloat16)     # adjacency mask in HBM as bf16
    assignT = assign.T

    tm = _row_tile(N, tile_m)

    # GAT layer 1 (heads concatenated) + GraphNorm 1
    feat1, alpha1 = _proj_call(x, w1, a1, tm)
    h1 = _attn_call(adj_bf, feat1, alpha1, b1,
                    num_heads=H, c=hid, concat=True, tile_m=tm)
    h1 = _norm_call(h1, assign, assignT, invcnt, n1, pool=False)

    # GAT layer 2 (heads averaged) + GraphNorm 2 + global mean pool
    feat2, alpha2 = _proj_call(h1, w2, a2, tm)
    h2 = _attn_call(adj_bf, feat2, alpha2, b2,
                    num_heads=H, c=f_out, concat=False, tile_m=tm)
    return _norm_call(h2, assign, assignT, invcnt, n2, pool=True)


# ---------------- pure-JAX f32 reference (same math, no Pallas) ----------------
def _gat_ref(x, w, a_src, a_dst, bias, adj, concat):
    feat = jnp.einsum("nf,hfc->hnc", x, w)
    a_s = jnp.einsum("hnc,hc->hn", feat, a_src)
    a_d = jnp.einsum("hnc,hc->hn", feat, a_dst)
    e = a_d[:, :, None] + a_s[:, None, :]
    e = jnp.where(e >= 0, e, 0.2 * e)
    e = jnp.where(adj[None] > 0, e, -1e30)
    e = e - e.max(-1, keepdims=True)
    p = jnp.exp(e) * adj[None]
    attn = p / p.sum(-1, keepdims=True)
    out = jnp.einsum("hij,hjc->hic", attn, feat)
    if concat:
        out = jnp.transpose(out, (1, 0, 2)).reshape(x.shape[0], -1)
    else:
        out = out.mean(0)
    return out + bias


def _norm_ref(x, assign, invcnt, w, b, ms):
    mean_n = assign.T @ ((assign @ x) * invcnt)
    c = x - mean_n * ms
    var_n = assign.T @ ((assign @ (c * c)) * invcnt)
    return w * c / jnp.sqrt(var_n + 1e-5) + b


def _ref_forward(x, adj, assign, invcnt, p):
    h = _gat_ref(x, p["w1"], p["a1_src"], p["a1_dst"], p["b1"], adj, True)
    h = _norm_ref(h, assign, invcnt, p["n1_w"], p["n1_b"], p["n1_ms"])
    h = _gat_ref(h, p["w2"], p["a2_src"], p["a2_dst"], p["b2"], adj, False)
    h = _norm_ref(h, assign, invcnt, p["n2_w"], p["n2_b"], p["n2_ms"])
    return (assign @ h) * invcnt


if __name__ == "__main__":
    # small shapes: 2 graphs x 8 nodes = 16 nodes, in=8, hidden=16, heads=4, out=8
    N, F_IN, HID, H, F_OUT, G = 16, 8, 16, 4, 8, 2
    HID_TOT = HID * H  # 64

    key = jax.random.PRNGKey(0)
    ks = jax.random.split(key, 16)

    def rnd(k, shape, scale=0.2):
        return scale * jax.random.normal(k, shape, dtype=jnp.float32)

    params = {
        # GATConv 1: in=F_IN, out=HID per head, heads=H, concat=True
        "w1": rnd(ks[0], (H, F_IN, HID)),
        "a1_src": rnd(ks[1], (H, HID)),
        "a1_dst": rnd(ks[2], (H, HID)),
        "b1": rnd(ks[3], (HID_TOT,)),
        # GraphNorm 1 (HID_TOT features)
        "n1_w": 1.0 + rnd(ks[4], (HID_TOT,), 0.1),
        "n1_b": rnd(ks[5], (HID_TOT,), 0.1),
        "n1_ms": 1.0 + rnd(ks[6], (HID_TOT,), 0.1),
        # GATConv 2: in=HID_TOT, out=F_OUT per head, heads=H, concat=False
        "w2": rnd(ks[7], (H, HID_TOT, F_OUT)),
        "a2_src": rnd(ks[8], (H, F_OUT)),
        "a2_dst": rnd(ks[9], (H, F_OUT)),
        "b2": rnd(ks[10], (F_OUT,)),
        # GraphNorm 2 (F_OUT features)
        "n2_w": 1.0 + rnd(ks[11], (F_OUT,), 0.1),
        "n2_b": rnd(ks[12], (F_OUT,), 0.1),
        "n2_ms": 1.0 + rnd(ks[13], (F_OUT,), 0.1),
    }

    # node features
    x = jax.random.normal(ks[14], (N, F_IN), dtype=jnp.float32)

    # edge_index: bidirectional ring within each graph of 8 nodes -> dense adj
    adj_np = np.zeros((N, N), dtype=np.float32)
    for g in range(G):
        base = g * 8
        for k in range(8):
            s, d = base + k, base + (k + 1) % 8
            adj_np[d, s] = 1.0
            adj_np[s, d] = 1.0
    np.fill_diagonal(adj_np, 1.0)  # add_self_loops=True (GATConv default)
    adj = jnp.asarray(adj_np)

    # batch index [0]*8 + [1]*8 -> one-hot assignment + inverse counts
    batch_index = np.repeat(np.arange(G), 8)
    assign_np = np.zeros((G, N), dtype=np.float32)
    assign_np[batch_index, np.arange(N)] = 1.0
    assign = jnp.asarray(assign_np)
    invcnt = 1.0 / jnp.sum(assign, axis=1, keepdims=True)  # (G, 1)

    fwd = jax.jit(gat_model_forward)
    out = fwd(x, adj, assign, invcnt, params)
    out = jax.block_until_ready(out)
    assert out.shape == (G, F_OUT), out.shape

    ref = _ref_forward(x, adj, assign, invcnt, params)
    # tolerance reflects intentional bf16 MXU operands (f32 accumulation) vs f32 ref
    err = np.max(np.abs(np.asarray(out) - np.asarray(ref)))
    assert np.allclose(np.asarray(out), np.asarray(ref), rtol=2e-2, atol=2e-2), err

    print("KERNEL_OK")
</pallas_src>

<mosaic_0001>
module attributes {stable_mosaic.version = 11 : i64} {
  func.func @_proj_kernel(%arg0: i32, %arg1: memref<16x8xf32, #tpu.memory_space<vmem>>, %arg2: memref<8x64xbf16, #tpu.memory_space<vmem>>, %arg3: memref<64x8xbf16, #tpu.memory_space<vmem>>, %arg4: memref<16x64xbf16, #tpu.memory_space<vmem>>, %arg5: memref<16x8xf32, #tpu.memory_space<vmem>>) attributes {dimension_semantics = [#tpu.dimension_semantics<parallel>], iteration_bounds = array<i64: 1>, scalar_prefetch = 0 : i64, scratch_operands = 0 : i64, tpu.core_type = #tpu.core_type<tc>, window_params = [{transform_indices = @transform_0, window_bounds = array<i64: 16, 8>}, {pipeline_mode = #tpu.pipeline_mode<synchronous>, transform_indices = @transform_1, window_bounds = array<i64: 8, 64>}, {pipeline_mode = #tpu.pipeline_mode<synchronous>, transform_indices = @transform_2, window_bounds = array<i64: 64, 8>}, {transform_indices = @transform_3, window_bounds = array<i64: 16, 64>}, {transform_indices = @transform_4, window_bounds = array<i64: 16, 8>}]} {
    %c0 = arith.constant 0 : index
    %c0_0 = arith.constant 0 : index
    %0 = vector.load %arg1[%c0, %c0_0] : memref<16x8xf32, #tpu.memory_space<vmem>>, vector<16x8xf32>
    %1 = arith.truncf %0 : vector<16x8xf32> to vector<16x8xbf16>
    %c0_1 = arith.constant 0 : index
    %c0_2 = arith.constant 0 : index
    %2 = vector.load %arg2[%c0_1, %c0_2] : memref<8x64xbf16, #tpu.memory_space<vmem>>, vector<8x64xbf16>
    %cst = arith.constant dense<0.000000e+00> : vector<16x64xf32>
    %3 = tpu.matmul %1, %2, %cst {dimension_numbers = #tpu.dot_dimension_numbers<[1], [0], [0], [1], [0, 0, 1, 1], [], []>} : vector<16x8xbf16>, vector<8x64xbf16>, vector<16x64xf32> -> vector<16x64xf32>
    %4 = arith.truncf %3 : vector<16x64xf32> to vector<16x64xbf16>
    %c0_3 = arith.constant 0 : index
    %c0_4 = arith.constant 0 : index
    %5 = vector.load %arg3[%c0_3, %c0_4] : memref<64x8xbf16, #tpu.memory_space<vmem>>, vector<64x8xbf16>
    %cst_5 = arith.constant dense<0.000000e+00> : vector<16x8xf32>
    %6 = tpu.matmul %4, %5, %cst_5 {dimension_numbers = #tpu.dot_dimension_numbers<[1], [0], [0], [1], [0, 0, 1, 1], [], []>} : vector<16x64xbf16>, vector<64x8xbf16>, vector<16x8xf32> -> vector<16x8xf32>
    %c0_6 = arith.constant 0 : index
    %c0_7 = arith.constant 0 : index
    %7 = vector.load %arg5[%c0_6, %c0_7] : memref<16x8xf32, #tpu.memory_space<vmem>>, vector<16x8xf32>
    tpu.vector_store %arg5[%c0_6, %c0_7], %6 {strides = array<i32>} : memref<16x8xf32, #tpu.memory_space<vmem>>, vector<16x8xf32>,
    %8 = arith.truncf %3 : vector<16x64xf32> to vector<16x64xbf16>
    %c0_8 = arith.constant 0 : index
    %c0_9 = arith.constant 0 : index
    %9 = vector.load %arg4[%c0_8, %c0_9] : memref<16x64xbf16, #tpu.memory_space<vmem>>, vector<16x64xbf16>
    tpu.vector_store %arg4[%c0_8, %c0_9], %8 {strides = array<i32>} : memref<16x64xbf16, #tpu.memory_space<vmem>>, vector<16x64xbf16>,
    return
  }
  func.func @transform_0(%arg0: i32) -> (i32, i32) {
    %c0_i32 = arith.constant 0 : i32
    %c0_i32_0 = arith.constant 0 : i32
    return %arg0, %c0_i32 : i32, i32
  }
  func.func @transform_1(%arg0: i32) -> (i32, i32) {
    %c0_i32 = arith.constant 0 : i32
    %c0_i32_0 = arith.constant 0 : i32
    %c0_i32_1 = arith.constant 0 : i32
    return %c0_i32, %c0_i32_0 : i32, i32
  }
  func.func @transform_2(%arg0: i32) -> (i32, i32) {
    %c0_i32 = arith.constant 0 : i32
    %c0_i32_0 = arith.constant 0 : i32
    %c0_i32_1 = arith.constant 0 : i32
    return %c0_i32, %c0_i32_0 : i32, i32
  }
  func.func @transform_3(%arg0: i32) -> (i32, i32) {
    %c0_i32 = arith.constant 0 : i32
    %c0_i32_0 = arith.constant 0 : i32
    return %arg0, %c0_i32 : i32, i32
  }
  func.func @transform_4(%arg0: i32) -> (i32, i32) {
    %c0_i32 = arith.constant 0 : i32
    %c0_i32_0 = arith.constant 0 : i32
    return %arg0, %c0_i32 : i32, i32
  }
}

module attributes {stable_mosaic.version = 11 : i64} {
  func.func @_graph_norm_kernel(%arg0: i32, %arg1: memref<16x64xf32, #tpu.memory_space<vmem>>, %arg2: memref<2x16xf32, #tpu.memory_space<vmem>>, %arg3: memref<16x2xf32, #tpu.memory_space<vmem>>, %arg4: memref<2x1xf32, #tpu.memory_space<vmem>>, %arg5: memref<3x64xf32, #tpu.memory_space<vmem>>, %arg6: memref<16x64xf32, #tpu.memory_space<vmem>>) attributes {dimension_semantics = [#tpu.dimension_semantics<arbitrary>], iteration_bounds = array<i64: 1>, scalar_prefetch = 0 : i64, scratch_operands = 0 : i64, tpu.core_type = #tpu.core_type<tc>, window_params = [{pipeline_mode = #tpu.pipeline_mode<synchronous>, transform_indices = @transform_0, window_bounds = array<i64: 16, 64>}, {pipeline_mode = #tpu.pipeline_mode<synchronous>, transform_indices = @transform_1, window_bounds = array<i64: 2, 16>}, {pipeline_mode = #tpu.pipeline_mode<synchronous>, transform_indices = @transform_2, window_bounds = array<i64: 16, 2>}, {pipeline_mode = #tpu.pipeline_mode<synchronous>, transform_indices = @transform_3, window_bounds = array<i64: 2, 1>}, {pipeline_mode = #tpu.pipeline_mode<synchronous>, transform_indices = @transform_4, window_bounds = array<i64: 3, 64>}, {pipeline_mode = #tpu.pipeline_mode<synchronous>, transform_indices = @transform_5, window_bounds = array<i64: 16, 64>}]} {
    %c0 = arith.constant 0 : index
    %c0_0 = arith.constant 0 : index
    %0 = vector.load %arg1[%c0, %c0_0] : memref<16x64xf32, #tpu.memory_space<vmem>>, vector<16x64xf32>
    %c0_1 = arith.constant 0 : index
    %c0_2 = arith.constant 0 : index
    %1 = vector.load %arg2[%c0_1, %c0_2] : memref<2x16xf32, #tpu.memory_space<vmem>>, vector<2x16xf32>
    %c0_3 = arith.constant 0 : index
    %c0_4 = arith.constant 0 : index
    %2 = vector.load %arg3[%c0_3, %c0_4] : memref<16x2xf32, #tpu.memory_space<vmem>>, vector<16x2xf32>
    %c0_5 = arith.constant 0 : index
    %c0_6 = arith.constant 0 : index
    %3 = vector.load %arg4[%c0_5, %c0_6] : memref<2x1xf32, #tpu.memory_space<vmem>>, vector<2x1xf32>
    %c0_7 = arith.constant 0 : index
    %c0_8 = arith.constant 0 : index
    %4 = vector.load %arg5[%c0_7, %c0_8] : memref<3x64xf32, #tpu.memory_space<vmem>>, vector<1x64xf32>
    %c1 = arith.constant 1 : index
    %c0_9 = arith.constant 0 : index
    %5 = vector.load %arg5[%c1, %c0_9] : memref<3x64xf32, #tpu.memory_space<vmem>>, vector<1x64xf32>
    %c2 = arith.constant 2 : index
    %c0_10 = arith.constant 0 : index
    %6 = vector.load %arg5[%c2, %c0_10] : memref<3x64xf32, #tpu.memory_space<vmem>>, vector<1x64xf32>
    %cst = arith.constant dense<0.000000e+00> : vector<2x64xf32>
    %7 = tpu.matmul %1, %0, %cst {dimension_numbers = #tpu.dot_dimension_numbers<[1], [0], [0], [1], [0, 0, 1, 1], [], []>} : vector<2x16xf32>, vector<16x64xf32>, vector<2x64xf32> -> vector<2x64xf32>
    %8 = vector.broadcast %3 : vector<2x1xf32> to vector<2x64xf32>
    %9 = arith.mulf %7, %8 : vector<2x64xf32>
    %cst_11 = arith.constant dense<0.000000e+00> : vector<16x64xf32>
    %10 = tpu.matmul %2, %9, %cst_11 {dimension_numbers = #tpu.dot_dimension_numbers<[1], [0], [0], [1], [0, 0, 1, 1], [], []>} : vector<16x2xf32>, vector<2x64xf32>, vector<16x64xf32> -> vector<16x64xf32>
    %11 = vector.broadcast %6 : vector<1x64xf32> to vector<16x64xf32>
    %12 = arith.mulf %10, %11 : vector<16x64xf32>
    %13 = arith.subf %0, %12 : vector<16x64xf32>
    %14 = arith.mulf %13, %13 : vector<16x64xf32>
    %cst_12 = arith.constant dense<0.000000e+00> : vector<2x64xf32>
    %15 = tpu.matmul %1, %14, %cst_12 {dimension_numbers = #tpu.dot_dimension_numbers<[1], [0], [0], [1], [0, 0, 1, 1], [], []>} : vector<2x16xf32>, vector<16x64xf32>, vector<2x64xf32> -> vector<2x64xf32>
    %16 = vector.broadcast %3 : vector<2x1xf32> to vector<2x64xf32>
    %17 = arith.mulf %15, %16 : vector<2x64xf32>
    %cst_13 = arith.constant dense<0.000000e+00> : vector<16x64xf32>
    %18 = tpu.matmul %2, %17, %cst_13 {dimension_numbers = #tpu.dot_dimension_numbers<[1], [0], [0], [1], [0, 0, 1, 1], [], []>} : vector<16x2xf32>, vector<2x64xf32>, vector<16x64xf32> -> vector<16x64xf32>
    %19 = vector.broadcast %4 : vector<1x64xf32> to vector<16x64xf32>
    %20 = arith.mulf %19, %13 : vector<16x64xf32>
    %cst_14 = arith.constant 9.99999974E-6 : f32
    %21 = vector.broadcast %cst_14 : f32 to vector<16x64xf32>
    %22 = arith.addf %18, %21 : vector<16x64xf32>
    %23 = math.rsqrt %22 : vector<16x64xf32>
    %24 = arith.mulf %20, %23 : vector<16x64xf32>
    %25 = vector.broadcast %5 : vector<1x64xf32> to vector<16x64xf32>
    %26 = arith.addf %24, %25 : vector<16x64xf32>
    %c0_15 = arith.constant 0 : index
    %c0_16 = arith.constant 0 : index
    %27 = vector.load %arg6[%c0_15, %c0_16] : memref<16x64xf32, #tpu.memory_space<vmem>>, vector<16x64xf32>
    tpu.vector_store %arg6[%c0_15, %c0_16], %26 {strides = array<i32>} : memref<16x64xf32, #tpu.memory_space<vmem>>, vector<16x64xf32>,
    return
  }
  func.func @transform_0(%arg0: i32) -> (i32, i32) {
    %c0_i32 = arith.constant 0 : i32
    %c0_i32_0 = arith.constant 0 : i32
    %c0_i32_1 = arith.constant 0 : i32
    return %c0_i32, %c0_i32_0 : i32, i32
  }
  func.func @transform_1(%arg0: i32) -> (i32, i32) {
    %c0_i32 = arith.constant 0 : i32
    %c0_i32_0 = arith.constant 0 : i32
    %c0_i32_1 = arith.constant 0 : i32
    return %c0_i32, %c0_i32_0 : i32, i32
  }
  func.func @transform_2(%arg0: i32) -> (i32, i32) {
    %c0_i32 = arith.constant 0 : i32
    %c0_i32_0 = arith.constant 0 : i32
    %c0_i32_1 = arith.constant 0 : i32
    return %c0_i32, %c0_i32_0 : i32, i32
  }
  func.func @transform_3(%arg0: i32) -> (i32, i32) {
    %c0_i32 = arith.constant 0 : i32
    %c0_i32_0 = arith.constant 0 : i32
    %c0_i32_1 = arith.constant 0 : i32
    return %c0_i32, %c0_i32_0 : i32, i32
  }
  func.func @transform_4(%arg0: i32) -> (i32, i32) {
    %c0_i32 = arith.constant 0 : i32
    %c0_i32_0 = arith.constant 0 : i32
    %c0_i32_1 = arith.constant 0 : i32
    return %c0_i32, %c0_i32_0 : i32, i32
  }
  func.func @transform_5(%arg0: i32) -> (i32, i32) {
    %c0_i32 = arith.constant 0 : i32
    %c0_i32_0 = arith.constant 0 : i32
    %c0_i32_1 = arith.constant 0 : i32
    return %c0_i32, %c0_i32_0 : i32, i32
  }
}

module attributes {stable_mosaic.version = 11 : i64} {
  func.func @_attn_kernel(%arg0: i32, %arg1: memref<16x16xbf16, #tpu.memory_space<vmem>>, %arg2: memref<16x64xbf16, #tpu.memory_space<vmem>>, %arg3: memref<16x8xf32, #tpu.memory_space<vmem>>, %arg4: memref<16x8xf32, #tpu.memory_space<vmem>>, %arg5: memref<1x64xf32, #tpu.memory_space<vmem>>, %arg6: memref<16x64xf32, #tpu.memory_space<vmem>>) attributes {dimension_semantics = [#tpu.dimension_semantics<parallel>], iteration_bounds = array<i64: 1>, scalar_prefetch = 0 : i64, scratch_operands = 0 : i64, tpu.core_type = #tpu.core_type<tc>, window_params = [{transform_indices = @transform_0, window_bounds = array<i64: 16, 16>}, {pipeline_mode = #tpu.pipeline_mode<synchronous>, transform_indices = @transform_1, window_bounds = array<i64: 16, 64>}, {transform_indices = @transform_2, window_bounds = array<i64: 16, 8>}, {pipeline_mode = #tpu.pipeline_mode<synchronous>, transform_indices = @transform_3, window_bounds = array<i64: 16, 8>}, {pipeline_mode = #tpu.pipeline_mode<synchronous>, transform_indices = @transform_4, window_bounds = array<i64: 1, 64>}, {transform_indices = @transform_5, window_bounds = array<i64: 16, 64>}]} {
    %c0 = arith.constant 0 : index
    %c0_0 = arith.constant 0 : index
    %0 = vector.load %arg1[%c0, %c0_0] : memref<16x16xbf16, #tpu.memory_space<vmem>>, vector<16x16xbf16>
    %cst = arith.constant 0.000000e+00 : bf16
    %1 = vector.broadcast %cst : bf16 to vector<16x16xbf16>
    %2 = arith.cmpf ogt, %0, %1 : vector<16x16xbf16>
    %c0_1 = arith.constant 0 : index
    %c0_2 = arith.constant 0 : index
    %3 = vector.load %arg2[%c0_1, %c0_2] : memref<16x64xbf16, #tpu.memory_space<vmem>>, vector<16x64xbf16>
    %c0_3 = arith.constant 0 : index
    %c0_4 = arith.constant 0 : index
    %4 = vector.load %arg3[%c0_3, %c0_4] : memref<16x8xf32, #tpu.memory_space<vmem>>, vector<16x8xf32>
    %5 = vector.extract_strided_slice %4 {offsets = [0, 0], sizes = [16, 4], strides = [1, 1]} : vector<16x8xf32> to vector<16x4xf32>
    %c0_5 = arith.constant 0 : index
    %c0_6 = arith.constant 0 : index
    %6 = vector.load %arg4[%c0_5, %c0_6] : memref<16x8xf32, #tpu.memory_space<vmem>>, vector<16x8xf32>
    %7 = vector.extract_strided_slice %6 {offsets = [0, 4], sizes = [16, 4], strides = [1, 1]} : vector<16x8xf32> to vector<16x4xf32>
    %8 = tpu.transpose %7, [1, 0] : vector<16x4xf32> -> vector<4x16xf32>
    %9 = vector.extract_strided_slice %5 {offsets = [0, 0], sizes = [16, 1], strides = [1, 1]} : vector<16x4xf32> to vector<16x1xf32>
    %10 = vector.extract_strided_slice %8 {offsets = [0, 0], sizes = [1, 16], strides = [1, 1]} : vector<4x16xf32> to vector<1x16xf32>
    %11 = vector.broadcast %9 : vector<16x1xf32> to vector<16x16xf32>
    %12 = vector.broadcast %10 : vector<1x16xf32> to vector<16x16xf32>
    %13 = arith.addf %11, %12 : vector<16x16xf32>
    %cst_7 = arith.constant 2.000000e-01 : f32
    %14 = vector.broadcast %cst_7 : f32 to vector<16x16xf32>
    %15 = arith.mulf %14, %13 : vector<16x16xf32>
    %16 = arith.maximumf %13, %15 : vector<16x16xf32>
    %cst_8 = arith.constant -1.000000e+30 : f32
    %17 = vector.broadcast %cst_8 : f32 to vector<16x16xf32>
    %18 = arith.select %2, %16, %17 : vector<16x16xi1>, vector<16x16xf32>
    %cst_9 = arith.constant dense<0xFF800000> : vector<16xf32>
    %19 = vector.multi_reduction <maximumf>, %18, %cst_9 [1] : vector<16x16xf32> to vector<16xf32>
    %20 = vector.shape_cast %19 : vector<16xf32> to vector<16x1xf32>
    %21 = vector.broadcast %20 : vector<16x1xf32> to vector<16x16xf32>
    %22 = arith.subf %18, %21 : vector<16x16xf32>
    %23 = math.exp %22 : vector<16x16xf32>
    %cst_10 = arith.constant dense<0.000000e+00> : vector<16xf32>
    %24 = vector.multi_reduction <add>, %23, %cst_10 [1] : vector<16x16xf32> to vector<16xf32>
    %25 = vector.shape_cast %24 : vector<16xf32> to vector<16x1xf32>
    %26 = arith.truncf %23 : vector<16x16xf32> to vector<16x16xbf16>
    %27 = vector.extract_strided_slice %3 {offsets = [0, 0], sizes = [16, 16], strides = [1, 1]} : vector<16x64xbf16> to vector<16x16xbf16>
    %cst_11 = arith.constant dense<0.000000e+00> : vector<16x16xf32>
    %28 = tpu.matmul %26, %27, %cst_11 {dimension_numbers = #tpu.dot_dimension_numbers<[1], [0], [0], [1], [0, 0, 1, 1], [], []>} : vector<16x16xbf16>, vector<16x16xbf16>, vector<16x16xf32> -> vector<16x16xf32>
    %29 = tpu.reciprocal %25 {approx = true} : vector<16x1xf32> -> vector<16x1xf32>
    %30 = vector.broadcast %29 : vector<16x1xf32> to vector<16x16xf32>
    %31 = arith.mulf %28, %30 : vector<16x16xf32>
    %32 = vector.extract_strided_slice %5 {offsets = [0, 1], sizes = [16, 1], strides = [1, 1]} : vector<16x4xf32> to vector<16x1xf32>
    %33 = vector.extract_strided_slice %8 {offsets = [1, 0], sizes = [1, 16], strides = [1, 1]} : vector<4x16xf32> to vector<1x16xf32>
    %34 = vector.broadcast %32 : vector<16x1xf32> to vector<16x16xf32>
    %35 = vector.broadcast %33 : vector<1x16xf32> to vector<16x16xf32>
    %36 = arith.addf %34, %35 : vector<16x16xf32>
    %cst_12 = arith.constant 2.000000e-01 : f32
    %37 = vector.broadcast %cst_12 : f32 to vector<16x16xf32>
    %38 = arith.mulf %37, %36 : vector<16x16xf32>
    %39 = arith.maximumf %36, %38 : vector<16x16xf32>
    %cst_13 = arith.constant -1.000000e+30 : f32
    %40 = vector.broadcast %cst_13 : f32 to vector<16x16xf32>
    %41 = arith.select %2, %39, %40 : vector<16x16xi1>, vector<16x16xf32>
    %cst_14 = arith.constant dense<0xFF800000> : vector<16xf32>
    %42 = vector.multi_reduction <maximumf>, %41, %cst_14 [1] : vector<16x16xf32> to vector<16xf32>
    %43 = vector.shape_cast %42 : vector<16xf32> to vector<16x1xf32>
    %44 = vector.broadcast %43 : vector<16x1xf32> to vector<16x16xf32>
    %45 = arith.subf %41, %44 : vector<16x16xf32>
    %46 = math.exp %45 : vector<16x16xf32>
    %cst_15 = arith.constant dense<0.000000e+00> : vector<16xf32>
    %47 = vector.multi_reduction <add>, %46, %cst_15 [1] : vector<16x16xf32> to vector<16xf32>
    %48 = vector.shape_cast %47 : vector<16xf32> to vector<16x1xf32>
    %49 = arith.truncf %46 : vector<16x16xf32> to vector<16x16xbf16>
    %50 = vector.extract_strided_slice %3 {offsets = [0, 16], sizes = [16, 16], strides = [1, 1]} : vector<16x64xbf16> to vector<16x16xbf16>
    %cst_16 = arith.constant dense<0.000000e+00> : vector<16x16xf32>
    %51 = tpu.matmul %49, %50, %cst_16 {dimension_numbers = #tpu.dot_dimension_numbers<[1], [0], [0], [1], [0, 0, 1, 1], [], []>} : vector<16x16xbf16>, vector<16x16xbf16>, vector<16x16xf32> -> vector<16x16xf32>
    %52 = tpu.reciprocal %48 {approx = true} : vector<16x1xf32> -> vector<16x1xf32>
    %53 = vector.broadcast %52 : vector<16x1xf32> to vector<16x16xf32>
    %54 = arith.mulf %51, %53 : vector<16x16xf32>
    %55 = vector.extract_strided_slice %5 {offsets = [0, 2], sizes = [16, 1], strides = [1, 1]} : vector<16x4xf32> to vector<16x1xf32>
    %56 = vector.extract_strided_slice %8 {offsets = [2, 0], sizes = [1, 16], strides = [1, 1]} : vector<4x16xf32> to vector<1x16xf32>
    %57 = vector.broadcast %55 : vector<16x1xf32> to vector<16x16xf32>
    %58 = vector.broadcast %56 : vector<1x16xf32> to vector<16x16xf32>
    %59 = arith.addf %57, %58 : vector<16x16xf32>
    %cst_17 = arith.constant 2.000000e-01 : f32
    %60 = vector.broadcast %cst_17 : f32 to vector<16x16xf32>
    %61 = arith.mulf %60, %59 : vector<16x16xf32>
    %62 = arith.maximumf %59, %61 : vector<16x16xf32>
    %cst_18 = arith.constant -1.000000e+30 : f32
    %63 = vector.broadcast %cst_18 : f32 to vector<16x16xf32>
    %64 = arith.select %2, %62, %63 : vector<16x16xi1>, vector<16x16xf32>
    %cst_19 = arith.constant dense<0xFF800000> : vector<16xf32>
    %65 = vector.multi_reduction <maximumf>, %64, %cst_19 [1] : vector<16x16xf32> to vector<16xf32>
    %66 = vector.shape_cast %65 : vector<16xf32> to vector<16x1xf32>
    %67 = vector.broadcast %66 : vector<16x1xf32> to vector<16x16xf32>
    %68 = arith.subf %64, %67 : vector<16x16xf32>
    %69 = math.exp %68 : vector<16x16xf32>
    %cst_20 = arith.constant dense<0.000000e+00> : vector<16xf32>
    %70 = vector.multi_reduction <add>, %69, %cst_20 [1] : vector<16x16xf32> to vector<16xf32>
    %71 = vector.shape_cast %70 : vector<16xf32> to vector<16x1xf32>
    %72 = arith.truncf %69 : vector<16x16xf32> to vector<16x16xbf16>
    %73 = vector.extract_strided_slice %3 {offsets = [0, 32], sizes = [16, 16], strides = [1, 1]} : vector<16x64xbf16> to vector<16x16xbf16>
    %cst_21 = arith.constant dense<0.000000e+00> : vector<16x16xf32>
    %74 = tpu.matmul %72, %73, %cst_21 {dimension_numbers = #tpu.dot_dimension_numbers<[1], [0], [0], [1], [0, 0, 1, 1], [], []>} : vector<16x16xbf16>, vector<16x16xbf16>, vector<16x16xf32> -> vector<16x16xf32>
    %75 = tpu.reciprocal %71 {approx = true} : vector<16x1xf32> -> vector<16x1xf32>
    %76 = vector.broadcast %75 : vector<16x1xf32> to vector<16x16xf32>
    %77 = arith.mulf %74, %76 : vector<16x16xf32>
    %78 = vector.extract_strided_slice %5 {offsets = [0, 3], sizes = [16, 1], strides = [1, 1]} : vector<16x4xf32> to vector<16x1xf32>
    %79 = vector.extract_strided_slice %8 {offsets = [3, 0], sizes = [1, 16], strides = [1, 1]} : vector<4x16xf32> to vector<1x16xf32>
    %80 = vector.broadcast %78 : vector<16x1xf32> to vector<16x16xf32>
    %81 = vector.broadcast %79 : vector<1x16xf32> to vector<16x16xf32>
    %82 = arith.addf %80, %81 : vector<16x16xf32>
    %cst_22 = arith.constant 2.000000e-01 : f32
    %83 = vector.broadcast %cst_22 : f32 to vector<16x16xf32>
    %84 = arith.mulf %83, %82 : vector<16x16xf32>
    %85 = arith.maximumf %82, %84 : vector<16x16xf32>
    %cst_23 = arith.constant -1.000000e+30 : f32
    %86 = vector.broadcast %cst_23 : f32 to vector<16x16xf32>
    %87 = arith.select %2, %85, %86 : vector<16x16xi1>, vector<16x16xf32>
    %cst_24 = arith.constant dense<0xFF800000> : vector<16xf32>
    %88 = vector.multi_reduction <maximumf>, %87, %cst_24 [1] : vector<16x16xf32> to vector<16xf32>
    %89 = vector.shape_cast %88 : vector<16xf32> to vector<16x1xf32>
    %90 = vector.broadcast %89 : vector<16x1xf32> to vector<16x16xf32>
    %91 = arith.subf %87, %90 : vector<16x16xf32>
    %92 = math.exp %91 : vector<16x16xf32>
    %cst_25 = arith.constant dense<0.000000e+00> : vector<16xf32>
    %93 = vector.multi_reduction <add>, %92, %cst_25 [1] : vector<16x16xf32> to vector<16xf32>
    %94 = vector.shape_cast %93 : vector<16xf32> to vector<16x1xf32>
    %95 = arith.truncf %92 : vector<16x16xf32> to vector<16x16xbf16>
    %96 = vector.extract_strided_slice %3 {offsets = [0, 48], sizes = [16, 16], strides = [1, 1]} : vector<16x64xbf16> to vector<16x16xbf16>
    %cst_26 = arith.constant dense<0.000000e+00> : vector<16x16xf32>
    %97 = tpu.matmul %95, %96, %cst_26 {dimension_numbers = #tpu.dot_dimension_numbers<[1], [0], [0], [1], [0, 0, 1, 1], [], []>} : vector<16x16xbf16>, vector<16x16xbf16>, vector<16x16xf32> -> vector<16x16xf32>
    %98 = tpu.reciprocal %94 {approx = true} : vector<16x1xf32> -> vector<16x1xf32>
    %99 = vector.broadcast %98 : vector<16x1xf32> to vector<16x16xf32>
    %100 = arith.mulf %97, %99 : vector<16x16xf32>
    %101 = tpu.concatenate %31, %54, %77, %100 in 1 : vector<16x16xf32>, vector<16x16xf32>, vector<16x16xf32>, vector<16x16xf32> -> vector<16x64xf32>
    %c0_27 = arith.constant 0 : index
    %c0_28 = arith.constant 0 : index
    %102 = vector.load %arg5[%c0_27, %c0_28] : memref<1x64xf32, #tpu.memory_space<vmem>>, vector<1x64xf32>
    %103 = vector.broadcast %102 : vector<1x64xf32> to vector<16x64xf32>
    %104 = arith.addf %101, %103 : vector<16x64xf32>
    %c0_29 = arith.constant 0 : index
    %c0_30 = arith.constant 0 : index
    %105 = vector.load %arg6[%c0_29, %c0_30] : memref<16x64xf32, #tpu.memory_space<vmem>>, vector<16x64xf32>
    tpu.vector_store %arg6[%c0_29, %c0_30], %104 {strides = array<i32>} : memref<16x64xf32, #tpu.memory_space<vmem>>, vector<16x64xf32>,
    return
  }
  func.func @transform_0(%arg0: i32) -> (i32, i32) {
    %c0_i32 = arith.constant 0 : i32
    %c0_i32_0 = arith.constant 0 : i32
    return %arg0, %c0_i32 : i32, i32
  }
  func.func @transform_1(%arg0: i32) -> (i32, i32) {
    %c0_i32 = arith.constant 0 : i32
    %c0_i32_0 = arith.constant 0 : i32
    %c0_i32_1 = arith.constant 0 : i32
    return %c0_i32, %c0_i32_0 : i32, i32
  }
  func.func @transform_2(%arg0: i32) -> (i32, i32) {
    %c0_i32 = arith.constant 0 : i32
    %c0_i32_0 = arith.constant 0 : i32
    return %arg0, %c0_i32 : i32, i32
  }
  func.func @transform_3(%arg0: i32) -> (i32, i32) {
    %c0_i32 = arith.constant 0 : i32
    %c0_i32_0 = arith.constant 0 : i32
    %c0_i32_1 = arith.constant 0 : i32
    return %c0_i32, %c0_i32_0 : i32, i32
  }
  func.func @transform_4(%arg0: i32) -> (i32, i32) {
    %c0_i32 = arith.constant 0 : i32
    %c0_i32_0 = arith.constant 0 : i32
    %c0_i32_1 = arith.constant 0 : i32
    return %c0_i32, %c0_i32_0 : i32, i32
  }
  func.func @transform_5(%arg0: i32) -> (i32, i32) {
    %c0_i32 = arith.constant 0 : i32
    %c0_i32_0 = arith.constant 0 : i32
    return %arg0, %c0_i32 : i32, i32
  }
}

module attributes {stable_mosaic.version = 11 : i64} {
  func.func @_proj_kernel(%arg0: i32, %arg1: memref<16x64xf32, #tpu.memory_space<vmem>>, %arg2: memref<64x32xbf16, #tpu.memory_space<vmem>>, %arg3: memref<32x8xbf16, #tpu.memory_space<vmem>>, %arg4: memref<16x32xbf16, #tpu.memory_space<vmem>>, %arg5: memref<16x8xf32, #tpu.memory_space<vmem>>) attributes {dimension_semantics = [#tpu.dimension_semantics<parallel>], iteration_bounds = array<i64: 1>, scalar_prefetch = 0 : i64, scratch_operands = 0 : i64, tpu.core_type = #tpu.core_type<tc>, window_params = [{transform_indices = @transform_0, window_bounds = array<i64: 16, 64>}, {pipeline_mode = #tpu.pipeline_mode<synchronous>, transform_indices = @transform_1, window_bounds = array<i64: 64, 32>}, {pipeline_mode = #tpu.pipeline_mode<synchronous>, transform_indices = @transform_2, window_bounds = array<i64: 32, 8>}, {transform_indices = @transform_3, window_bounds = array<i64: 16, 32>}, {transform_indices = @transform_4, window_bounds = array<i64: 16, 8>}]} {
    %c0 = arith.constant 0 : index
    %c0_0 = arith.constant 0 : index
    %0 = vector.load %arg1[%c0, %c0_0] : memref<16x64xf32, #tpu.memory_space<vmem>>, vector<16x64xf32>
    %1 = arith.truncf %0 : vector<16x64xf32> to vector<16x64xbf16>
    %c0_1 = arith.constant 0 : index
    %c0_2 = arith.constant 0 : index
    %2 = vector.load %arg2[%c0_1, %c0_2] : memref<64x32xbf16, #tpu.memory_space<vmem>>, vector<64x32xbf16>
    %cst = arith.constant dense<0.000000e+00> : vector<16x32xf32>
    %3 = tpu.matmul %1, %2, %cst {dimension_numbers = #tpu.dot_dimension_numbers<[1], [0], [0], [1], [0, 0, 1, 1], [], []>} : vector<16x64xbf16>, vector<64x32xbf16>, vector<16x32xf32> -> vector<16x32xf32>
    %4 = arith.truncf %3 : vector<16x32xf32> to vector<16x32xbf16>
    %c0_3 = arith.constant 0 : index
    %c0_4 = arith.constant 0 : index
    %5 = vector.load %arg3[%c0_3, %c0_4] : memref<32x8xbf16, #tpu.memory_space<vmem>>, vector<32x8xbf16>
    %cst_5 = arith.constant dense<0.000000e+00> : vector<16x8xf32>
    %6 = tpu.matmul %4, %5, %cst_5 {dimension_numbers = #tpu.dot_dimension_numbers<[1], [0], [0], [1], [0, 0, 1, 1], [], []>} : vector<16x32xbf16>, vector<32x8xbf16>, vector<16x8xf32> -> vector<16x8xf32>
    %c0_6 = arith.constant 0 : index
    %c0_7 = arith.constant 0 : index
    %7 = vector.load %arg5[%c0_6, %c0_7] : memref<16x8xf32, #tpu.memory_space<vmem>>, vector<16x8xf32>
    tpu.vector_store %arg5[%c0_6, %c0_7], %6 {strides = array<i32>} : memref<16x8xf32, #tpu.memory_space<vmem>>, vector<16x8xf32>,
    %8 = arith.truncf %3 : vector<16x32xf32> to vector<16x32xbf16>
    %c0_8 = arith.constant 0 : index
    %c0_9 = arith.constant 0 : index
    %9 = vector.load %arg4[%c0_8, %c0_9] : memref<16x32xbf16, #tpu.memory_space<vmem>>, vector<16x32xbf16>
    tpu.vector_store %arg4[%c0_8, %c0_9], %8 {strides = array<i32>} : memref<16x32xbf16, #tpu.memory_space<vmem>>, vector<16x32xbf16>,
    return
  }
  func.func @transform_0(%arg0: i32) -> (i32, i32) {
    %c0_i32 = arith.constant 0 : i32
    %c0_i32_0 = arith.constant 0 : i32
    return %arg0, %c0_i32 : i32, i32
  }
  func.func @transform_1(%arg0: i32) -> (i32, i32) {
    %c0_i32 = arith.constant 0 : i32
    %c0_i32_0 = arith.constant 0 : i32
    %c0_i32_1 = arith.constant 0 : i32
    return %c0_i32, %c0_i32_0 : i32, i32
  }
  func.func @transform_2(%arg0: i32) -> (i32, i32) {
    %c0_i32 = arith.constant 0 : i32
    %c0_i32_0 = arith.constant 0 : i32
    %c0_i32_1 = arith.constant 0 : i32
    return %c0_i32, %c0_i32_0 : i32, i32
  }
  func.func @transform_3(%arg0: i32) -> (i32, i32) {
    %c0_i32 = arith.constant 0 : i32
    %c0_i32_0 = arith.constant 0 : i32
    return %arg0, %c0_i32 : i32, i32
  }
  func.func @transform_4(%arg0: i32) -> (i32, i32) {
    %c0_i32 = arith.constant 0 : i32
    %c0_i32_0 = arith.constant 0 : i32
    return %arg0, %c0_i32 : i32, i32
  }
}

module attributes {stable_mosaic.version = 11 : i64} {
  func.func @_graph_norm_kernel(%arg0: i32, %arg1: memref<16x8xf32, #tpu.memory_space<vmem>>, %arg2: memref<2x16xf32, #tpu.memory_space<vmem>>, %arg3: memref<16x2xf32, #tpu.memory_space<vmem>>, %arg4: memref<2x1xf32, #tpu.memory_space<vmem>>, %arg5: memref<3x8xf32, #tpu.memory_space<vmem>>, %arg6: memref<2x8xf32, #tpu.memory_space<vmem>>) attributes {dimension_semantics = [#tpu.dimension_semantics<arbitrary>], iteration_bounds = array<i64: 1>, scalar_prefetch = 0 : i64, scratch_operands = 0 : i64, tpu.core_type = #tpu.core_type<tc>, window_params = [{pipeline_mode = #tpu.pipeline_mode<synchronous>, transform_indices = @transform_0, window_bounds = array<i64: 16, 8>}, {pipeline_mode = #tpu.pipeline_mode<synchronous>, transform_indices = @transform_1, window_bounds = array<i64: 2, 16>}, {pipeline_mode = #tpu.pipeline_mode<synchronous>, transform_indices = @transform_2, window_bounds = array<i64: 16, 2>}, {pipeline_mode = #tpu.pipeline_mode<synchronous>, transform_indices = @transform_3, window_bounds = array<i64: 2, 1>}, {pipeline_mode = #tpu.pipeline_mode<synchronous>, transform_indices = @transform_4, window_bounds = array<i64: 3, 8>}, {pipeline_mode = #tpu.pipeline_mode<synchronous>, transform_indices = @transform_5, window_bounds = array<i64: 2, 8>}]} {
    %c0 = arith.constant 0 : index
    %c0_0 = arith.constant 0 : index
    %0 = vector.load %arg1[%c0, %c0_0] : memref<16x8xf32, #tpu.memory_space<vmem>>, vector<16x8xf32>
    %c0_1 = arith.constant 0 : index
    %c0_2 = arith.constant 0 : index
    %1 = vector.load %arg2[%c0_1, %c0_2] : memref<2x16xf32, #tpu.memory_space<vmem>>, vector<2x16xf32>
    %c0_3 = arith.constant 0 : index
    %c0_4 = arith.constant 0 : index
    %2 = vector.load %arg3[%c0_3, %c0_4] : memref<16x2xf32, #tpu.memory_space<vmem>>, vector<16x2xf32>
    %c0_5 = arith.constant 0 : index
    %c0_6 = arith.constant 0 : index
    %3 = vector.load %arg4[%c0_5, %c0_6] : memref<2x1xf32, #tpu.memory_space<vmem>>, vector<2x1xf32>
    %c0_7 = arith.constant 0 : index
    %c0_8 = arith.constant 0 : index
    %4 = vector.load %arg5[%c0_7, %c0_8] : memref<3x8xf32, #tpu.memory_space<vmem>>, vector<1x8xf32>
    %c1 = arith.constant 1 : index
    %c0_9 = arith.constant 0 : index
    %5 = vector.load %arg5[%c1, %c0_9] : memref<3x8xf32, #tpu.memory_space<vmem>>, vector<1x8xf32>
    %c2 = arith.constant 2 : index
    %c0_10 = arith.constant 0 : index
    %6 = vector.load %arg5[%c2, %c0_10] : memref<3x8xf32, #tpu.memory_space<vmem>>, vector<1x8xf32>
    %cst = arith.constant dense<0.000000e+00> : vector<2x8xf32>
    %7 = tpu.matmul %1, %0, %cst {dimension_numbers = #tpu.dot_dimension_numbers<[1], [0], [0], [1], [0, 0, 1, 1], [], []>} : vector<2x16xf32>, vector<16x8xf32>, vector<2x8xf32> -> vector<2x8xf32>
    %8 = vector.broadcast %3 : vector<2x1xf32> to vector<2x8xf32>
    %9 = arith.mulf %7, %8 : vector<2x8xf32>
    %cst_11 = arith.constant dense<0.000000e+00> : vector<16x8xf32>
    %10 = tpu.matmul %2, %9, %cst_11 {dimension_numbers = #tpu.dot_dimension_numbers<[1], [0], [0], [1], [0, 0, 1, 1], [], []>} : vector<16x2xf32>, vector<2x8xf32>, vector<16x8xf32> -> vector<16x8xf32>
    %11 = vector.broadcast %6 : vector<1x8xf32> to vector<16x8xf32>
    %12 = arith.mulf %10, %11 : vector<16x8xf32>
    %13 = arith.subf %0, %12 : vector<16x8xf32>
    %14 = arith.mulf %13, %13 : vector<16x8xf32>
    %cst_12 = arith.constant dense<0.000000e+00> : vector<2x8xf32>
    %15 = tpu.matmul %1, %14, %cst_12 {dimension_numbers = #tpu.dot_dimension_numbers<[1], [0], [0], [1], [0, 0, 1, 1], [], []>} : vector<2x16xf32>, vector<16x8xf32>, vector<2x8xf32> -> vector<2x8xf32>
    %16 = vector.broadcast %3 : vector<2x1xf32> to vector<2x8xf32>
    %17 = arith.mulf %15, %16 : vector<2x8xf32>
    %cst_13 = arith.constant dense<0.000000e+00> : vector<16x8xf32>
    %18 = tpu.matmul %2, %17, %cst_13 {dimension_numbers = #tpu.dot_dimension_numbers<[1], [0], [0], [1], [0, 0, 1, 1], [], []>} : vector<16x2xf32>, vector<2x8xf32>, vector<16x8xf32> -> vector<16x8xf32>
    %19 = vector.broadcast %4 : vector<1x8xf32> to vector<16x8xf32>
    %20 = arith.mulf %19, %13 : vector<16x8xf32>
    %cst_14 = arith.constant 9.99999974E-6 : f32
    %21 = vector.broadcast %cst_14 : f32 to vector<16x8xf32>
    %22 = arith.addf %18, %21 : vector<16x8xf32>
    %23 = math.rsqrt %22 : vector<16x8xf32>
    %24 = arith.mulf %20, %23 : vector<16x8xf32>
    %25 = vector.broadcast %5 : vector<1x8xf32> to vector<16x8xf32>
    %26 = arith.addf %24, %25 : vector<16x8xf32>
    %cst_15 = arith.constant dense<0.000000e+00> : vector<2x8xf32>
    %27 = tpu.matmul %1, %26, %cst_15 {dimension_numbers = #tpu.dot_dimension_numbers<[1], [0], [0], [1], [0, 0, 1, 1], [], []>} : vector<2x16xf32>, vector<16x8xf32>, vector<2x8xf32> -> vector<2x8xf32>
    %28 = vector.broadcast %3 : vector<2x1xf32> to vector<2x8xf32>
    %29 = arith.mulf %27, %28 : vector<2x8xf32>
    %c0_16 = arith.constant 0 : index
    %c0_17 = arith.constant 0 : index
    %30 = vector.load %arg6[%c0_16, %c0_17] : memref<2x8xf32, #tpu.memory_space<vmem>>, vector<2x8xf32>
    tpu.vector_store %arg6[%c0_16, %c0_17], %29 {strides = array<i32>} : memref<2x8xf32, #tpu.memory_space<vmem>>, vector<2x8xf32>,
    return
  }
  func.func @transform_0(%arg0: i32) -> (i32, i32) {
    %c0_i32 = arith.constant 0 : i32
    %c0_i32_0 = arith.constant 0 : i32
    %c0_i32_1 = arith.constant 0 : i32
    return %c0_i32, %c0_i32_0 : i32, i32
  }
  func.func @transform_1(%arg0: i32) -> (i32, i32) {
    %c0_i32 = arith.constant 0 : i32
    %c0_i32_0 = arith.constant 0 : i32
    %c0_i32_1 = arith.constant 0 : i32
    return %c0_i32, %c0_i32_0 : i32, i32
  }
  func.func @transform_2(%arg0: i32) -> (i32, i32) {
    %c0_i32 = arith.constant 0 : i32
    %c0_i32_0 = arith.constant 0 : i32
    %c0_i32_1 = arith.constant 0 : i32
    return %c0_i32, %c0_i32_0 : i32, i32
  }
  func.func @transform_3(%arg0: i32) -> (i32, i32) {
    %c0_i32 = arith.constant 0 : i32
    %c0_i32_0 = arith.constant 0 : i32
    %c0_i32_1 = arith.constant 0 : i32
    return %c0_i32, %c0_i32_0 : i32, i32
  }
  func.func @transform_4(%arg0: i32) -> (i32, i32) {
    %c0_i32 = arith.constant 0 : i32
    %c0_i32_0 = arith.constant 0 : i32
    %c0_i32_1 = arith.constant 0 : i32
    return %c0_i32, %c0_i32_0 : i32, i32
  }
  func.func @transform_5(%arg0: i32) -> (i32, i32) {
    %c0_i32 = arith.constant 0 : i32
    %c0_i32_0 = arith.constant 0 : i32
    %c0_i32_1 = arith.constant 0 : i32
    return %c0_i32, %c0_i32_0 : i32, i32
  }
}

module attributes {stable_mosaic.version = 11 : i64} {
  func.func @_attn_kernel(%arg0: i32, %arg1: memref<16x16xbf16, #tpu.memory_space<vmem>>, %arg2: memref<16x32xbf16, #tpu.memory_space<vmem>>, %arg3: memref<16x8xf32, #tpu.memory_space<vmem>>, %arg4: memref<16x8xf32, #tpu.memory_space<vmem>>, %arg5: memref<1x8xf32, #tpu.memory_space<vmem>>, %arg6: memref<16x8xf32, #tpu.memory_space<vmem>>) attributes {dimension_semantics = [#tpu.dimension_semantics<parallel>], iteration_bounds = array<i64: 1>, scalar_prefetch = 0 : i64, scratch_operands = 0 : i64, tpu.core_type = #tpu.core_type<tc>, window_params = [{transform_indices = @transform_0, window_bounds = array<i64: 16, 16>}, {pipeline_mode = #tpu.pipeline_mode<synchronous>, transform_indices = @transform_1, window_bounds = array<i64: 16, 32>}, {transform_indices = @transform_2, window_bounds = array<i64: 16, 8>}, {pipeline_mode = #tpu.pipeline_mode<synchronous>, transform_indices = @transform_3, window_bounds = array<i64: 16, 8>}, {pipeline_mode = #tpu.pipeline_mode<synchronous>, transform_indices = @transform_4, window_bounds = array<i64: 1, 8>}, {transform_indices = @transform_5, window_bounds = array<i64: 16, 8>}]} {
    %c0 = arith.constant 0 : index
    %c0_0 = arith.constant 0 : index
    %0 = vector.load %arg1[%c0, %c0_0] : memref<16x16xbf16, #tpu.memory_space<vmem>>, vector<16x16xbf16>
    %cst = arith.constant 0.000000e+00 : bf16
    %1 = vector.broadcast %cst : bf16 to vector<16x16xbf16>
    %2 = arith.cmpf ogt, %0, %1 : vector<16x16xbf16>
    %c0_1 = arith.constant 0 : index
    %c0_2 = arith.constant 0 : index
    %3 = vector.load %arg2[%c0_1, %c0_2] : memref<16x32xbf16, #tpu.memory_space<vmem>>, vector<16x32xbf16>
    %c0_3 = arith.constant 0 : index
    %c0_4 = arith.constant 0 : index
    %4 = vector.load %arg3[%c0_3, %c0_4] : memref<16x8xf32, #tpu.memory_space<vmem>>, vector<16x8xf32>
    %5 = vector.extract_strided_slice %4 {offsets = [0, 0], sizes = [16, 4], strides = [1, 1]} : vector<16x8xf32> to vector<16x4xf32>
    %c0_5 = arith.constant 0 : index
    %c0_6 = arith.constant 0 : index
    %6 = vector.load %arg4[%c0_5, %c0_6] : memref<16x8xf32, #tpu.memory_space<vmem>>, vector<16x8xf32>
    %7 = vector.extract_strided_slice %6 {offsets = [0, 4], sizes = [16, 4], strides = [1, 1]} : vector<16x8xf32> to vector<16x4xf32>
    %8 = tpu.transpose %7, [1, 0] : vector<16x4xf32> -> vector<4x16xf32>
    %9 = vector.extract_strided_slice %5 {offsets = [0, 0], sizes = [16, 1], strides = [1, 1]} : vector<16x4xf32> to vector<16x1xf32>
    %10 = vector.extract_strided_slice %8 {offsets = [0, 0], sizes = [1, 16], strides = [1, 1]} : vector<4x16xf32> to vector<1x16xf32>
    %11 = vector.broadcast %9 : vector<16x1xf32> to vector<16x16xf32>
    %12 = vector.broadcast %10 : vector<1x16xf32> to vector<16x16xf32>
    %13 = arith.addf %11, %12 : vector<16x16xf32>
    %cst_7 = arith.constant 2.000000e-01 : f32
    %14 = vector.broadcast %cst_7 : f32 to vector<16x16xf32>
    %15 = arith.mulf %14, %13 : vector<16x16xf32>
    %16 = arith.maximumf %13, %15 : vector<16x16xf32>
    %cst_8 = arith.constant -1.000000e+30 : f32
    %17 = vector.broadcast %cst_8 : f32 to vector<16x16xf32>
    %18 = arith.select %2, %16, %17 : vector<16x16xi1>, vector<16x16xf32>
    %cst_9 = arith.constant dense<0xFF800000> : vector<16xf32>
    %19 = vector.multi_reduction <maximumf>, %18, %cst_9 [1] : vector<16x16xf32> to vector<16xf32>
    %20 = vector.shape_cast %19 : vector<16xf32> to vector<16x1xf32>
    %21 = vector.broadcast %20 : vector<16x1xf32> to vector<16x16xf32>
    %22 = arith.subf %18, %21 : vector<16x16xf32>
    %23 = math.exp %22 : vector<16x16xf32>
    %cst_10 = arith.constant dense<0.000000e+00> : vector<16xf32>
    %24 = vector.multi_reduction <add>, %23, %cst_10 [1] : vector<16x16xf32> to vector<16xf32>
    %25 = vector.shape_cast %24 : vector<16xf32> to vector<16x1xf32>
    %26 = arith.truncf %23 : vector<16x16xf32> to vector<16x16xbf16>
    %27 = vector.extract_strided_slice %3 {offsets = [0, 0], sizes = [16, 8], strides = [1, 1]} : vector<16x32xbf16> to vector<16x8xbf16>
    %cst_11 = arith.constant dense<0.000000e+00> : vector<16x8xf32>
    %28 = tpu.matmul %26, %27, %cst_11 {dimension_numbers = #tpu.dot_dimension_numbers<[1], [0], [0], [1], [0, 0, 1, 1], [], []>} : vector<16x16xbf16>, vector<16x8xbf16>, vector<16x8xf32> -> vector<16x8xf32>
    %29 = tpu.reciprocal %25 {approx = true} : vector<16x1xf32> -> vector<16x1xf32>
    %30 = vector.broadcast %29 : vector<16x1xf32> to vector<16x8xf32>
    %31 = arith.mulf %28, %30 : vector<16x8xf32>
    %32 = vector.extract_strided_slice %5 {offsets = [0, 1], sizes = [16, 1], strides = [1, 1]} : vector<16x4xf32> to vector<16x1xf32>
    %33 = vector.extract_strided_slice %8 {offsets = [1, 0], sizes = [1, 16], strides = [1, 1]} : vector<4x16xf32> to vector<1x16xf32>
    %34 = vector.broadcast %32 : vector<16x1xf32> to vector<16x16xf32>
    %35 = vector.broadcast %33 : vector<1x16xf32> to vector<16x16xf32>
    %36 = arith.addf %34, %35 : vector<16x16xf32>
    %cst_12 = arith.constant 2.000000e-01 : f32
    %37 = vector.broadcast %cst_12 : f32 to vector<16x16xf32>
    %38 = arith.mulf %37, %36 : vector<16x16xf32>
    %39 = arith.maximumf %36, %38 : vector<16x16xf32>
    %cst_13 = arith.constant -1.000000e+30 : f32
    %40 = vector.broadcast %cst_13 : f32 to vector<16x16xf32>
    %41 = arith.select %2, %39, %40 : vector<16x16xi1>, vector<16x16xf32>
    %cst_14 = arith.constant dense<0xFF800000> : vector<16xf32>
    %42 = vector.multi_reduction <maximumf>, %41, %cst_14 [1] : vector<16x16xf32> to vector<16xf32>
    %43 = vector.shape_cast %42 : vector<16xf32> to vector<16x1xf32>
    %44 = vector.broadcast %43 : vector<16x1xf32> to vector<16x16xf32>
    %45 = arith.subf %41, %44 : vector<16x16xf32>
    %46 = math.exp %45 : vector<16x16xf32>
    %cst_15 = arith.constant dense<0.000000e+00> : vector<16xf32>
    %47 = vector.multi_reduction <add>, %46, %cst_15 [1] : vector<16x16xf32> to vector<16xf32>
    %48 = vector.shape_cast %47 : vector<16xf32> to vector<16x1xf32>
    %49 = arith.truncf %46 : vector<16x16xf32> to vector<16x16xbf16>
    %50 = vector.extract_strided_slice %3 {offsets = [0, 8], sizes = [16, 8], strides = [1, 1]} : vector<16x32xbf16> to vector<16x8xbf16>
    %cst_16 = arith.constant dense<0.000000e+00> : vector<16x8xf32>
    %51 = tpu.matmul %49, %50, %cst_16 {dimension_numbers = #tpu.dot_dimension_numbers<[1], [0], [0], [1], [0, 0, 1, 1], [], []>} : vector<16x16xbf16>, vector<16x8xbf16>, vector<16x8xf32> -> vector<16x8xf32>
    %52 = tpu.reciprocal %48 {approx = true} : vector<16x1xf32> -> vector<16x1xf32>
    %53 = vector.broadcast %52 : vector<16x1xf32> to vector<16x8xf32>
    %54 = arith.mulf %51, %53 : vector<16x8xf32>
    %55 = arith.addf %31, %54 : vector<16x8xf32>
    %56 = vector.extract_strided_slice %5 {offsets = [0, 2], sizes = [16, 1], strides = [1, 1]} : vector<16x4xf32> to vector<16x1xf32>
    %57 = vector.extract_strided_slice %8 {offsets = [2, 0], sizes = [1, 16], strides = [1, 1]} : vector<4x16xf32> to vector<1x16xf32>
    %58 = vector.broadcast %56 : vector<16x1xf32> to vector<16x16xf32>
    %59 = vector.broadcast %57 : vector<1x16xf32> to vector<16x16xf32>
    %60 = arith.addf %58, %59 : vector<16x16xf32>
    %cst_17 = arith.constant 2.000000e-01 : f32
    %61 = vector.broadcast %cst_17 : f32 to vector<16x16xf32>
    %62 = arith.mulf %61, %60 : vector<16x16xf32>
    %63 = arith.maximumf %60, %62 : vector<16x16xf32>
    %cst_18 = arith.constant -1.000000e+30 : f32
    %64 = vector.broadcast %cst_18 : f32 to vector<16x16xf32>
    %65 = arith.select %2, %63, %64 : vector<16x16xi1>, vector<16x16xf32>
    %cst_19 = arith.constant dense<0xFF800000> : vector<16xf32>
    %66 = vector.multi_reduction <maximumf>, %65, %cst_19 [1] : vector<16x16xf32> to vector<16xf32>
    %67 = vector.shape_cast %66 : vector<16xf32> to vector<16x1xf32>
    %68 = vector.broadcast %67 : vector<16x1xf32> to vector<16x16xf32>
    %69 = arith.subf %65, %68 : vector<16x16xf32>
    %70 = math.exp %69 : vector<16x16xf32>
    %cst_20 = arith.constant dense<0.000000e+00> : vector<16xf32>
    %71 = vector.multi_reduction <add>, %70, %cst_20 [1] : vector<16x16xf32> to vector<16xf32>
    %72 = vector.shape_cast %71 : vector<16xf32> to vector<16x1xf32>
    %73 = arith.truncf %70 : vector<16x16xf32> to vector<16x16xbf16>
    %74 = vector.extract_strided_slice %3 {offsets = [0, 16], sizes = [16, 8], strides = [1, 1]} : vector<16x32xbf16> to vector<16x8xbf16>
    %cst_21 = arith.constant dense<0.000000e+00> : vector<16x8xf32>
    %75 = tpu.matmul %73, %74, %cst_21 {dimension_numbers = #tpu.dot_dimension_numbers<[1], [0], [0], [1], [0, 0, 1, 1], [], []>} : vector<16x16xbf16>, vector<16x8xbf16>, vector<16x8xf32> -> vector<16x8xf32>
    %76 = tpu.reciprocal %72 {approx = true} : vector<16x1xf32> -> vector<16x1xf32>
    %77 = vector.broadcast %76 : vector<16x1xf32> to vector<16x8xf32>
    %78 = arith.mulf %75, %77 : vector<16x8xf32>
    %79 = arith.addf %55, %78 : vector<16x8xf32>
    %80 = vector.extract_strided_slice %5 {offsets = [0, 3], sizes = [16, 1], strides = [1, 1]} : vector<16x4xf32> to vector<16x1xf32>
    %81 = vector.extract_strided_slice %8 {offsets = [3, 0], sizes = [1, 16], strides = [1, 1]} : vector<4x16xf32> to vector<1x16xf32>
    %82 = vector.broadcast %80 : vector<16x1xf32> to vector<16x16xf32>
    %83 = vector.broadcast %81 : vector<1x16xf32> to vector<16x16xf32>
    %84 = arith.addf %82, %83 : vector<16x16xf32>
    %cst_22 = arith.constant 2.000000e-01 : f32
    %85 = vector.broadcast %cst_22 : f32 to vector<16x16xf32>
    %86 = arith.mulf %85, %84 : vector<16x16xf32>
    %87 = arith.maximumf %84, %86 : vector<16x16xf32>
    %cst_23 = arith.constant -1.000000e+30 : f32
    %88 = vector.broadcast %cst_23 : f32 to vector<16x16xf32>
    %89 = arith.select %2, %87, %88 : vector<16x16xi1>, vector<16x16xf32>
    %cst_24 = arith.constant dense<0xFF800000> : vector<16xf32>
    %90 = vector.multi_reduction <maximumf>, %89, %cst_24 [1] : vector<16x16xf32> to vector<16xf32>
    %91 = vector.shape_cast %90 : vector<16xf32> to vector<16x1xf32>
    %92 = vector.broadcast %91 : vector<16x1xf32> to vector<16x16xf32>
    %93 = arith.subf %89, %92 : vector<16x16xf32>
    %94 = math.exp %93 : vector<16x16xf32>
    %cst_25 = arith.constant dense<0.000000e+00> : vector<16xf32>
    %95 = vector.multi_reduction <add>, %94, %cst_25 [1] : vector<16x16xf32> to vector<16xf32>
    %96 = vector.shape_cast %95 : vector<16xf32> to vector<16x1xf32>
    %97 = arith.truncf %94 : vector<16x16xf32> to vector<16x16xbf16>
    %98 = vector.extract_strided_slice %3 {offsets = [0, 24], sizes = [16, 8], strides = [1, 1]} : vector<16x32xbf16> to vector<16x8xbf16>
    %cst_26 = arith.constant dense<0.000000e+00> : vector<16x8xf32>
    %99 = tpu.matmul %97, %98, %cst_26 {dimension_numbers = #tpu.dot_dimension_numbers<[1], [0], [0], [1], [0, 0, 1, 1], [], []>} : vector<16x16xbf16>, vector<16x8xbf16>, vector<16x8xf32> -> vector<16x8xf32>
    %100 = tpu.reciprocal %96 {approx = true} : vector<16x1xf32> -> vector<16x1xf32>
    %101 = vector.broadcast %100 : vector<16x1xf32> to vector<16x8xf32>
    %102 = arith.mulf %99, %101 : vector<16x8xf32>
    %103 = arith.addf %79, %102 : vector<16x8xf32>
    %cst_27 = arith.constant 2.500000e-01 : f32
    %104 = vector.broadcast %cst_27 : f32 to vector<16x8xf32>
    %105 = arith.mulf %103, %104 : vector<16x8xf32>
    %c0_28 = arith.constant 0 : index
    %c0_29 = arith.constant 0 : index
    %106 = vector.load %arg5[%c0_28, %c0_29] : memref<1x8xf32, #tpu.memory_space<vmem>>, vector<1x8xf32>
    %107 = vector.broadcast %106 : vector<1x8xf32> to vector<16x8xf32>
    %108 = arith.addf %105, %107 : vector<16x8xf32>
    %c0_30 = arith.constant 0 : index
    %c0_31 = arith.constant 0 : index
    %109 = vector.load %arg6[%c0_30, %c0_31] : memref<16x8xf32, #tpu.memory_space<vmem>>, vector<16x8xf32>
    tpu.vector_store %arg6[%c0_30, %c0_31], %108 {strides = array<i32>} : memref<16x8xf32, #tpu.memory_space<vmem>>, vector<16x8xf32>,
    return
  }
  func.func @transform_0(%arg0: i32) -> (i32, i32) {
    %c0_i32 = arith.constant 0 : i32
    %c0_i32_0 = arith.constant 0 : i32
    return %arg0, %c0_i32 : i32, i32
  }
  func.func @transform_1(%arg0: i32) -> (i32, i32) {
    %c0_i32 = arith.constant 0 : i32
    %c0_i32_0 = arith.constant 0 : i32
    %c0_i32_1 = arith.constant 0 : i32
    return %c0_i32, %c0_i32_0 : i32, i32
  }
  func.func @transform_2(%arg0: i32) -> (i32, i32) {
    %c0_i32 = arith.constant 0 : i32
    %c0_i32_0 = arith.constant 0 : i32
    return %arg0, %c0_i32 : i32, i32
  }
  func.func @transform_3(%arg0: i32) -> (i32, i32) {
    %c0_i32 = arith.constant 0 : i32
    %c0_i32_0 = arith.constant 0 : i32
    %c0_i32_1 = arith.constant 0 : i32
    return %c0_i32, %c0_i32_0 : i32, i32
  }
  func.func @transform_4(%arg0: i32) -> (i32, i32) {
    %c0_i32 = arith.constant 0 : i32
    %c0_i32_0 = arith.constant 0 : i32
    %c0_i32_1 = arith.constant 0 : i32
    return %c0_i32, %c0_i32_0 : i32, i32
  }
  func.func @transform_5(%arg0: i32) -> (i32, i32) {
    %c0_i32 = arith.constant 0 : i32
    %c0_i32_0 = arith.constant 0 : i32
    return %arg0, %c0_i32 : i32, i32
  }
}

</mosaic_0001>

<llo_original>
// kernel: gat_model_forward.6
$region0: #{gat_model_forward.6}
  #allocation0 [shape = 'u32[]', space=smem, size = 0x4, offset = 0x4, fixed_abs, tag = 'smem constant byte address 0x4 - core index']
  #allocation1 [shape = 'u32[144,128]{1,0:T(1,128)}', space=vmem, size = 0x12000, scoped, tag = 'internal scratch']
  %s0 = inlined_call_operand.vmem [shape: f32[16,8], index: 0, kind: input, shape index: {}]
  %s1 = inlined_call_operand.vmem [shape: bf16[8,64], index: 1, kind: input, shape index: {}]
  %s2 = inlined_call_operand.vmem [shape: bf16[64,8], index: 2, kind: input, shape index: {}]
  %s3 = inlined_call_operand.vmem [shape: bf16[16,64], index: 3, kind: output, shape index: {0}]
  %s4 = inlined_call_operand.vmem [shape: f32[16,8], index: 4, kind: output, shape index: {1}]
  %5 = xla_tuple %s3, %s4
  %s6 = sld [smem:[#allocation0]]
  $region30: #{gat_model_forward.6} parent=0
    _
  %s8 = ssub.s32 1, %s6
  %s9 = scalar_select 0, %s8, %s6
  // Predicated region
  $region2: #{gat_model_forward.6} parent=0 // pred_check
    _
  $region3: #{gat_model_forward.6} parent=0 // pred_check_branch
    %11 = sbr.rel (0) target = $region5
  $region4: #{gat_model_forward.6} parent=0 // pred_region
    _
  $region5: #{gat_model_forward.6} parent=0 // pred_fallthru
    _
  // Predicated region
  $region6: #{gat_model_forward.6} parent=0 // pred_check
    _
  $region7: #{gat_model_forward.6} parent=0 // pred_check_branch
    %13 = sbr.rel (0) target = $region9
  $region8: #{gat_model_forward.6} parent=0 // pred_region
    _
  $region9: #{gat_model_forward.6} parent=0 // pred_fallthru
    _
  // Predicated region
  $region10: #{gat_model_forward.6} parent=0 // pred_check
    _
  $region11: #{gat_model_forward.6} parent=0 // pred_check_branch
    %15 = sbr.rel (0) target = $region13
  $region12: #{gat_model_forward.6} parent=0 // pred_region
    _
  $region13: #{gat_model_forward.6} parent=0 // pred_fallthru
    _
  %v17 = vld [vmem:[%s0] sm:$0xff]
  %v18 = vld [vmem:[%s0 + $0x8] sm:$0xff]
  %v19 = vpack.c.bf16 %v18, %v17
  %v20 = vld [vmem:[%s1] sm:$0xf]
  %vm21 = vcmask 64512
  %v23 = vsel %vm21, %v19, 0
  %vm25 = vcmask 1043456
  %v27 = vsel %vm25, %v20, 0
  %29 = vmatprep.subr.bf16.mxu0 0
  %30 = vmatpush1.bf16.msra.mxu0 %v27
  %31 = vmatprep.subr.bf16.mxu0 0
  %32 = vmatpush1.bf16.msra.mxu0 0
  %33 = vmatprep.subr.bf16.mxu0 0
  %34 = vmatpush1.bf16.msra.mxu0 0
  %35 = vmatprep.subr.bf16.mxu0 0
  %36 = vmatpush1.bf16.msra.mxu0 0
  %37 = vmatprep.subr.bf16.mxu0 0
  %38 = vmatpush1.bf16.msra.mxu0 0
  %39 = vmatprep.subr.bf16.mxu0 0
  %40 = vmatpush1.bf16.msra.mxu0 0
  %41 = vmatprep.subr.bf16.mxu0 0
  %42 = vmatpush1.bf16.msra.mxu0 0
  %43 = vmatprep.subr.bf16.mxu0 0
  %44 = vmatpush1.bf16.msra.mxu0 0
  %45 = vmatprep.subr.bf16.mxu0 0
  %46 = vmatpush1.bf16.msra.mxu0 0
  %47 = vmatprep.subr.bf16.mxu0 0
  %48 = vmatpush1.bf16.msra.mxu0 0
  %49 = vmatprep.subr.bf16.mxu0 0
  %50 = vmatpush1.bf16.msra.mxu0 0
  %51 = vmatprep.subr.bf16.mxu0 0
  %52 = vmatpush1.bf16.msra.mxu0 0
  %53 = vmatprep.subr.bf16.mxu0 0
  %54 = vmatpush1.bf16.msra.mxu0 0
  %55 = vmatprep.subr.bf16.mxu0 0
  %56 = vmatpush1.bf16.msra.mxu0 0
  %57 = vmatprep.subr.bf16.mxu0 0
  %58 = vmatpush1.bf16.msra.mxu0 0
  %59 = vmatprep.subr.bf16.mxu0 0
  %60 = vmatpush1.bf16.msra.mxu0 0
  %61 = vmatprep.mubr.bf16.mxu0 0
  %62 = vmatmul.mubr.bf16.gmra.mrb[0].mxu0 %v23
  %v63 = vpop.f32.mrb[0].mxu0
  %v64 = vadd.f32 0.0, %v63
  %v65 = vpop.f32.mrb[0].mxu0
  %v66 = vpop.f32.mrb[0].mxu0
  %v67 = vadd.f32 0.0, %v66
  %v68 = vpop.f32.mrb[0].mxu0
  %69 = vdwg.mxu0
  %v70 = vpack.c.bf16 %v67, %v64
  %v71 = vld [vmem:[%s2] sm:$0xf]
  %v72 = vld [vmem:[%s2 + $0x4] sm:$0xf]
  %v73 = vld [vmem:[%s2 + $0x8] sm:$0xf]
  %v74 = vld [vmem:[%s2 + $0xc] sm:$0xf]
  %v75 = vld [vmem:[%s2 + $0x10] sm:$0xf]
  %v76 = vld [vmem:[%s2 + $0x14] sm:$0xf]
  %v77 = vld [vmem:[%s2 + $0x18] sm:$0xf]
  %v78 = vld [vmem:[%s2 + $0x1c] sm:$0xf]
  %v87 = vunpack.c.l.b16 %v71
  %v88 = vunpack.c.l.b16 %v72
  %v89 = vunpack.c.l.b16 %v73
  %v90 = vunpack.c.l.b16 %v74
  %v91 = vunpack.c.l.b16 %v75
  %v92 = vunpack.c.l.b16 %v76
  %v93 = vunpack.c.l.b16 %v77
  %v94 = vunpack.c.l.b16 %v78
  %v95 = vpack.c.b16 %v88, %v87
  %v96 = vpack.c.b16 %v90, %v89
  %v97 = vpack.c.b16 %v92, %v91
  %v98 = vpack.c.b16 %v94, %v93
  %vm103 = vcmask 523264
  %v105 = vsel %vm103, %v70, 0
  %107 = vmatprep.subr.bf16.mxu0 0
  %108 = vmatpush1.bf16.msra.mxu0 %v95
  %109 = vmatprep.subr.bf16.mxu0 0
  %110 = vmatpush1.bf16.msra.mxu0 %v96
  %111 = vmatprep.subr.bf16.mxu0 0
  %112 = vmatpush1.bf16.msra.mxu0 %v97
  %113 = vmatprep.subr.bf16.mxu0 0
  %114 = vmatpush1.bf16.msra.mxu0 %v98
  %115 = vmatprep.subr.bf16.mxu0 0
  %116 = vmatpush1.bf16.msra.mxu0 0
  %117 = vmatprep.subr.bf16.mxu0 0
  %118 = vmatpush1.bf16.msra.mxu0 0
  %119 = vmatprep.subr.bf16.mxu0 0
  %120 = vmatpush1.bf16.msra.mxu0 0
  %121 = vmatprep.subr.bf16.mxu0 0
  %122 = vmatpush1.bf16.msra.mxu0 0
  %123 = vmatprep.subr.bf16.mxu0 0
  %124 = vmatpush1.bf16.msra.mxu0 0
  %125 = vmatprep.subr.bf16.mxu0 0
  %126 = vmatpush1.bf16.msra.mxu0 0
  %127 = vmatprep.subr.bf16.mxu0 0
  %128 = vmatpush1.bf16.msra.mxu0 0
  %129 = vmatprep.subr.bf16.mxu0 0
  %130 = vmatpush1.bf16.msra.mxu0 0
  %131 = vmatprep.subr.bf16.mxu0 0
  %132 = vmatpush1.bf16.msra.mxu0 0
  %133 = vmatprep.subr.bf16.mxu0 0
  %134 = vmatpush1.bf16.msra.mxu0 0
  %135 = vmatprep.subr.bf16.mxu0 0
  %136 = vmatpush1.bf16.msra.mxu0 0
  %137 = vmatprep.subr.bf16.mxu0 0
  %138 = vmatpush1.bf16.msra.mxu0 0
  %139 = vmatprep.mubr.bf16.mxu0 0
  %140 = vmatmul.mubr.bf16.gmra.mrb[0].mxu0 %v105
  %v141 = vpop.f32.mrb[0].mxu0
  %v142 = vadd.f32 0.0, %v141
  %v143 = vpop.f32.mrb[0].mxu0
  %v144 = vpop.f32.mrb[0].mxu0
  %v145 = vadd.f32 0.0, %v144
  %v146 = vpop.f32.mrb[0].mxu0
  %147 = vdwg.mxu0
  %148 = vst.msk [vmem:[%s4] sm:$0xff] %vm21, %v142
  %149 = vst.msk [vmem:[%s4 + $0x8] sm:$0xff] %vm21, %v145
  %v151 = vunpack.c.l.b16 %v70
  %v152 = vunpack.c.h.b16 %v70
  %v153 = vpack.c.b16 %v151, %v151
  %v154 = vpack.c.b16 %v152, %v152
  %vm157 = vcmask 519168
  %158 = vst.msk [vmem:[%s3] sm:$0xf] %vm157, %v153
  %159 = vst.msk [vmem:[%s3 + $0x4] sm:$0xf] %vm157, %v154
  // Predicated region
  $region14: #{gat_model_forward.6} parent=0 // pred_check
    _
  $region15: #{gat_model_forward.6} parent=0 // pred_check_branch
    %161 = sbr.rel (0) target = $region17
  $region16: #{gat_model_forward.6} parent=0 // pred_region
    _
  $region17: #{gat_model_forward.6} parent=0 // pred_fallthru
    _
  // Predicated region
  $region18: #{gat_model_forward.6} parent=0 // pred_check
    _
  $region19: #{gat_model_forward.6} parent=0 // pred_check_branch
    %163 = sbr.rel (0) target = $region21
  $region20: #{gat_model_forward.6} parent=0 // pred_region
    _
  $region21: #{gat_model_forward.6} parent=0 // pred_fallthru
    _
  // Predicated region
  $region22: #{gat_model_forward.6} parent=0 // pred_check
    _
  $region23: #{gat_model_forward.6} parent=0 // pred_check_branch
    %165 = sbr.rel (0) target = $region25
  $region24: #{gat_model_forward.6} parent=0 // pred_region
    _
  $region25: #{gat_model_forward.6} parent=0 // pred_fallthru
    _
  // Predicated region
  $region26: #{gat_model_forward.6} parent=0 // pred_check
    _
  $region27: #{gat_model_forward.6} parent=0 // pred_check_branch
    %167 = sbr.rel (0) target = $region29
  $region28: #{gat_model_forward.6} parent=0 // pred_region
    _
  $region29: #{gat_model_forward.6} parent=0 // pred_fallthru
    _

// kernel: gat_model_forward.8
$region0: #{gat_model_forward.8}
  #allocation0 [shape = 'u32[]', space=smem, size = 0x4, offset = 0x4, fixed_abs, tag = 'smem constant byte address 0x4 - core index']
  #allocation1 [shape = 'u32[144,128]{1,0:T(1,128)}', space=vmem, size = 0x12000, scoped, tag = 'internal scratch']
  %s0 = inlined_call_operand.vmem [shape: f32[16,64], index: 0, kind: input, shape index: {}]
  %s1 = inlined_call_operand.vmem [shape: f32[2,16], index: 1, kind: input, shape index: {}]
  %s2 = inlined_call_operand.vmem [shape: f32[16,2], index: 2, kind: input, shape index: {}]
  %s3 = inlined_call_operand.vmem [shape: f32[2,1], index: 3, kind: input, shape index: {}]
  %s4 = inlined_call_operand.vmem [shape: f32[3,64], index: 4, kind: input, shape index: {}]
  %s5 = inlined_call_operand.vmem [shape: f32[16,64], index: 5, kind: output, shape index: {}]
  %s6 = sld [smem:[#allocation0]]
  $region30: #{gat_model_forward.8} parent=0
    _
  %s8 = ssub.s32 1, %s6
  %s9 = scalar_select 0, %s8, %s6
  // Predicated region
  $region2: #{gat_model_forward.8} parent=0 // pred_check
    _
  $region3: #{gat_model_forward.8} parent=0 // pred_check_branch
    %11 = sbr.rel (0) target = $region5
  $region4: #{gat_model_forward.8} parent=0 // pred_region
    _
  $region5: #{gat_model_forward.8} parent=0 // pred_fallthru
    _
  // Predicated region
  $region6: #{gat_model_forward.8} parent=0 // pred_check
    _
  $region7: #{gat_model_forward.8} parent=0 // pred_check_branch
    %13 = sbr.rel (0) target = $region9
  $region8: #{gat_model_forward.8} parent=0 // pred_region
    _
  $region9: #{gat_model_forward.8} parent=0 // pred_fallthru
    _
  // Predicated region
  $region10: #{gat_model_forward.8} parent=0 // pred_check
    _
  $region11: #{gat_model_forward.8} parent=0 // pred_check_branch
    %15 = sbr.rel (0) target = $region13
  $region12: #{gat_model_forward.8} parent=0 // pred_region
    _
  $region13: #{gat_model_forward.8} parent=0 // pred_fallthru
    _
  // Predicated region
  $region14: #{gat_model_forward.8} parent=0 // pred_check
    _
  $region15: #{gat_model_forward.8} parent=0 // pred_check_branch
    %17 = sbr.rel (0) target = $region17
  $region16: #{gat_model_forward.8} parent=0 // pred_region
    _
  $region17: #{gat_model_forward.8} parent=0 // pred_fallthru
    _
  // Predicated region
  $region18: #{gat_model_forward.8} parent=0 // pred_check
    _
  $region19: #{gat_model_forward.8} parent=0 // pred_check_branch
    %19 = sbr.rel (0) target = $region21
  $region20: #{gat_model_forward.8} parent=0 // pred_region
    _
  $region21: #{gat_model_forward.8} parent=0 // pred_fallthru
    _
  %v20 = vld [vmem:[%s0] sm:$0xff]
  %v21 = vld [vmem:[%s0 + $0x8] sm:$0xff]
  %v22 = vld [vmem:[%s1] sm:$0x3]
  %v23 = vld [vmem:[%s2] sm:$0xff]
  %v24 = vld [vmem:[%s2 + $0x8] sm:$0xff]
  %v25 = vld [vmem:[%s3] sm:$0x3]
  %v26 = vld [vmem:[%s4] sm:$0x1]
  %v27 = vld [vmem:[%s4 + $0x1] sm:$0x1]
  %v28 = vld [vmem:[%s4 + $0x2] sm:$0x1]
  %vm29 = vcmask 130048
  %v31 = vsel %vm29, %v22, 0
  %33 = vmatprep.subr.mxu0 0.0
  %34 = vmatpush1.msra.mxu0 %v20
  %35 = vmatprep.subr.mxu0 0.0
  %36 = vmatpush1.msra.mxu0 %v21
  %37 = vmatprep.subr.mxu0 0.0
  %38 = vmatpush1.msra.mxu0 0.0
  %39 = vmatprep.subr.mxu0 0.0
  %40 = vmatpush1.msra.mxu0 0.0
  %41 = vmatprep.subr.mxu0 0.0
  %42 = vmatpush1.msra.mxu0 0.0
  %43 = vmatprep.subr.mxu0 0.0
  %44 = vmatpush1.msra.mxu0 0.0
  %45 = vmatprep.subr.mxu0 0.0
  %46 = vmatpush1.msra.mxu0 0.0
  %47 = vmatprep.subr.mxu0 0.0
  %48 = vmatpush1.msra.mxu0 0.0
  %49 = vmatprep.subr.mxu0 0.0
  %50 = vmatpush1.msra.mxu0 0.0
  %51 = vmatprep.subr.mxu0 0.0
  %52 = vmatpush1.msra.mxu0 0.0
  %53 = vmatprep.subr.mxu0 0.0
  %54 = vmatpush1.msra.mxu0 0.0
  %55 = vmatprep.subr.mxu0 0.0
  %56 = vmatpush1.msra.mxu0 0.0
  %57 = vmatprep.subr.mxu0 0.0
  %58 = vmatpush1.msra.mxu0 0.0
  %59 = vmatprep.subr.mxu0 0.0
  %60 = vmatpush1.msra.mxu0 0.0
  %61 = vmatprep.subr.mxu0 0.0
  %62 = vmatpush1.msra.mxu0 0.0
  %63 = vmatprep.subr.mxu0 0.0
  %64 = vmatpush1.msra.mxu0 0.0
  %65 = vmatprep.subr.mxu0 0.0
  %66 = vmatpush1.msra.mxu0 0.0
  %67 = vmatprep.subr.mxu0 0.0
  %68 = vmatpush1.msra.mxu0 0.0
  %69 = vmatprep.subr.mxu0 0.0
  %70 = vmatpush1.msra.mxu0 0.0
  %71 = vmatprep.subr.mxu0 0.0
  %72 = vmatpush1.msra.mxu0 0.0
  %73 = vmatprep.subr.mxu0 0.0
  %74 = vmatpush1.msra.mxu0 0.0
  %75 = vmatprep.subr.mxu0 0.0
  %76 = vmatpush1.msra.mxu0 0.0
  %77 = vmatprep.subr.mxu0 0.0
  %78 = vmatpush1.msra.mxu0 0.0
  %79 = vmatprep.subr.mxu0 0.0
  %80 = vmatpush1.msra.mxu0 0.0
  %81 = vmatprep.subr.mxu0 0.0
  %82 = vmatpush1.msra.mxu0 0.0
  %83 = vmatprep.subr.mxu0 0.0
  %84 = vmatpush1.msra.mxu0 0.0
  %85 = vmatprep.subr.mxu0 0.0
  %86 = vmatpush1.msra.mxu0 0.0
  %87 = vmatprep.subr.mxu0 0.0
  %88 = vmatpush1.msra.mxu0 0.0
  %89 = vmatprep.subr.mxu0 0.0
  %90 = vmatpush1.msra.mxu0 0.0
  %91 = vmatprep.subr.mxu0 0.0
  %92 = vmatpush1.msra.mxu0 0.0
  %93 = vmatprep.subr.mxu0 0.0
  %94 = vmatpush1.msra.mxu0 0.0
  %95 = vmatprep.subr.mxu0 0.0
  %96 = vmatpush1.msra.mxu0 0.0
  %97 = vmatprep.mubr.f32.mxu0 0.0
  %98 = vmatmul.mubr.f32.gmra.mrb[0].mxu0 %v31
  %v99 = vpop.f32.mrb[0].mxu0
  %v100 = vadd.f32 0.0, %v99
  %v101 = vpop.f32.mrb[0].mxu0
  %102 = vdwg.mxu0
  %104 = vset.pattern.permute.xlu0 0
  %105 = vperm.xlu0 %104, %v25
  %v106 = vpop.permute.xlu0 %105
  %v108 = vmul.f32 %v100, %v106
  %vm109 = vcmask 15360
  %v111 = vsel %vm109, %v23, 0
  %v114 = vsel %vm109, %v24, 0
  %vm116 = vcmask 1041408
  %v118 = vsel %vm116, %v108, 0
  %120 = vmatprep.subr.mxu0 0.0
  %121 = vmatpush1.msra.mxu0 %v118
  %122 = vmatprep.subr.mxu0 0.0
  %123 = vmatpush1.msra.mxu0 0.0
  %124 = vmatprep.subr.mxu0 0.0
  %125 = vmatpush1.msra.mxu0 0.0
  %126 = vmatprep.subr.mxu0 0.0
  %127 = vmatpush1.msra.mxu0 0.0
  %128 = vmatprep.subr.mxu0 0.0
  %129 = vmatpush1.msra.mxu0 0.0
  %130 = vmatprep.subr.mxu0 0.0
  %131 = vmatpush1.msra.mxu0 0.0
  %132 = vmatprep.subr.mxu0 0.0
  %133 = vmatpush1.msra.mxu0 0.0
  %134 = vmatprep.subr.mxu0 0.0
  %135 = vmatpush1.msra.mxu0 0.0
  %136 = vmatprep.subr.mxu0 0.0
  %137 = vmatpush1.msra.mxu0 0.0
  %138 = vmatprep.subr.mxu0 0.0
  %139 = vmatpush1.msra.mxu0 0.0
  %140 = vmatprep.subr.mxu0 0.0
  %141 = vmatpush1.msra.mxu0 0.0
  %142 = vmatprep.subr.mxu0 0.0
  %143 = vmatpush1.msra.mxu0 0.0
  %144 = vmatprep.subr.mxu0 0.0
  %145 = vmatpush1.msra.mxu0 0.0
  %146 = vmatprep.subr.mxu0 0.0
  %147 = vmatpush1.msra.mxu0 0.0
  %148 = vmatprep.subr.mxu0 0.0
  %149 = vmatpush1.msra.mxu0 0.0
  %150 = vmatprep.subr.mxu0 0.0
  %151 = vmatpush1.msra.mxu0 0.0
  %152 = vmatprep.subr.mxu0 0.0
  %153 = vmatpush1.msra.mxu0 0.0
  %154 = vmatprep.subr.mxu0 0.0
  %155 = vmatpush1.msra.mxu0 0.0
  %156 = vmatprep.subr.mxu0 0.0
  %157 = vmatpush1.msra.mxu0 0.0
  %158 = vmatprep.subr.mxu0 0.0
  %159 = vmatpush1.msra.mxu0 0.0
  %160 = vmatprep.subr.mxu0 0.0
  %161 = vmatpush1.msra.mxu0 0.0
  %162 = vmatprep.subr.mxu0 0.0
  %163 = vmatpush1.msra.mxu0 0.0
  %164 = vmatprep.subr.mxu0 0.0
  %165 = vmatpush1.msra.mxu0 0.0
  %166 = vmatprep.subr.mxu0 0.0
  %167 = vmatpush1.msra.mxu0 0.0
  %168 = vmatprep.subr.mxu0 0.0
  %169 = vmatpush1.msra.mxu0 0.0
  %170 = vmatprep.subr.mxu0 0.0
  %171 = vmatpush1.msra.mxu0 0.0
  %172 = vmatprep.subr.mxu0 0.0
  %173 = vmatpush1.msra.mxu0 0.0
  %174 = vmatprep.subr.mxu0 0.0
  %175 = vmatpush1.msra.mxu0 0.0
  %176 = vmatprep.subr.mxu0 0.0
  %177 = vmatpush1.msra.mxu0 0.0
  %178 = vmatprep.subr.mxu0 0.0
  %179 = vmatpush1.msra.mxu0 0.0
  %180 = vmatprep.subr.mxu0 0.0
  %181 = vmatpush1.msra.mxu0 0.0
  %182 = vmatprep.subr.mxu0 0.0
  %183 = vmatpush1.msra.mxu0 0.0
  %184 = vmatprep.mubr.f32.mxu0 0.0
  %185 = vmatmul.mubr.f32.gmra.mrb[0].mxu0 %v111
  %v186 = vpop.f32.mrb[0].mxu0
  %v187 = vadd.f32 0.0, %v186
  %v188 = vpop.f32.mrb[0].mxu0
  %189 = vmatprep.mubr.f32.mxu0 0.0
  %190 = vmatmul.mubr.f32.gmra.mrb[0].mxu0 %v114
  %v191 = vpop.f32.mrb[0].mxu0
  %v192 = vadd.f32 0.0, %v191
  %v193 = vpop.f32.mrb[0].mxu0
  %194 = vdwg.mxu0
  %v195 = vlaneseq
  %v196 = vshrl.u32 %v195, 7
  %v197 = vsub.s32 0, %v196
  %v198 = vrot.slane %v28, %v197
  %v199 = vmul.f32 %v187, %v198
  %v200 = vmul.f32 %v192, %v198
  %v201 = vsub.f32 %v20, %v199
  %v202 = vsub.f32 %v21, %v200
  %v203 = vmul.f32 %v201, %v201
  %v204 = vmul.f32 %v202, %v202
  %205 = vmatprep.subr.mxu0 0.0
  %206 = vmatpush1.msra.mxu0 %v203
  %207 = vmatprep.subr.mxu0 0.0
  %208 = vmatpush1.msra.mxu0 %v204
  %209 = vmatprep.subr.mxu0 0.0
  %210 = vmatpush1.msra.mxu0 0.0
  %211 = vmatprep.subr.mxu0 0.0
  %212 = vmatpush1.msra.mxu0 0.0
  %213 = vmatprep.subr.mxu0 0.0
  %214 = vmatpush1.msra.mxu0 0.0
  %215 = vmatprep.subr.mxu0 0.0
  %216 = vmatpush1.msra.mxu0 0.0
  %217 = vmatprep.subr.mxu0 0.0
  %218 = vmatpush1.msra.mxu0 0.0
  %219 = vmatprep.subr.mxu0 0.0
  %220 = vmatpush1.msra.mxu0 0.0
  %221 = vmatprep.subr.mxu0 0.0
  %222 = vmatpush1.msra.mxu0 0.0
  %223 = vmatprep.subr.mxu0 0.0
  %224 = vmatpush1.msra.mxu0 0.0
  %225 = vmatprep.subr.mxu0 0.0
  %226 = vmatpush1.msra.mxu0 0.0
  %227 = vmatprep.subr.mxu0 0.0
  %228 = vmatpush1.msra.mxu0 0.0
  %229 = vmatprep.subr.mxu0 0.0
  %230 = vmatpush1.msra.mxu0 0.0
  %231 = vmatprep.subr.mxu0 0.0
  %232 = vmatpush1.msra.mxu0 0.0
  %233 = vmatprep.subr.mxu0 0.0
  %234 = vmatpush1.msra.mxu0 0.0
  %235 = vmatprep.subr.mxu0 0.0
  %236 = vmatpush1.msra.mxu0 0.0
  %237 = vmatprep.subr.mxu0 0.0
  %238 = vmatpush1.msra.mxu0 0.0
  %239 = vmatprep.subr.mxu0 0.0
  %240 = vmatpush1.msra.mxu0 0.0
  %241 = vmatprep.subr.mxu0 0.0
  %242 = vmatpush1.msra.mxu0 0.0
  %243 = vmatprep.subr.mxu0 0.0
  %244 = vmatpush1.msra.mxu0 0.0
  %245 = vmatprep.subr.mxu0 0.0
  %246 = vmatpush1.msra.mxu0 0.0
  %247 = vmatprep.subr.mxu0 0.0
  %248 = vmatpush1.msra.mxu0 0.0
  %249 = vmatprep.subr.mxu0 0.0
  %250 = vmatpush1.msra.mxu0 0.0
  %251 = vmatprep.subr.mxu0 0.0
  %252 = vmatpush1.msra.mxu0 0.0
  %253 = vmatprep.subr.mxu0 0.0
  %254 = vmatpush1.msra.mxu0 0.0
  %255 = vmatprep.subr.mxu0 0.0
  %256 = vmatpush1.msra.mxu0 0.0
  %257 = vmatprep.subr.mxu0 0.0
  %258 = vmatpush1.msra.mxu0 0.0
  %259 = vmatprep.subr.mxu0 0.0
  %260 = vmatpush1.msra.mxu0 0.0
  %261 = vmatprep.subr.mxu0 0.0
  %262 = vmatpush1.msra.mxu0 0.0
  %263 = vmatprep.subr.mxu0 0.0
  %264 = vmatpush1.msra.mxu0 0.0
  %265 = vmatprep.subr.mxu0 0.0
  %266 = vmatpush1.msra.mxu0 0.0
  %267 = vmatprep.subr.mxu0 0.0
  %268 = vmatpush1.msra.mxu0 0.0
  %269 = vmatprep.mubr.f32.mxu0 0.0
  %270 = vmatmul.mubr.f32.gmra.mrb[0].mxu0 %v31
  %v271 = vpop.f32.mrb[0].mxu0
  %v272 = vadd.f32 0.0, %v271
  %v273 = vpop.f32.mrb[0].mxu0
  %274 = vdwg.mxu0
  %v275 = vmul.f32 %v272, %v106
  %v276 = vlaneseq
  %v277 = vshrl.u32 %v276, 7
  %v278 = vsub.s32 0, %v277
  %v279 = vrot.slane %v26, %v278
  %v280 = vmul.f32 %v279, %v201
  %v281 = vmul.f32 %v279, %v202
  %v283 = vsel %vm116, %v275, 0
  %285 = vmatprep.subr.mxu0 0.0
  %286 = vmatpush1.msra.mxu0 %v283
  %287 = vmatprep.subr.mxu0 0.0
  %288 = vmatpush1.msra.mxu0 0.0
  %289 = vmatprep.subr.mxu0 0.0
  %290 = vmatpush1.msra.mxu0 0.0
  %291 = vmatprep.subr.mxu0 0.0
  %292 = vmatpush1.msra.mxu0 0.0
  %293 = vmatprep.subr.mxu0 0.0
  %294 = vmatpush1.msra.mxu0 0.0
  %295 = vmatprep.subr.mxu0 0.0
  %296 = vmatpush1.msra.mxu0 0.0
  %297 = vmatprep.subr.mxu0 0.0
  %298 = vmatpush1.msra.mxu0 0.0
  %299 = vmatprep.subr.mxu0 0.0
  %300 = vmatpush1.msra.mxu0 0.0
  %301 = vmatprep.subr.mxu0 0.0
  %302 = vmatpush1.msra.mxu0 0.0
  %303 = vmatprep.subr.mxu0 0.0
  %304 = vmatpush1.msra.mxu0 0.0
  %305 = vmatprep.subr.mxu0 0.0
  %306 = vmatpush1.msra.mxu0 0.0
  %307 = vmatprep.subr.mxu0 0.0
  %308 = vmatpush1.msra.mxu0 0.0
  %309 = vmatprep.subr.mxu0 0.0
  %310 = vmatpush1.msra.mxu0 0.0
  %311 = vmatprep.subr.mxu0 0.0
  %312 = vmatpush1.msra.mxu0 0.0
  %313 = vmatprep.subr.mxu0 0.0
  %314 = vmatpush1.msra.mxu0 0.0
  %315 = vmatprep.subr.mxu0 0.0
  %316 = vmatpush1.msra.mxu0 0.0
  %317 = vmatprep.subr.mxu0 0.0
  %318 = vmatpush1.msra.mxu0 0.0
  %319 = vmatprep.subr.mxu0 0.0
  %320 = vmatpush1.msra.mxu0 0.0
  %321 = vmatprep.subr.mxu0 0.0
  %322 = vmatpush1.msra.mxu0 0.0
  %323 = vmatprep.subr.mxu0 0.0
  %324 = vmatpush1.msra.mxu0 0.0
  %325 = vmatprep.subr.mxu0 0.0
  %326 = vmatpush1.msra.mxu0 0.0
  %327 = vmatprep.subr.mxu0 0.0
  %328 = vmatpush1.msra.mxu0 0.0
  %329 = vmatprep.subr.mxu0 0.0
  %330 = vmatpush1.msra.mxu0 0.0
  %331 = vmatprep.subr.mxu0 0.0
  %332 = vmatpush1.msra.mxu0 0.0
  %333 = vmatprep.subr.mxu0 0.0
  %334 = vmatpush1.msra.mxu0 0.0
  %335 = vmatprep.subr.mxu0 0.0
  %336 = vmatpush1.msra.mxu0 0.0
  %337 = vmatprep.subr.mxu0 0.0
  %338 = vmatpush1.msra.mxu0 0.0
  %339 = vmatprep.subr.mxu0 0.0
  %340 = vmatpush1.msra.mxu0 0.0
  %341 = vmatprep.subr.mxu0 0.0
  %342 = vmatpush1.msra.mxu0 0.0
  %343 = vmatprep.subr.mxu0 0.0
  %344 = vmatpush1.msra.mxu0 0.0
  %345 = vmatprep.subr.mxu0 0.0
  %346 = vmatpush1.msra.mxu0 0.0
  %347 = vmatprep.subr.mxu0 0.0
  %348 = vmatpush1.msra.mxu0 0.0
  %349 = vmatprep.mubr.f32.mxu0 0.0
  %350 = vmatmul.mubr.f32.gmra.mrb[0].mxu0 %v111
  %v351 = vpop.f32.mrb[0].mxu0
  %v352 = vadd.f32 1e-05, %v351
  %v353 = vpop.f32.mrb[0].mxu0
  %354 = vmatprep.mubr.f32.mxu0 0.0
  %355 = vmatmul.mubr.f32.gmra.mrb[0].mxu0 %v114
  %v356 = vpop.f32.mrb[0].mxu0
  %v357 = vadd.f32 1e-05, %v356
  %v358 = vpop.f32.mrb[0].mxu0
  %359 = vdwg.mxu0
  %v360 = vrsqrt.pop %v352
  %v361 = vrsqrt.pop %v357
  %v362 = vmul.f32 %v280, %v360
  %v363 = vmul.f32 %v281, %v361
  %v364 = vlaneseq
  %v365 = vshrl.u32 %v364, 7
  %v366 = vsub.s32 0, %v365
  %v367 = vrot.slane %v27, %v366
  %v368 = vadd.f32 %v362, %v367
  %v369 = vadd.f32 %v363, %v367
  %vm370 = vcmask 523264
  %371 = vst.msk [vmem:[%s5] sm:$0xff] %vm370, %v368
  %372 = vst.msk [vmem:[%s5 + $0x8] sm:$0xff] %vm370, %v369
  // Predicated region
  $region22: #{gat_model_forward.8} parent=0 // pred_check
    _
  $region23: #{gat_model_forward.8} parent=0 // pred_check_branch
    %374 = sbr.rel (0) target = $region25
  $region24: #{gat_model_forward.8} parent=0 // pred_region
    _
  $region25: #{gat_model_forward.8} parent=0 // pred_fallthru
    _
  // Predicated region
  $region26: #{gat_model_forward.8} parent=0 // pred_check
    _
  $region27: #{gat_model_forward.8} parent=0 // pred_check_branch
    %376 = sbr.rel (0) target = $region29
  $region28: #{gat_model_forward.8} parent=0 // pred_region
    _
  $region29: #{gat_model_forward.8} parent=0 // pred_fallthru
    _

// kernel: gat_model_forward.7
$region0: #{gat_model_forward.7}
  #allocation0 [shape = 'u32[]', space=smem, size = 0x4, offset = 0x4, fixed_abs, tag = 'smem constant byte address 0x4 - core index']
  #allocation1 [shape = 'u32[144,128]{1,0:T(1,128)}', space=vmem, size = 0x12000, scoped, tag = 'internal scratch']
  %s0 = inlined_call_operand.vmem [shape: bf16[16,16], index: 0, kind: input, shape index: {}]
  %s1 = inlined_call_operand.vmem [shape: bf16[16,64], index: 1, kind: input, shape index: {}]
  %s2 = inlined_call_operand.vmem [shape: f32[16,8], index: 2, kind: input, shape index: {}, may-alias: {2,3}]
  %s3 = inlined_call_operand.vmem [shape: f32[16,8], index: 3, kind: input, shape index: {}, may-alias: {2,3}]
  %s4 = inlined_call_operand.vmem [shape: f32[1,64], index: 4, kind: input, shape index: {}]
  %s5 = inlined_call_operand.vmem [shape: f32[16,64], index: 5, kind: output, shape index: {}]
  %s6 = sld [smem:[#allocation0]]
  $region30: #{gat_model_forward.7} parent=0
    _
  %s8 = ssub.s32 1, %s6
  %s9 = scalar_select 0, %s8, %s6
  // Predicated region
  $region2: #{gat_model_forward.7} parent=0 // pred_check
    _
  $region3: #{gat_model_forward.7} parent=0 // pred_check_branch
    %11 = sbr.rel (0) target = $region5
  $region4: #{gat_model_forward.7} parent=0 // pred_region
    _
  $region5: #{gat_model_forward.7} parent=0 // pred_fallthru
    _
  // Predicated region
  $region6: #{gat_model_forward.7} parent=0 // pred_check
    _
  $region7: #{gat_model_forward.7} parent=0 // pred_check_branch
    %13 = sbr.rel (0) target = $region9
  $region8: #{gat_model_forward.7} parent=0 // pred_region
    _
  $region9: #{gat_model_forward.7} parent=0 // pred_fallthru
    _
  // Predicated region
  $region10: #{gat_model_forward.7} parent=0 // pred_check
    _
  $region11: #{gat_model_forward.7} parent=0 // pred_check_branch
    %15 = sbr.rel (0) target = $region13
  $region12: #{gat_model_forward.7} parent=0 // pred_region
    _
  $region13: #{gat_model_forward.7} parent=0 // pred_fallthru
    _
  // Predicated region
  $region14: #{gat_model_forward.7} parent=0 // pred_check
    _
  $region15: #{gat_model_forward.7} parent=0 // pred_check_branch
    %17 = sbr.rel (0) target = $region17
  $region16: #{gat_model_forward.7} parent=0 // pred_region
    _
  $region17: #{gat_model_forward.7} parent=0 // pred_fallthru
    _
  // Predicated region
  $region18: #{gat_model_forward.7} parent=0 // pred_check
    _
  $region19: #{gat_model_forward.7} parent=0 // pred_check_branch
    %19 = sbr.rel (0) target = $region21
  $region20: #{gat_model_forward.7} parent=0 // pred_region
    _
  $region21: #{gat_model_forward.7} parent=0 // pred_fallthru
    _
  %v23 = vld [vmem:[%s0] sm:$0xf]
  %v24 = vld [vmem:[%s0 + $0x4] sm:$0xf]
  %vm25 = vcmp.gt.bf16.partialorder %v23, 0
  %vm26 = vcmp.gt.bf16.partialorder %v24, 0
  %v27 = vld [vmem:[%s1] sm:$0xf]
  %v28 = vld [vmem:[%s1 + $0x4] sm:$0xf]
  %v29 = vld [vmem:[%s2] sm:$0xff]
  %v30 = vld [vmem:[%s2 + $0x8] sm:$0xff]
  %v31 = vld [vmem:[%s3] sm:$0xff]
  %v32 = vld [vmem:[%s3 + $0x8] sm:$0xff]
  %35 = vrot.lane.b32.xlu0 %v31, 124
  %v36 = vpop.permute.xlu0 %35
  %37 = vrot.lane.b32.xlu0 %v32, 124
  %v38 = vpop.permute.xlu0 %37
  %41 = vxpose.xlu0.b32.start [1/16] %v36, 128
  %42 = vxpose.xlu0.b32.cont [2/16] %v38, 128
  %43 = vxpose.xlu0.b32.cont [3/16] 0.0, 128
  %44 = vxpose.xlu0.b32.cont [4/16] 0.0, 128
  %45 = vxpose.xlu0.b32.cont [5/16] 0.0, 128
  %46 = vxpose.xlu0.b32.cont [6/16] 0.0, 128
  %47 = vxpose.xlu0.b32.cont [7/16] 0.0, 128
  %48 = vxpose.xlu0.b32.cont [8/16] 0.0, 128
  %49 = vxpose.xlu0.b32.cont [9/16] 0.0, 128
  %50 = vxpose.xlu0.b32.cont [10/16] 0.0, 128
  %51 = vxpose.xlu0.b32.cont [11/16] 0.0, 128
  %52 = vxpose.xlu0.b32.cont [12/16] 0.0, 128
  %53 = vxpose.xlu0.b32.cont [13/16] 0.0, 128
  %54 = vxpose.xlu0.b32.cont [14/16] 0.0, 128
  %55 = vxpose.xlu0.b32.cont [15/16] 0.0, 128
  %56 = vxpose.xlu0.b32.end [16/16] 0.0, 128
  %v57 = vpop.trf.xlu0
  %v58 = vpop.trf.xlu0
  %v59 = vpop.trf.xlu0
  %v60 = vpop.trf.xlu0
  %v61 = vpop.trf.xlu0
  %v62 = vpop.trf.xlu0
  %v63 = vpop.trf.xlu0
  %v64 = vpop.trf.xlu0
  %v65 = vpop.trf.xlu0
  %v66 = vpop.trf.xlu0
  %v67 = vpop.trf.xlu0
  %v68 = vpop.trf.xlu0
  %v69 = vpop.trf.xlu0
  %v70 = vpop.trf.xlu0
  %v71 = vpop.trf.xlu0
  %v72 = vpop.trf.xlu0
  %74 = vset.pattern.permute.xlu0 0
  %75 = vperm.xlu0 %74, %v29
  %v76 = vpop.permute.xlu0 %75
  %79 = vset.pattern.permute.xlu0 0
  %80 = vperm.xlu0 %79, %v30
  %v81 = vpop.permute.xlu0 %80
  %v83 = vlaneseq
  %v84 = vshrl.u32 %v83, 7
  %v85 = vsub.s32 0, %v84
  %v86 = vrot.slane %v57, %v85
  %v87 = vadd.f32 %v76, %v86
  %v88 = vadd.f32 %v81, %v86
  %v89 = vmul.f32 %v87, 0.2
  %v90 = vmul.f32 %v88, 0.2
  %v91 = vmax.f32 %v87, %v89
  %v92 = vmax.f32 %v88, %v90
  %v93 = vsel %vm25, 65537, 0
  %v94 = vsel %vm26, 65537, 0
  %v95 = vunpack.c.l.b16 %v93
  %v96 = vunpack.c.l.b16 %v94
  %vm97 = vcmp.ne.s32.totalorder %v95, 0
  %vm98 = vcmp.ne.s32.totalorder %v96, 0
  %v99 = vsel %vm97, %v91, -1e+30
  %v100 = vsel %vm98, %v92, -1e+30
  %vm101 = vcmask 130048
  %v102 = vsel %vm101, %v99, -inf
  %103 = vmax.xlane.f32.xlu0 %v102
  %v104 = vpop.xlane.xlu0 %103
  %v105 = vsel %vm101, %v100, -inf
  %106 = vmax.xlane.f32.xlu0 %v105
  %v107 = vpop.xlane.xlu0 %106
  %v108 = vsub.f32 %v99, %v104
  %v109 = vsub.f32 %v100, %v107
  %v110 = vmul.f32 %v108, 1.442695
  %v111 = vpow.pop %v110
  %v112 = vmul.f32 %v109, 1.442695
  %v113 = vpow.pop %v112
  %v114 = vsel %vm101, %v111, 0.0
  %115 = vadd.xlane.f32.xlu0 %v114
  %v116 = vpop.xlane.xlu0 %115
  %v117 = vsel %vm101, %v113, 0.0
  %118 = vadd.xlane.f32.xlu0 %v117
  %v119 = vpop.xlane.xlu0 %118
  %v120 = vpack.c.bf16 %v113, %v111
  %v123 = vunpack.c.l.b16 %v27
  %v124 = vunpack.c.l.b16 %v28
  %v125 = vpack.c.b16 %v124, %v123
  %v128 = vsel %vm101, %v120, 0
  %130 = vmatprep.subr.bf16.mxu0 0
  %131 = vmatpush1.bf16.msra.mxu0 %v125
  %132 = vmatprep.subr.bf16.mxu0 0
  %133 = vmatpush1.bf16.msra.mxu0 0
  %134 = vmatprep.subr.bf16.mxu0 0
  %135 = vmatpush1.bf16.msra.mxu0 0
  %136 = vmatprep.subr.bf16.mxu0 0
  %137 = vmatpush1.bf16.msra.mxu0 0
  %138 = vmatprep.subr.bf16.mxu0 0
  %139 = vmatpush1.bf16.msra.mxu0 0
  %140 = vmatprep.subr.bf16.mxu0 0
  %141 = vmatpush1.bf16.msra.mxu0 0
  %142 = vmatprep.subr.bf16.mxu0 0
  %143 = vmatpush1.bf16.msra.mxu0 0
  %144 = vmatprep.subr.bf16.mxu0 0
  %145 = vmatpush1.bf16.msra.mxu0 0
  %146 = vmatprep.subr.bf16.mxu0 0
  %147 = vmatpush1.bf16.msra.mxu0 0
  %148 = vmatprep.subr.bf16.mxu0 0
  %149 = vmatpush1.bf16.msra.mxu0 0
  %150 = vmatprep.subr.bf16.mxu0 0
  %151 = vmatpush1.bf16.msra.mxu0 0
  %152 = vmatprep.subr.bf16.mxu0 0
  %153 = vmatpush1.bf16.msra.mxu0 0
  %154 = vmatprep.subr.bf16.mxu0 0
  %155 = vmatpush1.bf16.msra.mxu0 0
  %156 = vmatprep.subr.bf16.mxu0 0
  %157 = vmatpush1.bf16.msra.mxu0 0
  %158 = vmatprep.subr.bf16.mxu0 0
  %159 = vmatpush1.bf16.msra.mxu0 0
  %160 = vmatprep.subr.bf16.mxu0 0
  %161 = vmatpush1.bf16.msra.mxu0 0
  %162 = vmatprep.mubr.bf16.mxu0 0
  %163 = vmatmul.mubr.bf16.gmra.mrb[0].mxu0 %v128
  %v164 = vpop.f32.mrb[0].mxu0
  %v165 = vadd.f32 0.0, %v164
  %v166 = vpop.f32.mrb[0].mxu0
  %v167 = vpop.f32.mrb[0].mxu0
  %v168 = vadd.f32 0.0, %v167
  %v169 = vpop.f32.mrb[0].mxu0
  %170 = vdwg.mxu0
  %v171 = vrcp.pop %v116
  %v172 = vrcp.pop %v119
  %v173 = vmul.f32 %v165, %v171
  %v174 = vmul.f32 %v168, %v172
  %175 = vset.pattern.permute.xlu0 1
  %176 = vperm.xlu0 %175, %v29
  %v177 = vpop.permute.xlu0 %176
  %179 = vset.pattern.permute.xlu0 1
  %180 = vperm.xlu0 %179, %v30
  %v181 = vpop.permute.xlu0 %180
  %v183 = vlaneseq
  %v184 = vshrl.u32 %v183, 7
  %v185 = vsub.s32 1, %v184
  %v186 = vrot.slane %v57, %v185
  %v187 = vadd.f32 %v177, %v186
  %v188 = vadd.f32 %v181, %v186
  %v189 = vmul.f32 %v187, 0.2
  %v190 = vmul.f32 %v188, 0.2
  %v191 = vmax.f32 %v187, %v189
  %v192 = vmax.f32 %v188, %v190
  %v193 = vsel %vm97, %v191, -1e+30
  %v194 = vsel %vm98, %v192, -1e+30
  %v195 = vsel %vm101, %v193, -inf
  %196 = vmax.xlane.f32.xlu0 %v195
  %v197 = vpop.xlane.xlu0 %196
  %v198 = vsel %vm101, %v194, -inf
  %199 = vmax.xlane.f32.xlu0 %v198
  %v200 = vpop.xlane.xlu0 %199
  %v201 = vsub.f32 %v193, %v197
  %v202 = vsub.f32 %v194, %v200
  %v203 = vmul.f32 %v201, 1.442695
  %v204 = vpow.pop %v203
  %v205 = vmul.f32 %v202, 1.442695
  %v206 = vpow.pop %v205
  %v207 = vsel %vm101, %v204, 0.0
  %208 = vadd.xlane.f32.xlu0 %v207
  %v209 = vpop.xlane.xlu0 %208
  %v210 = vsel %vm101, %v206, 0.0
  %211 = vadd.xlane.f32.xlu0 %v210
  %v212 = vpop.xlane.xlu0 %211
  %v213 = vpack.c.bf16 %v206, %v204
  %214 = vrot.lane.b32.xlu0 %v125, 112
  %v215 = vpop.permute.xlu0 %214
  %v218 = vsel %vm101, %v213, 0
  %220 = vmatprep.subr.bf16.mxu0 0
  %221 = vmatpush1.bf16.msra.mxu0 %v215
  %222 = vmatprep.subr.bf16.mxu0 0
  %223 = vmatpush1.bf16.msra.mxu0 0
  %224 = vmatprep.subr.bf16.mxu0 0
  %225 = vmatpush1.bf16.msra.mxu0 0
  %226 = vmatprep.subr.bf16.mxu0 0
  %227 = vmatpush1.bf16.msra.mxu0 0
  %228 = vmatprep.subr.bf16.mxu0 0
  %229 = vmatpush1.bf16.msra.mxu0 0
  %230 = vmatprep.subr.bf16.mxu0 0
  %231 = vmatpush1.bf16.msra.mxu0 0
  %232 = vmatprep.subr.bf16.mxu0 0
  %233 = vmatpush1.bf16.msra.mxu0 0
  %234 = vmatprep.subr.bf16.mxu0 0
  %235 = vmatpush1.bf16.msra.mxu0 0
  %236 = vmatprep.subr.bf16.mxu0 0
  %237 = vmatpush1.bf16.msra.mxu0 0
  %238 = vmatprep.subr.bf16.mxu0 0
  %239 = vmatpush1.bf16.msra.mxu0 0
  %240 = vmatprep.subr.bf16.mxu0 0
  %241 = vmatpush1.bf16.msra.mxu0 0
  %242 = vmatprep.subr.bf16.mxu0 0
  %243 = vmatpush1.bf16.msra.mxu0 0
  %244 = vmatprep.subr.bf16.mxu0 0
  %245 = vmatpush1.bf16.msra.mxu0 0
  %246 = vmatprep.subr.bf16.mxu0 0
  %247 = vmatpush1.bf16.msra.mxu0 0
  %248 = vmatprep.subr.bf16.mxu0 0
  %249 = vmatpush1.bf16.msra.mxu0 0
  %250 = vmatprep.subr.bf16.mxu0 0
  %251 = vmatpush1.bf16.msra.mxu0 0
  %252 = vmatprep.mubr.bf16.mxu0 0
  %253 = vmatmul.mubr.bf16.gmra.mrb[0].mxu0 %v218
  %v254 = vpop.f32.mrb[0].mxu0
  %v255 = vadd.f32 0.0, %v254
  %v256 = vpop.f32.mrb[0].mxu0
  %v257 = vpop.f32.mrb[0].mxu0
  %v258 = vadd.f32 0.0, %v257
  %v259 = vpop.f32.mrb[0].mxu0
  %260 = vdwg.mxu0
  %v261 = vrcp.pop %v209
  %v262 = vrcp.pop %v212
  %v263 = vmul.f32 %v255, %v261
  %v264 = vmul.f32 %v258, %v262
  %265 = vset.pattern.permute.xlu0 2
  %266 = vperm.xlu0 %265, %v29
  %v267 = vpop.permute.xlu0 %266
  %269 = vset.pattern.permute.xlu0 2
  %270 = vperm.xlu0 %269, %v30
  %v271 = vpop.permute.xlu0 %270
  %v273 = vlaneseq
  %v274 = vshrl.u32 %v273, 7
  %v275 = vsub.s32 2, %v274
  %v276 = vrot.slane %v57, %v275
  %v277 = vadd.f32 %v267, %v276
  %v278 = vadd.f32 %v271, %v276
  %v279 = vmul.f32 %v277, 0.2
  %v280 = vmul.f32 %v278, 0.2
  %v281 = vmax.f32 %v277, %v279
  %v282 = vmax.f32 %v278, %v280
  %v283 = vsel %vm97, %v281, -1e+30
  %v284 = vsel %vm98, %v282, -1e+30
  %v285 = vsel %vm101, %v283, -inf
  %286 = vmax.xlane.f32.xlu0 %v285
  %v287 = vpop.xlane.xlu0 %286
  %v288 = vsel %vm101, %v284, -inf
  %289 = vmax.xlane.f32.xlu0 %v288
  %v290 = vpop.xlane.xlu0 %289
  %v291 = vsub.f32 %v283, %v287
  %v292 = vsub.f32 %v284, %v290
  %v293 = vmul.f32 %v291, 1.442695
  %v294 = vpow.pop %v293
  %v295 = vmul.f32 %v292, 1.442695
  %v296 = vpow.pop %v295
  %v297 = vsel %vm101, %v294, 0.0
  %298 = vadd.xlane.f32.xlu0 %v297
  %v299 = vpop.xlane.xlu0 %298
  %v300 = vsel %vm101, %v296, 0.0
  %301 = vadd.xlane.f32.xlu0 %v300
  %v302 = vpop.xlane.xlu0 %301
  %v303 = vpack.c.bf16 %v296, %v294
  %304 = vrot.lane.b32.xlu0 %v125, 96
  %v305 = vpop.permute.xlu0 %304
  %v308 = vsel %vm101, %v303, 0
  %310 = vmatprep.subr.bf16.mxu0 0
  %311 = vmatpush1.bf16.msra.mxu0 %v305
  %312 = vmatprep.subr.bf16.mxu0 0
  %313 = vmatpush1.bf16.msra.mxu0 0
  %314 = vmatprep.subr.bf16.mxu0 0
  %315 = vmatpush1.bf16.msra.mxu0 0
  %316 = vmatprep.subr.bf16.mxu0 0
  %317 = vmatpush1.bf16.msra.mxu0 0
  %318 = vmatprep.subr.bf16.mxu0 0
  %319 = vmatpush1.bf16.msra.mxu0 0
  %320 = vmatprep.subr.bf16.mxu0 0
  %321 = vmatpush1.bf16.msra.mxu0 0
  %322 = vmatprep.subr.bf16.mxu0 0
  %323 = vmatpush1.bf16.msra.mxu0 0
  %324 = vmatprep.subr.bf16.mxu0 0
  %325 = vmatpush1.bf16.msra.mxu0 0
  %326 = vmatprep.subr.bf16.mxu0 0
  %327 = vmatpush1.bf16.msra.mxu0 0
  %328 = vmatprep.subr.bf16.mxu0 0
  %329 = vmatpush1.bf16.msra.mxu0 0
  %330 = vmatprep.subr.bf16.mxu0 0
  %331 = vmatpush1.bf16.msra.mxu0 0
  %332 = vmatprep.subr.bf16.mxu0 0
  %333 = vmatpush1.bf16.msra.mxu0 0
  %334 = vmatprep.subr.bf16.mxu0 0
  %335 = vmatpush1.bf16.msra.mxu0 0
  %336 = vmatprep.subr.bf16.mxu0 0
  %337 = vmatpush1.bf16.msra.mxu0 0
  %338 = vmatprep.subr.bf16.mxu0 0
  %339 = vmatpush1.bf16.msra.mxu0 0
  %340 = vmatprep.subr.bf16.mxu0 0
  %341 = vmatpush1.bf16.msra.mxu0 0
  %342 = vmatprep.mubr.bf16.mxu0 0
  %343 = vmatmul.mubr.bf16.gmra.mrb[0].mxu0 %v308
  %v344 = vpop.f32.mrb[0].mxu0
  %v345 = vadd.f32 0.0, %v344
  %v346 = vpop.f32.mrb[0].mxu0
  %v347 = vpop.f32.mrb[0].mxu0
  %v348 = vadd.f32 0.0, %v347
  %v349 = vpop.f32.mrb[0].mxu0
  %350 = vdwg.mxu0
  %v351 = vrcp.pop %v299
  %v352 = vrcp.pop %v302
  %v353 = vmul.f32 %v345, %v351
  %v354 = vmul.f32 %v348, %v352
  %355 = vset.pattern.permute.xlu0 3
  %356 = vperm.xlu0 %355, %v29
  %v357 = vpop.permute.xlu0 %356
  %359 = vset.pattern.permute.xlu0 3
  %360 = vperm.xlu0 %359, %v30
  %v361 = vpop.permute.xlu0 %360
  %v363 = vlaneseq
  %v364 = vshrl.u32 %v363, 7
  %v365 = vsub.s32 3, %v364
  %v366 = vrot.slane %v57, %v365
  %v367 = vadd.f32 %v357, %v366
  %v368 = vadd.f32 %v361, %v366
  %v369 = vmul.f32 %v367, 0.2
  %v370 = vmul.f32 %v368, 0.2
  %v371 = vmax.f32 %v367, %v369
  %v372 = vmax.f32 %v368, %v370
  %v373 = vsel %vm97, %v371, -1e+30
  %v374 = vsel %vm98, %v372, -1e+30
  %v375 = vsel %vm101, %v373, -inf
  %376 = vmax.xlane.f32.xlu0 %v375
  %v377 = vpop.xlane.xlu0 %376
  %v378 = vsel %vm101, %v374, -inf
  %379 = vmax.xlane.f32.xlu0 %v378
  %v380 = vpop.xlane.xlu0 %379
  %v381 = vsub.f32 %v373, %v377
  %v382 = vsub.f32 %v374, %v380
  %v383 = vmul.f32 %v381, 1.442695
  %v384 = vpow.pop %v383
  %v385 = vmul.f32 %v382, 1.442695
  %v386 = vpow.pop %v385
  %v387 = vsel %vm101, %v384, 0.0
  %388 = vadd.xlane.f32.xlu0 %v387
  %v389 = vpop.xlane.xlu0 %388
  %v390 = vsel %vm101, %v386, 0.0
  %391 = vadd.xlane.f32.xlu0 %v390
  %v392 = vpop.xlane.xlu0 %391
  %v393 = vpack.c.bf16 %v386, %v384
  %394 = vrot.lane.b32.xlu0 %v125, 80
  %v395 = vpop.permute.xlu0 %394
  %v398 = vsel %vm101, %v393, 0
  %400 = vmatprep.subr.bf16.mxu0 0
  %401 = vmatpush1.bf16.msra.mxu0 %v395
  %402 = vmatprep.subr.bf16.mxu0 0
  %403 = vmatpush1.bf16.msra.mxu0 0
  %404 = vmatprep.subr.bf16.mxu0 0
  %405 = vmatpush1.bf16.msra.mxu0 0
  %406 = vmatprep.subr.bf16.mxu0 0
  %407 = vmatpush1.bf16.msra.mxu0 0
  %408 = vmatprep.subr.bf16.mxu0 0
  %409 = vmatpush1.bf16.msra.mxu0 0
  %410 = vmatprep.subr.bf16.mxu0 0
  %411 = vmatpush1.bf16.msra.mxu0 0
  %412 = vmatprep.subr.bf16.mxu0 0
  %413 = vmatpush1.bf16.msra.mxu0 0
  %414 = vmatprep.subr.bf16.mxu0 0
  %415 = vmatpush1.bf16.msra.mxu0 0
  %416 = vmatprep.subr.bf16.mxu0 0
  %417 = vmatpush1.bf16.msra.mxu0 0
  %418 = vmatprep.subr.bf16.mxu0 0
  %419 = vmatpush1.bf16.msra.mxu0 0
  %420 = vmatprep.subr.bf16.mxu0 0
  %421 = vmatpush1.bf16.msra.mxu0 0
  %422 = vmatprep.subr.bf16.mxu0 0
  %423 = vmatpush1.bf16.msra.mxu0 0
  %424 = vmatprep.subr.bf16.mxu0 0
  %425 = vmatpush1.bf16.msra.mxu0 0
  %426 = vmatprep.subr.bf16.mxu0 0
  %427 = vmatpush1.bf16.msra.mxu0 0
  %428 = vmatprep.subr.bf16.mxu0 0
  %429 = vmatpush1.bf16.msra.mxu0 0
  %430 = vmatprep.subr.bf16.mxu0 0
  %431 = vmatpush1.bf16.msra.mxu0 0
  %432 = vmatprep.mubr.bf16.mxu0 0
  %433 = vmatmul.mubr.bf16.gmra.mrb[0].mxu0 %v398
  %v434 = vpop.f32.mrb[0].mxu0
  %v435 = vadd.f32 0.0, %v434
  %v436 = vpop.f32.mrb[0].mxu0
  %v437 = vpop.f32.mrb[0].mxu0
  %v438 = vadd.f32 0.0, %v437
  %v439 = vpop.f32.mrb[0].mxu0
  %440 = vdwg.mxu0
  %v441 = vrcp.pop %v389
  %v442 = vrcp.pop %v392
  %v443 = vmul.f32 %v435, %v441
  %v444 = vmul.f32 %v438, %v442
  %447 = vrot.lane.b32.xlu0 %v263, 16
  %v448 = vpop.permute.xlu0 %447
  %449 = vrot.lane.b32.xlu0 %v264, 16
  %v450 = vpop.permute.xlu0 %449
  %455 = vrot.lane.b32.xlu0 %v353, 32
  %v456 = vpop.permute.xlu0 %455
  %457 = vrot.lane.b32.xlu0 %v354, 32
  %v458 = vpop.permute.xlu0 %457
  %463 = vrot.lane.b32.xlu0 %v443, 48
  %v464 = vpop.permute.xlu0 %463
  %465 = vrot.lane.b32.xlu0 %v444, 48
  %v466 = vpop.permute.xlu0 %465
  %v469 = vsel %vm101, %v173, %v448
  %v470 = vsel %vm101, %v174, %v450
  %vm471 = vcmask 261120
  %v472 = vsel %vm471, %v469, %v456
  %v473 = vsel %vm471, %v470, %v458
  %vm474 = vcmask 392192
  %v475 = vsel %vm474, %v472, %v464
  %v476 = vsel %vm474, %v473, %v466
  %v477 = vld [vmem:[%s4] sm:$0x1]
  %v479 = vlaneseq
  %v480 = vshrl.u32 %v479, 7
  %v481 = vsub.s32 0, %v480
  %v482 = vrot.slane %v477, %v481
  %v484 = vadd.f32 %v475, %v482
  %v485 = vadd.f32 %v476, %v482
  %vm486 = vcmask 523264
  %487 = vst.msk [vmem:[%s5] sm:$0xff] %vm486, %v484
  %488 = vst.msk [vmem:[%s5 + $0x8] sm:$0xff] %vm486, %v485
  // Predicated region
  $region22: #{gat_model_forward.7} parent=0 // pred_check
    _
  $region23: #{gat_model_forward.7} parent=0 // pred_check_branch
    %490 = sbr.rel (0) target = $region25
  $region24: #{gat_model_forward.7} parent=0 // pred_region
    _
  $region25: #{gat_model_forward.7} parent=0 // pred_fallthru
    _
  // Predicated region
  $region26: #{gat_model_forward.7} parent=0 // pred_check
    _
  $region27: #{gat_model_forward.7} parent=0 // pred_check_branch
    %492 = sbr.rel (0) target = $region29
  $region28: #{gat_model_forward.7} parent=0 // pred_region
    _
  $region29: #{gat_model_forward.7} parent=0 // pred_fallthru
    _

// kernel: gat_model_forward.9
$region0: #{gat_model_forward.9}
  #allocation0 [shape = 'u32[]', space=smem, size = 0x4, offset = 0x4, fixed_abs, tag = 'smem constant byte address 0x4 - core index']
  #allocation1 [shape = 'u32[144,128]{1,0:T(1,128)}', space=vmem, size = 0x12000, scoped, tag = 'internal scratch']
  %s0 = inlined_call_operand.vmem [shape: f32[16,64], index: 0, kind: input, shape index: {}]
  %s1 = inlined_call_operand.vmem [shape: bf16[64,32], index: 1, kind: input, shape index: {}]
  %s2 = inlined_call_operand.vmem [shape: bf16[32,8], index: 2, kind: input, shape index: {}]
  %s3 = inlined_call_operand.vmem [shape: bf16[16,32], index: 3, kind: output, shape index: {0}]
  %s4 = inlined_call_operand.vmem [shape: f32[16,8], index: 4, kind: output, shape index: {1}]
  %5 = xla_tuple %s3, %s4
  %s6 = sld [smem:[#allocation0]]
  $region30: #{gat_model_forward.9} parent=0
    _
  %s8 = ssub.s32 1, %s6
  %s9 = scalar_select 0, %s8, %s6
  // Predicated region
  $region2: #{gat_model_forward.9} parent=0 // pred_check
    _
  $region3: #{gat_model_forward.9} parent=0 // pred_check_branch
    %11 = sbr.rel (0) target = $region5
  $region4: #{gat_model_forward.9} parent=0 // pred_region
    _
  $region5: #{gat_model_forward.9} parent=0 // pred_fallthru
    _
  // Predicated region
  $region6: #{gat_model_forward.9} parent=0 // pred_check
    _
  $region7: #{gat_model_forward.9} parent=0 // pred_check_branch
    %13 = sbr.rel (0) target = $region9
  $region8: #{gat_model_forward.9} parent=0 // pred_region
    _
  $region9: #{gat_model_forward.9} parent=0 // pred_fallthru
    _
  // Predicated region
  $region10: #{gat_model_forward.9} parent=0 // pred_check
    _
  $region11: #{gat_model_forward.9} parent=0 // pred_check_branch
    %15 = sbr.rel (0) target = $region13
  $region12: #{gat_model_forward.9} parent=0 // pred_region
    _
  $region13: #{gat_model_forward.9} parent=0 // pred_fallthru
    _
  %v17 = vld [vmem:[%s0] sm:$0xff]
  %v18 = vld [vmem:[%s0 + $0x8] sm:$0xff]
  %v19 = vpack.c.bf16 %v18, %v17
  %v20 = vld [vmem:[%s1] sm:$0xf]
  %v21 = vld [vmem:[%s1 + $0x4] sm:$0xf]
  %v22 = vld [vmem:[%s1 + $0x8] sm:$0xf]
  %v23 = vld [vmem:[%s1 + $0xc] sm:$0xf]
  %v24 = vld [vmem:[%s1 + $0x10] sm:$0xf]
  %v25 = vld [vmem:[%s1 + $0x14] sm:$0xf]
  %v26 = vld [vmem:[%s1 + $0x18] sm:$0xf]
  %v27 = vld [vmem:[%s1 + $0x1c] sm:$0xf]
  %v36 = vunpack.c.l.b16 %v20
  %v37 = vunpack.c.l.b16 %v21
  %v38 = vunpack.c.l.b16 %v22
  %v39 = vunpack.c.l.b16 %v23
  %v40 = vunpack.c.l.b16 %v24
  %v41 = vunpack.c.l.b16 %v25
  %v42 = vunpack.c.l.b16 %v26
  %v43 = vunpack.c.l.b16 %v27
  %v44 = vpack.c.b16 %v37, %v36
  %v45 = vpack.c.b16 %v39, %v38
  %v46 = vpack.c.b16 %v41, %v40
  %v47 = vpack.c.b16 %v43, %v42
  %vm52 = vcmask 523264
  %v54 = vsel %vm52, %v19, 0
  %56 = vmatprep.subr.bf16.mxu0 0
  %57 = vmatpush1.bf16.msra.mxu0 %v44
  %58 = vmatprep.subr.bf16.mxu0 0
  %59 = vmatpush1.bf16.msra.mxu0 %v45
  %60 = vmatprep.subr.bf16.mxu0 0
  %61 = vmatpush1.bf16.msra.mxu0 %v46
  %62 = vmatprep.subr.bf16.mxu0 0
  %63 = vmatpush1.bf16.msra.mxu0 %v47
  %64 = vmatprep.subr.bf16.mxu0 0
  %65 = vmatpush1.bf16.msra.mxu0 0
  %66 = vmatprep.subr.bf16.mxu0 0
  %67 = vmatpush1.bf16.msra.mxu0 0
  %68 = vmatprep.subr.bf16.mxu0 0
  %69 = vmatpush1.bf16.msra.mxu0 0
  %70 = vmatprep.subr.bf16.mxu0 0
  %71 = vmatpush1.bf16.msra.mxu0 0
  %72 = vmatprep.subr.bf16.mxu0 0
  %73 = vmatpush1.bf16.msra.mxu0 0
  %74 = vmatprep.subr.bf16.mxu0 0
  %75 = vmatpush1.bf16.msra.mxu0 0
  %76 = vmatprep.subr.bf16.mxu0 0
  %77 = vmatpush1.bf16.msra.mxu0 0
  %78 = vmatprep.subr.bf16.mxu0 0
  %79 = vmatpush1.bf16.msra.mxu0 0
  %80 = vmatprep.subr.bf16.mxu0 0
  %81 = vmatpush1.bf16.msra.mxu0 0
  %82 = vmatprep.subr.bf16.mxu0 0
  %83 = vmatpush1.bf16.msra.mxu0 0
  %84 = vmatprep.subr.bf16.mxu0 0
  %85 = vmatpush1.bf16.msra.mxu0 0
  %86 = vmatprep.subr.bf16.mxu0 0
  %87 = vmatpush1.bf16.msra.mxu0 0
  %88 = vmatprep.mubr.bf16.mxu0 0
  %89 = vmatmul.mubr.bf16.gmra.mrb[0].mxu0 %v54
  %v90 = vpop.f32.mrb[0].mxu0
  %v91 = vadd.f32 0.0, %v90
  %v92 = vpop.f32.mrb[0].mxu0
  %v93 = vpop.f32.mrb[0].mxu0
  %v94 = vadd.f32 0.0, %v93
  %v95 = vpop.f32.mrb[0].mxu0
  %96 = vdwg.mxu0
  %v97 = vpack.c.bf16 %v94, %v91
  %v98 = vld [vmem:[%s2] sm:$0xf]
  %v99 = vld [vmem:[%s2 + $0x4] sm:$0xf]
  %v100 = vld [vmem:[%s2 + $0x8] sm:$0xf]
  %v101 = vld [vmem:[%s2 + $0xc] sm:$0xf]
  %v106 = vunpack.c.l.b16 %v98
  %v107 = vunpack.c.l.b16 %v99
  %v108 = vunpack.c.l.b16 %v100
  %v109 = vunpack.c.l.b16 %v101
  %v110 = vpack.c.b16 %v107, %v106
  %v111 = vpack.c.b16 %v109, %v108
  %vm114 = vcmask 261120
  %v116 = vsel %vm114, %v97, 0
  %118 = vmatprep.subr.bf16.mxu0 0
  %119 = vmatpush1.bf16.msra.mxu0 %v110
  %120 = vmatprep.subr.bf16.mxu0 0
  %121 = vmatpush1.bf16.msra.mxu0 %v111
  %122 = vmatprep.subr.bf16.mxu0 0
  %123 = vmatpush1.bf16.msra.mxu0 0
  %124 = vmatprep.subr.bf16.mxu0 0
  %125 = vmatpush1.bf16.msra.mxu0 0
  %126 = vmatprep.subr.bf16.mxu0 0
  %127 = vmatpush1.bf16.msra.mxu0 0
  %128 = vmatprep.subr.bf16.mxu0 0
  %129 = vmatpush1.bf16.msra.mxu0 0
  %130 = vmatprep.subr.bf16.mxu0 0
  %131 = vmatpush1.bf16.msra.mxu0 0
  %132 = vmatprep.subr.bf16.mxu0 0
  %133 = vmatpush1.bf16.msra.mxu0 0
  %134 = vmatprep.subr.bf16.mxu0 0
  %135 = vmatpush1.bf16.msra.mxu0 0
  %136 = vmatprep.subr.bf16.mxu0 0
  %137 = vmatpush1.bf16.msra.mxu0 0
  %138 = vmatprep.subr.bf16.mxu0 0
  %139 = vmatpush1.bf16.msra.mxu0 0
  %140 = vmatprep.subr.bf16.mxu0 0
  %141 = vmatpush1.bf16.msra.mxu0 0
  %142 = vmatprep.subr.bf16.mxu0 0
  %143 = vmatpush1.bf16.msra.mxu0 0
  %144 = vmatprep.subr.bf16.mxu0 0
  %145 = vmatpush1.bf16.msra.mxu0 0
  %146 = vmatprep.subr.bf16.mxu0 0
  %147 = vmatpush1.bf16.msra.mxu0 0
  %148 = vmatprep.subr.bf16.mxu0 0
  %149 = vmatpush1.bf16.msra.mxu0 0
  %150 = vmatprep.mubr.bf16.mxu0 0
  %151 = vmatmul.mubr.bf16.gmra.mrb[0].mxu0 %v116
  %v152 = vpop.f32.mrb[0].mxu0
  %v153 = vadd.f32 0.0, %v152
  %v154 = vpop.f32.mrb[0].mxu0
  %v155 = vpop.f32.mrb[0].mxu0
  %v156 = vadd.f32 0.0, %v155
  %v157 = vpop.f32.mrb[0].mxu0
  %158 = vdwg.mxu0
  %vm159 = vcmask 64512
  %160 = vst.msk [vmem:[%s4] sm:$0xff] %vm159, %v153
  %161 = vst.msk [vmem:[%s4 + $0x8] sm:$0xff] %vm159, %v156
  %v163 = vunpack.c.l.b16 %v97
  %v164 = vunpack.c.h.b16 %v97
  %v165 = vpack.c.b16 %v163, %v163
  %v166 = vpack.c.b16 %v164, %v164
  %vm169 = vcmask 257024
  %170 = vst.msk [vmem:[%s3] sm:$0xf] %vm169, %v165
  %171 = vst.msk [vmem:[%s3 + $0x4] sm:$0xf] %vm169, %v166
  // Predicated region
  $region14: #{gat_model_forward.9} parent=0 // pred_check
    _
  $region15: #{gat_model_forward.9} parent=0 // pred_check_branch
    %173 = sbr.rel (0) target = $region17
  $region16: #{gat_model_forward.9} parent=0 // pred_region
    _
  $region17: #{gat_model_forward.9} parent=0 // pred_fallthru
    _
  // Predicated region
  $region18: #{gat_model_forward.9} parent=0 // pred_check
    _
  $region19: #{gat_model_forward.9} parent=0 // pred_check_branch
    %175 = sbr.rel (0) target = $region21
  $region20: #{gat_model_forward.9} parent=0 // pred_region
    _
  $region21: #{gat_model_forward.9} parent=0 // pred_fallthru
    _
  // Predicated region
  $region22: #{gat_model_forward.9} parent=0 // pred_check
    _
  $region23: #{gat_model_forward.9} parent=0 // pred_check_branch
    %177 = sbr.rel (0) target = $region25
  $region24: #{gat_model_forward.9} parent=0 // pred_region
    _
  $region25: #{gat_model_forward.9} parent=0 // pred_fallthru
    _
  // Predicated region
  $region26: #{gat_model_forward.9} parent=0 // pred_check
    _
  $region27: #{gat_model_forward.9} parent=0 // pred_check_branch
    %179 = sbr.rel (0) target = $region29
  $region28: #{gat_model_forward.9} parent=0 // pred_region
    _
  $region29: #{gat_model_forward.9} parent=0 // pred_fallthru
    _

// kernel: gat_model_forward.11
$region0: #{gat_model_forward.11}
  #allocation0 [shape = 'u32[]', space=smem, size = 0x4, offset = 0x4, fixed_abs, tag = 'smem constant byte address 0x4 - core index']
  #allocation1 [shape = 'u32[144,128]{1,0:T(1,128)}', space=vmem, size = 0x12000, scoped, tag = 'internal scratch']
  %s0 = inlined_call_operand.vmem [shape: f32[16,8], index: 0, kind: input, shape index: {}]
  %s1 = inlined_call_operand.vmem [shape: f32[2,16], index: 1, kind: input, shape index: {}]
  %s2 = inlined_call_operand.vmem [shape: f32[16,2], index: 2, kind: input, shape index: {}]
  %s3 = inlined_call_operand.vmem [shape: f32[2,1], index: 3, kind: input, shape index: {}]
  %s4 = inlined_call_operand.vmem [shape: f32[3,8], index: 4, kind: input, shape index: {}]
  %s5 = inlined_call_operand.hbm [shape: f32[2,8], index: 5, kind: output, shape index: {}]
  %s6 = sld [smem:[#allocation0]]
  $region30: #{gat_model_forward.11} parent=0
    _
  %s8 = ssub.s32 1, %s6
  %s9 = scalar_select 0, %s8, %s6
  $region1: #{gat_model_forward.11} parent=0
    #allocation2 [shape = 'u8[1024]{0}', space=vmem, size = 0x400, scoped, tag = 'output window, operand 0, single buffered']
    #allocation3 [shape = 's32[1]{0}', space=sflag, size = 0x4, scoped, tag = 'scoped memory for gat_model_forward.11']
    %10 = vsyncpa [#allocation3], 0
    // Predicated region
    $region2: #{gat_model_forward.11} parent=1 // pred_check
      _
    $region3: #{gat_model_forward.11} parent=1 // pred_check_branch
      %12 = sbr.rel (0) target = $region5
    $region4: #{gat_model_forward.11} parent=1 // pred_region
      _
    $region5: #{gat_model_forward.11} parent=1 // pred_fallthru
      _
    // Predicated region
    $region6: #{gat_model_forward.11} parent=1 // pred_check
      _
    $region7: #{gat_model_forward.11} parent=1 // pred_check_branch
      %14 = sbr.rel (0) target = $region9
    $region8: #{gat_model_forward.11} parent=1 // pred_region
      _
    $region9: #{gat_model_forward.11} parent=1 // pred_fallthru
      _
    // Predicated region
    $region10: #{gat_model_forward.11} parent=1 // pred_check
      _
    $region11: #{gat_model_forward.11} parent=1 // pred_check_branch
      %16 = sbr.rel (0) target = $region13
    $region12: #{gat_model_forward.11} parent=1 // pred_region
      _
    $region13: #{gat_model_forward.11} parent=1 // pred_fallthru
      _
    // Predicated region
    $region14: #{gat_model_forward.11} parent=1 // pred_check
      _
    $region15: #{gat_model_forward.11} parent=1 // pred_check_branch
      %18 = sbr.rel (0) target = $region17
    $region16: #{gat_model_forward.11} parent=1 // pred_region
      _
    $region17: #{gat_model_forward.11} parent=1 // pred_fallthru
      _
    // Predicated region
    $region18: #{gat_model_forward.11} parent=1 // pred_check
      _
    $region19: #{gat_model_forward.11} parent=1 // pred_check_branch
      %20 = sbr.rel (0) target = $region21
    $region20: #{gat_model_forward.11} parent=1 // pred_region
      _
    $region21: #{gat_model_forward.11} parent=1 // pred_fallthru
      _
    %v21 = vld [vmem:[%s0] sm:$0xff]
    %v22 = vld [vmem:[%s0 + $0x8] sm:$0xff]
    %v23 = vld [vmem:[%s1] sm:$0x3]
    %v24 = vld [vmem:[%s2] sm:$0xff]
    %v25 = vld [vmem:[%s2 + $0x8] sm:$0xff]
    %v26 = vld [vmem:[%s3] sm:$0x3]
    %v27 = vld [vmem:[%s4] sm:$0x1]
    %v28 = vld [vmem:[%s4 + $0x1] sm:$0x1]
    %v29 = vld [vmem:[%s4 + $0x2] sm:$0x1]
    %vm30 = vcmask 130048
    %v32 = vsel %vm30, %v23, 0
    %34 = vmatprep.subr.mxu0 0.0
    %35 = vmatpush1.msra.mxu0 %v21
    %36 = vmatprep.subr.mxu0 0.0
    %37 = vmatpush1.msra.mxu0 %v22
    %38 = vmatprep.subr.mxu0 0.0
    %39 = vmatpush1.msra.mxu0 0.0
    %40 = vmatprep.subr.mxu0 0.0
    %41 = vmatpush1.msra.mxu0 0.0
    %42 = vmatprep.subr.mxu0 0.0
    %43 = vmatpush1.msra.mxu0 0.0
    %44 = vmatprep.subr.mxu0 0.0
    %45 = vmatpush1.msra.mxu0 0.0
    %46 = vmatprep.subr.mxu0 0.0
    %47 = vmatpush1.msra.mxu0 0.0
    %48 = vmatprep.subr.mxu0 0.0
    %49 = vmatpush1.msra.mxu0 0.0
    %50 = vmatprep.subr.mxu0 0.0
    %51 = vmatpush1.msra.mxu0 0.0
    %52 = vmatprep.subr.mxu0 0.0
    %53 = vmatpush1.msra.mxu0 0.0
    %54 = vmatprep.subr.mxu0 0.0
    %55 = vmatpush1.msra.mxu0 0.0
    %56 = vmatprep.subr.mxu0 0.0
    %57 = vmatpush1.msra.mxu0 0.0
    %58 = vmatprep.subr.mxu0 0.0
    %59 = vmatpush1.msra.mxu0 0.0
    %60 = vmatprep.subr.mxu0 0.0
    %61 = vmatpush1.msra.mxu0 0.0
    %62 = vmatprep.subr.mxu0 0.0
    %63 = vmatpush1.msra.mxu0 0.0
    %64 = vmatprep.subr.mxu0 0.0
    %65 = vmatpush1.msra.mxu0 0.0
    %66 = vmatprep.subr.mxu0 0.0
    %67 = vmatpush1.msra.mxu0 0.0
    %68 = vmatprep.subr.mxu0 0.0
    %69 = vmatpush1.msra.mxu0 0.0
    %70 = vmatprep.subr.mxu0 0.0
    %71 = vmatpush1.msra.mxu0 0.0
    %72 = vmatprep.subr.mxu0 0.0
    %73 = vmatpush1.msra.mxu0 0.0
    %74 = vmatprep.subr.mxu0 0.0
    %75 = vmatpush1.msra.mxu0 0.0
    %76 = vmatprep.subr.mxu0 0.0
    %77 = vmatpush1.msra.mxu0 0.0
    %78 = vmatprep.subr.mxu0 0.0
    %79 = vmatpush1.msra.mxu0 0.0
    %80 = vmatprep.subr.mxu0 0.0
    %81 = vmatpush1.msra.mxu0 0.0
    %82 = vmatprep.subr.mxu0 0.0
    %83 = vmatpush1.msra.mxu0 0.0
    %84 = vmatprep.subr.mxu0 0.0
    %85 = vmatpush1.msra.mxu0 0.0
    %86 = vmatprep.subr.mxu0 0.0
    %87 = vmatpush1.msra.mxu0 0.0
    %88 = vmatprep.subr.mxu0 0.0
    %89 = vmatpush1.msra.mxu0 0.0
    %90 = vmatprep.subr.mxu0 0.0
    %91 = vmatpush1.msra.mxu0 0.0
    %92 = vmatprep.subr.mxu0 0.0
    %93 = vmatpush1.msra.mxu0 0.0
    %94 = vmatprep.subr.mxu0 0.0
    %95 = vmatpush1.msra.mxu0 0.0
    %96 = vmatprep.subr.mxu0 0.0
    %97 = vmatpush1.msra.mxu0 0.0
    %98 = vmatprep.mubr.f32.mxu0 0.0
    %99 = vmatmul.mubr.f32.gmra.mrb[0].mxu0 %v32
    %v100 = vpop.f32.mrb[0].mxu0
    %v101 = vadd.f32 0.0, %v100
    %v102 = vpop.f32.mrb[0].mxu0
    %103 = vdwg.mxu0
    %105 = vset.pattern.permute.xlu0 0
    %106 = vperm.xlu0 %105, %v26
    %v107 = vpop.permute.xlu0 %106
    %v109 = vmul.f32 %v101, %v107
    %vm110 = vcmask 15360
    %v112 = vsel %vm110, %v24, 0
    %v115 = vsel %vm110, %v25, 0
    %vm117 = vcmask 1041408
    %v119 = vsel %vm117, %v109, 0
    %121 = vmatprep.subr.mxu0 0.0
    %122 = vmatpush1.msra.mxu0 %v119
    %123 = vmatprep.subr.mxu0 0.0
    %124 = vmatpush1.msra.mxu0 0.0
    %125 = vmatprep.subr.mxu0 0.0
    %126 = vmatpush1.msra.mxu0 0.0
    %127 = vmatprep.subr.mxu0 0.0
    %128 = vmatpush1.msra.mxu0 0.0
    %129 = vmatprep.subr.mxu0 0.0
    %130 = vmatpush1.msra.mxu0 0.0
    %131 = vmatprep.subr.mxu0 0.0
    %132 = vmatpush1.msra.mxu0 0.0
    %133 = vmatprep.subr.mxu0 0.0
    %134 = vmatpush1.msra.mxu0 0.0
    %135 = vmatprep.subr.mxu0 0.0
    %136 = vmatpush1.msra.mxu0 0.0
    %137 = vmatprep.subr.mxu0 0.0
    %138 = vmatpush1.msra.mxu0 0.0
    %139 = vmatprep.subr.mxu0 0.0
    %140 = vmatpush1.msra.mxu0 0.0
    %141 = vmatprep.subr.mxu0 0.0
    %142 = vmatpush1.msra.mxu0 0.0
    %143 = vmatprep.subr.mxu0 0.0
    %144 = vmatpush1.msra.mxu0 0.0
    %145 = vmatprep.subr.mxu0 0.0
    %146 = vmatpush1.msra.mxu0 0.0
    %147 = vmatprep.subr.mxu0 0.0
    %148 = vmatpush1.msra.mxu0 0.0
    %149 = vmatprep.subr.mxu0 0.0
    %150 = vmatpush1.msra.mxu0 0.0
    %151 = vmatprep.subr.mxu0 0.0
    %152 = vmatpush1.msra.mxu0 0.0
    %153 = vmatprep.subr.mxu0 0.0
    %154 = vmatpush1.msra.mxu0 0.0
    %155 = vmatprep.subr.mxu0 0.0
    %156 = vmatpush1.msra.mxu0 0.0
    %157 = vmatprep.subr.mxu0 0.0
    %158 = vmatpush1.msra.mxu0 0.0
    %159 = vmatprep.subr.mxu0 0.0
    %160 = vmatpush1.msra.mxu0 0.0
    %161 = vmatprep.subr.mxu0 0.0
    %162 = vmatpush1.msra.mxu0 0.0
    %163 = vmatprep.subr.mxu0 0.0
    %164 = vmatpush1.msra.mxu0 0.0
    %165 = vmatprep.subr.mxu0 0.0
    %166 = vmatpush1.msra.mxu0 0.0
    %167 = vmatprep.subr.mxu0 0.0
    %168 = vmatpush1.msra.mxu0 0.0
    %169 = vmatprep.subr.mxu0 0.0
    %170 = vmatpush1.msra.mxu0 0.0
    %171 = vmatprep.subr.mxu0 0.0
    %172 = vmatpush1.msra.mxu0 0.0
    %173 = vmatprep.subr.mxu0 0.0
    %174 = vmatpush1.msra.mxu0 0.0
    %175 = vmatprep.subr.mxu0 0.0
    %176 = vmatpush1.msra.mxu0 0.0
    %177 = vmatprep.subr.mxu0 0.0
    %178 = vmatpush1.msra.mxu0 0.0
    %179 = vmatprep.subr.mxu0 0.0
    %180 = vmatpush1.msra.mxu0 0.0
    %181 = vmatprep.subr.mxu0 0.0
    %182 = vmatpush1.msra.mxu0 0.0
    %183 = vmatprep.subr.mxu0 0.0
    %184 = vmatpush1.msra.mxu0 0.0
    %185 = vmatprep.mubr.f32.mxu0 0.0
    %186 = vmatmul.mubr.f32.gmra.mrb[0].mxu0 %v112
    %v187 = vpop.f32.mrb[0].mxu0
    %v188 = vadd.f32 0.0, %v187
    %v189 = vpop.f32.mrb[0].mxu0
    %190 = vmatprep.mubr.f32.mxu0 0.0
    %191 = vmatmul.mubr.f32.gmra.mrb[0].mxu0 %v115
    %v192 = vpop.f32.mrb[0].mxu0
    %v193 = vadd.f32 0.0, %v192
    %v194 = vpop.f32.mrb[0].mxu0
    %195 = vdwg.mxu0
    %v196 = vlaneseq
    %v197 = vshrl.u32 %v196, 7
    %v198 = vsub.s32 0, %v197
    %v199 = vrot.slane %v29, %v198
    %v200 = vmul.f32 %v188, %v199
    %v201 = vmul.f32 %v193, %v199
    %v202 = vsub.f32 %v21, %v200
    %v203 = vsub.f32 %v22, %v201
    %v204 = vmul.f32 %v202, %v202
    %v205 = vmul.f32 %v203, %v203
    %206 = vmatprep.subr.mxu0 0.0
    %207 = vmatpush1.msra.mxu0 %v204
    %208 = vmatprep.subr.mxu0 0.0
    %209 = vmatpush1.msra.mxu0 %v205
    %210 = vmatprep.subr.mxu0 0.0
    %211 = vmatpush1.msra.mxu0 0.0
    %212 = vmatprep.subr.mxu0 0.0
    %213 = vmatpush1.msra.mxu0 0.0
    %214 = vmatprep.subr.mxu0 0.0
    %215 = vmatpush1.msra.mxu0 0.0
    %216 = vmatprep.subr.mxu0 0.0
    %217 = vmatpush1.msra.mxu0 0.0
    %218 = vmatprep.subr.mxu0 0.0
    %219 = vmatpush1.msra.mxu0 0.0
    %220 = vmatprep.subr.mxu0 0.0
    %221 = vmatpush1.msra.mxu0 0.0
    %222 = vmatprep.subr.mxu0 0.0
    %223 = vmatpush1.msra.mxu0 0.0
    %224 = vmatprep.subr.mxu0 0.0
    %225 = vmatpush1.msra.mxu0 0.0
    %226 = vmatprep.subr.mxu0 0.0
    %227 = vmatpush1.msra.mxu0 0.0
    %228 = vmatprep.subr.mxu0 0.0
    %229 = vmatpush1.msra.mxu0 0.0
    %230 = vmatprep.subr.mxu0 0.0
    %231 = vmatpush1.msra.mxu0 0.0
    %232 = vmatprep.subr.mxu0 0.0
    %233 = vmatpush1.msra.mxu0 0.0
    %234 = vmatprep.subr.mxu0 0.0
    %235 = vmatpush1.msra.mxu0 0.0
    %236 = vmatprep.subr.mxu0 0.0
    %237 = vmatpush1.msra.mxu0 0.0
    %238 = vmatprep.subr.mxu0 0.0
    %239 = vmatpush1.msra.mxu0 0.0
    %240 = vmatprep.subr.mxu0 0.0
    %241 = vmatpush1.msra.mxu0 0.0
    %242 = vmatprep.subr.mxu0 0.0
    %243 = vmatpush1.msra.mxu0 0.0
    %244 = vmatprep.subr.mxu0 0.0
    %245 = vmatpush1.msra.mxu0 0.0
    %246 = vmatprep.subr.mxu0 0.0
    %247 = vmatpush1.msra.mxu0 0.0
    %248 = vmatprep.subr.mxu0 0.0
    %249 = vmatpush1.msra.mxu0 0.0
    %250 = vmatprep.subr.mxu0 0.0
    %251 = vmatpush1.msra.mxu0 0.0
    %252 = vmatprep.subr.mxu0 0.0
    %253 = vmatpush1.msra.mxu0 0.0
    %254 = vmatprep.subr.mxu0 0.0
    %255 = vmatpush1.msra.mxu0 0.0
    %256 = vmatprep.subr.mxu0 0.0
    %257 = vmatpush1.msra.mxu0 0.0
    %258 = vmatprep.subr.mxu0 0.0
    %259 = vmatpush1.msra.mxu0 0.0
    %260 = vmatprep.subr.mxu0 0.0
    %261 = vmatpush1.msra.mxu0 0.0
    %262 = vmatprep.subr.mxu0 0.0
    %263 = vmatpush1.msra.mxu0 0.0
    %264 = vmatprep.subr.mxu0 0.0
    %265 = vmatpush1.msra.mxu0 0.0
    %266 = vmatprep.subr.mxu0 0.0
    %267 = vmatpush1.msra.mxu0 0.0
    %268 = vmatprep.subr.mxu0 0.0
    %269 = vmatpush1.msra.mxu0 0.0
    %270 = vmatprep.mubr.f32.mxu0 0.0
    %271 = vmatmul.mubr.f32.gmra.mrb[0].mxu0 %v32
    %v272 = vpop.f32.mrb[0].mxu0
    %v273 = vadd.f32 0.0, %v272
    %v274 = vpop.f32.mrb[0].mxu0
    %275 = vdwg.mxu0
    %v276 = vmul.f32 %v273, %v107
    %v277 = vlaneseq
    %v278 = vshrl.u32 %v277, 7
    %v279 = vsub.s32 0, %v278
    %v280 = vrot.slane %v27, %v279
    %v281 = vmul.f32 %v280, %v202
    %v282 = vmul.f32 %v280, %v203
    %v284 = vsel %vm117, %v276, 0
    %286 = vmatprep.subr.mxu0 0.0
    %287 = vmatpush1.msra.mxu0 %v284
    %288 = vmatprep.subr.mxu0 0.0
    %289 = vmatpush1.msra.mxu0 0.0
    %290 = vmatprep.subr.mxu0 0.0
    %291 = vmatpush1.msra.mxu0 0.0
    %292 = vmatprep.subr.mxu0 0.0
    %293 = vmatpush1.msra.mxu0 0.0
    %294 = vmatprep.subr.mxu0 0.0
    %295 = vmatpush1.msra.mxu0 0.0
    %296 = vmatprep.subr.mxu0 0.0
    %297 = vmatpush1.msra.mxu0 0.0
    %298 = vmatprep.subr.mxu0 0.0
    %299 = vmatpush1.msra.mxu0 0.0
    %300 = vmatprep.subr.mxu0 0.0
    %301 = vmatpush1.msra.mxu0 0.0
    %302 = vmatprep.subr.mxu0 0.0
    %303 = vmatpush1.msra.mxu0 0.0
    %304 = vmatprep.subr.mxu0 0.0
    %305 = vmatpush1.msra.mxu0 0.0
    %306 = vmatprep.subr.mxu0 0.0
    %307 = vmatpush1.msra.mxu0 0.0
    %308 = vmatprep.subr.mxu0 0.0
    %309 = vmatpush1.msra.mxu0 0.0
    %310 = vmatprep.subr.mxu0 0.0
    %311 = vmatpush1.msra.mxu0 0.0
    %312 = vmatprep.subr.mxu0 0.0
    %313 = vmatpush1.msra.mxu0 0.0
    %314 = vmatprep.subr.mxu0 0.0
    %315 = vmatpush1.msra.mxu0 0.0
    %316 = vmatprep.subr.mxu0 0.0
    %317 = vmatpush1.msra.mxu0 0.0
    %318 = vmatprep.subr.mxu0 0.0
    %319 = vmatpush1.msra.mxu0 0.0
    %320 = vmatprep.subr.mxu0 0.0
    %321 = vmatpush1.msra.mxu0 0.0
    %322 = vmatprep.subr.mxu0 0.0
    %323 = vmatpush1.msra.mxu0 0.0
    %324 = vmatprep.subr.mxu0 0.0
    %325 = vmatpush1.msra.mxu0 0.0
    %326 = vmatprep.subr.mxu0 0.0
    %327 = vmatpush1.msra.mxu0 0.0
    %328 = vmatprep.subr.mxu0 0.0
    %329 = vmatpush1.msra.mxu0 0.0
    %330 = vmatprep.subr.mxu0 0.0
    %331 = vmatpush1.msra.mxu0 0.0
    %332 = vmatprep.subr.mxu0 0.0
    %333 = vmatpush1.msra.mxu0 0.0
    %334 = vmatprep.subr.mxu0 0.0
    %335 = vmatpush1.msra.mxu0 0.0
    %336 = vmatprep.subr.mxu0 0.0
    %337 = vmatpush1.msra.mxu0 0.0
    %338 = vmatprep.subr.mxu0 0.0
    %339 = vmatpush1.msra.mxu0 0.0
    %340 = vmatprep.subr.mxu0 0.0
    %341 = vmatpush1.msra.mxu0 0.0
    %342 = vmatprep.subr.mxu0 0.0
    %343 = vmatpush1.msra.mxu0 0.0
    %344 = vmatprep.subr.mxu0 0.0
    %345 = vmatpush1.msra.mxu0 0.0
    %346 = vmatprep.subr.mxu0 0.0
    %347 = vmatpush1.msra.mxu0 0.0
    %348 = vmatprep.subr.mxu0 0.0
    %349 = vmatpush1.msra.mxu0 0.0
    %350 = vmatprep.mubr.f32.mxu0 0.0
    %351 = vmatmul.mubr.f32.gmra.mrb[0].mxu0 %v112
    %v352 = vpop.f32.mrb[0].mxu0
    %v353 = vadd.f32 1e-05, %v352
    %v354 = vpop.f32.mrb[0].mxu0
    %355 = vmatprep.mubr.f32.mxu0 0.0
    %356 = vmatmul.mubr.f32.gmra.mrb[0].mxu0 %v115
    %v357 = vpop.f32.mrb[0].mxu0
    %v358 = vadd.f32 1e-05, %v357
    %v359 = vpop.f32.mrb[0].mxu0
    %360 = vdwg.mxu0
    %v361 = vrsqrt.pop %v353
    %v362 = vrsqrt.pop %v358
    %v363 = vmul.f32 %v281, %v361
    %v364 = vmul.f32 %v282, %v362
    %v365 = vlaneseq
    %v366 = vshrl.u32 %v365, 7
    %v367 = vsub.s32 0, %v366
    %v368 = vrot.slane %v28, %v367
    %v369 = vadd.f32 %v363, %v368
    %v370 = vadd.f32 %v364, %v368
    %371 = vmatprep.subr.mxu0 0.0
    %372 = vmatpush1.msra.mxu0 %v369
    %373 = vmatprep.subr.mxu0 0.0
    %374 = vmatpush1.msra.mxu0 %v370
    %375 = vmatprep.subr.mxu0 0.0
    %376 = vmatpush1.msra.mxu0 0.0
    %377 = vmatprep.subr.mxu0 0.0
    %378 = vmatpush1.msra.mxu0 0.0
    %379 = vmatprep.subr.mxu0 0.0
    %380 = vmatpush1.msra.mxu0 0.0
    %381 = vmatprep.subr.mxu0 0.0
    %382 = vmatpush1.msra.mxu0 0.0
    %383 = vmatprep.subr.mxu0 0.0
    %384 = vmatpush1.msra.mxu0 0.0
    %385 = vmatprep.subr.mxu0 0.0
    %386 = vmatpush1.msra.mxu0 0.0
    %387 = vmatprep.subr.mxu0 0.0
    %388 = vmatpush1.msra.mxu0 0.0
    %389 = vmatprep.subr.mxu0 0.0
    %390 = vmatpush1.msra.mxu0 0.0
    %391 = vmatprep.subr.mxu0 0.0
    %392 = vmatpush1.msra.mxu0 0.0
    %393 = vmatprep.subr.mxu0 0.0
    %394 = vmatpush1.msra.mxu0 0.0
    %395 = vmatprep.subr.mxu0 0.0
    %396 = vmatpush1.msra.mxu0 0.0
    %397 = vmatprep.subr.mxu0 0.0
    %398 = vmatpush1.msra.mxu0 0.0
    %399 = vmatprep.subr.mxu0 0.0
    %400 = vmatpush1.msra.mxu0 0.0
    %401 = vmatprep.subr.mxu0 0.0
    %402 = vmatpush1.msra.mxu0 0.0
    %403 = vmatprep.subr.mxu0 0.0
    %404 = vmatpush1.msra.mxu0 0.0
    %405 = vmatprep.subr.mxu0 0.0
    %406 = vmatpush1.msra.mxu0 0.0
    %407 = vmatprep.subr.mxu0 0.0
    %408 = vmatpush1.msra.mxu0 0.0
    %409 = vmatprep.subr.mxu0 0.0
    %410 = vmatpush1.msra.mxu0 0.0
    %411 = vmatprep.subr.mxu0 0.0
    %412 = vmatpush1.msra.mxu0 0.0
    %413 = vmatprep.subr.mxu0 0.0
    %414 = vmatpush1.msra.mxu0 0.0
    %415 = vmatprep.subr.mxu0 0.0
    %416 = vmatpush1.msra.mxu0 0.0
    %417 = vmatprep.subr.mxu0 0.0
    %418 = vmatpush1.msra.mxu0 0.0
    %419 = vmatprep.subr.mxu0 0.0
    %420 = vmatpush1.msra.mxu0 0.0
    %421 = vmatprep.subr.mxu0 0.0
    %422 = vmatpush1.msra.mxu0 0.0
    %423 = vmatprep.subr.mxu0 0.0
    %424 = vmatpush1.msra.mxu0 0.0
    %425 = vmatprep.subr.mxu0 0.0
    %426 = vmatpush1.msra.mxu0 0.0
    %427 = vmatprep.subr.mxu0 0.0
    %428 = vmatpush1.msra.mxu0 0.0
    %429 = vmatprep.subr.mxu0 0.0
    %430 = vmatpush1.msra.mxu0 0.0
    %431 = vmatprep.subr.mxu0 0.0
    %432 = vmatpush1.msra.mxu0 0.0
    %433 = vmatprep.subr.mxu0 0.0
    %434 = vmatpush1.msra.mxu0 0.0
    %435 = vmatprep.mubr.f32.mxu0 0.0
    %436 = vmatmul.mubr.f32.gmra.mrb[0].mxu0 %v32
    %v437 = vpop.f32.mrb[0].mxu0
    %v438 = vadd.f32 0.0, %v437
    %v439 = vpop.f32.mrb[0].mxu0
    %440 = vdwg.mxu0
    %v441 = vmul.f32 %v438, %v107
    %vm442 = vcmask 58368
    %443 = vst.msk [vmem:[#allocation2] sm:$0x3] %vm442, %v441
    // Predicated region
    $region22: #{gat_model_forward.11} parent=1 // pred_check
      _
    $region23: #{gat_model_forward.11} parent=1 // pred_check_branch
      %445 = sbr.rel (0) target = $region25
    $region24: #{gat_model_forward.11} parent=1 // pred_region
      %s447 = ssub.s32 32, 32
      %448 = vsyncadd [#allocation3], %s447
      %s450 = sshll.u32 [#allocation2], 4
      %s451 = int_to_ptr.vmem [resolvable:$true] %s450
      %453 = dma.vmem_to_hbm [thread:$0]  %s451, 32, %s5, [#allocation3]
    $region25: #{gat_model_forward.11} parent=1 // pred_fallthru
      _
    // Predicated region
    $region26: #{gat_model_forward.11} parent=1 // pred_check
      _
    $region27: #{gat_model_forward.11} parent=1 // pred_check_branch
      %455 = sbr.rel (0) target = $region29
    $region28: #{gat_model_forward.11} parent=1 // pred_region
      %456 = dma.done [#allocation3], 32
    $region29: #{gat_model_forward.11} parent=1 // pred_fallthru
      _
    %457 = vsyncpa [#allocation3], 1

// kernel: gat_model_forward.10
$region0: #{gat_model_forward.10}
  #allocation0 [shape = 'u32[]', space=smem, size = 0x4, offset = 0x4, fixed_abs, tag = 'smem constant byte address 0x4 - core index']
  #allocation1 [shape = 'u32[144,128]{1,0:T(1,128)}', space=vmem, size = 0x12000, scoped, tag = 'internal scratch']
  %s0 = inlined_call_operand.vmem [shape: bf16[16,16], index: 0, kind: input, shape index: {}]
  %s1 = inlined_call_operand.vmem [shape: bf16[16,32], index: 1, kind: input, shape index: {}]
  %s2 = inlined_call_operand.vmem [shape: f32[16,8], index: 2, kind: input, shape index: {}, may-alias: {2,3}]
  %s3 = inlined_call_operand.vmem [shape: f32[16,8], index: 3, kind: input, shape index: {}, may-alias: {2,3}]
  %s4 = inlined_call_operand.vmem [shape: f32[1,8], index: 4, kind: input, shape index: {}]
  %s5 = inlined_call_operand.vmem [shape: f32[16,8], index: 5, kind: output, shape index: {}]
  %s6 = sld [smem:[#allocation0]]
  $region30: #{gat_model_forward.10} parent=0
    _
  %s8 = ssub.s32 1, %s6
  %s9 = scalar_select 0, %s8, %s6
  // Predicated region
  $region2: #{gat_model_forward.10} parent=0 // pred_check
    _
  $region3: #{gat_model_forward.10} parent=0 // pred_check_branch
    %11 = sbr.rel (0) target = $region5
  $region4: #{gat_model_forward.10} parent=0 // pred_region
    _
  $region5: #{gat_model_forward.10} parent=0 // pred_fallthru
    _
  // Predicated region
  $region6: #{gat_model_forward.10} parent=0 // pred_check
    _
  $region7: #{gat_model_forward.10} parent=0 // pred_check_branch
    %13 = sbr.rel (0) target = $region9
  $region8: #{gat_model_forward.10} parent=0 // pred_region
    _
  $region9: #{gat_model_forward.10} parent=0 // pred_fallthru
    _
  // Predicated region
  $region10: #{gat_model_forward.10} parent=0 // pred_check
    _
  $region11: #{gat_model_forward.10} parent=0 // pred_check_branch
    %15 = sbr.rel (0) target = $region13
  $region12: #{gat_model_forward.10} parent=0 // pred_region
    _
  $region13: #{gat_model_forward.10} parent=0 // pred_fallthru
    _
  // Predicated region
  $region14: #{gat_model_forward.10} parent=0 // pred_check
    _
  $region15: #{gat_model_forward.10} parent=0 // pred_check_branch
    %17 = sbr.rel (0) target = $region17
  $region16: #{gat_model_forward.10} parent=0 // pred_region
    _
  $region17: #{gat_model_forward.10} parent=0 // pred_fallthru
    _
  // Predicated region
  $region18: #{gat_model_forward.10} parent=0 // pred_check
    _
  $region19: #{gat_model_forward.10} parent=0 // pred_check_branch
    %19 = sbr.rel (0) target = $region21
  $region20: #{gat_model_forward.10} parent=0 // pred_region
    _
  $region21: #{gat_model_forward.10} parent=0 // pred_fallthru
    _
  %v23 = vld [vmem:[%s0] sm:$0xf]
  %v24 = vld [vmem:[%s0 + $0x4] sm:$0xf]
  %vm25 = vcmp.gt.bf16.partialorder %v23, 0
  %vm26 = vcmp.gt.bf16.partialorder %v24, 0
  %v27 = vld [vmem:[%s1] sm:$0xf]
  %v28 = vld [vmem:[%s1 + $0x4] sm:$0xf]
  %v29 = vld [vmem:[%s2] sm:$0xff]
  %v30 = vld [vmem:[%s2 + $0x8] sm:$0xff]
  %v31 = vld [vmem:[%s3] sm:$0xff]
  %v32 = vld [vmem:[%s3 + $0x8] sm:$0xff]
  %35 = vrot.lane.b32.xlu0 %v31, 124
  %v36 = vpop.permute.xlu0 %35
  %37 = vrot.lane.b32.xlu0 %v32, 124
  %v38 = vpop.permute.xlu0 %37
  %41 = vxpose.xlu0.b32.start [1/16] %v36, 128
  %42 = vxpose.xlu0.b32.cont [2/16] %v38, 128
  %43 = vxpose.xlu0.b32.cont [3/16] 0.0, 128
  %44 = vxpose.xlu0.b32.cont [4/16] 0.0, 128
  %45 = vxpose.xlu0.b32.cont [5/16] 0.0, 128
  %46 = vxpose.xlu0.b32.cont [6/16] 0.0, 128
  %47 = vxpose.xlu0.b32.cont [7/16] 0.0, 128
  %48 = vxpose.xlu0.b32.cont [8/16] 0.0, 128
  %49 = vxpose.xlu0.b32.cont [9/16] 0.0, 128
  %50 = vxpose.xlu0.b32.cont [10/16] 0.0, 128
  %51 = vxpose.xlu0.b32.cont [11/16] 0.0, 128
  %52 = vxpose.xlu0.b32.cont [12/16] 0.0, 128
  %53 = vxpose.xlu0.b32.cont [13/16] 0.0, 128
  %54 = vxpose.xlu0.b32.cont [14/16] 0.0, 128
  %55 = vxpose.xlu0.b32.cont [15/16] 0.0, 128
  %56 = vxpose.xlu0.b32.end [16/16] 0.0, 128
  %v57 = vpop.trf.xlu0
  %v58 = vpop.trf.xlu0
  %v59 = vpop.trf.xlu0
  %v60 = vpop.trf.xlu0
  %v61 = vpop.trf.xlu0
  %v62 = vpop.trf.xlu0
  %v63 = vpop.trf.xlu0
  %v64 = vpop.trf.xlu0
  %v65 = vpop.trf.xlu0
  %v66 = vpop.trf.xlu0
  %v67 = vpop.trf.xlu0
  %v68 = vpop.trf.xlu0
  %v69 = vpop.trf.xlu0
  %v70 = vpop.trf.xlu0
  %v71 = vpop.trf.xlu0
  %v72 = vpop.trf.xlu0
  %74 = vset.pattern.permute.xlu0 0
  %75 = vperm.xlu0 %74, %v29
  %v76 = vpop.permute.xlu0 %75
  %79 = vset.pattern.permute.xlu0 0
  %80 = vperm.xlu0 %79, %v30
  %v81 = vpop.permute.xlu0 %80
  %v83 = vlaneseq
  %v84 = vshrl.u32 %v83, 7
  %v85 = vsub.s32 0, %v84
  %v86 = vrot.slane %v57, %v85
  %v87 = vadd.f32 %v76, %v86
  %v88 = vadd.f32 %v81, %v86
  %v89 = vmul.f32 %v87, 0.2
  %v90 = vmul.f32 %v88, 0.2
  %v91 = vmax.f32 %v87, %v89
  %v92 = vmax.f32 %v88, %v90
  %v93 = vsel %vm25, 65537, 0
  %v94 = vsel %vm26, 65537, 0
  %v95 = vunpack.c.l.b16 %v93
  %v96 = vunpack.c.l.b16 %v94
  %vm97 = vcmp.ne.s32.totalorder %v95, 0
  %vm98 = vcmp.ne.s32.totalorder %v96, 0
  %v99 = vsel %vm97, %v91, -1e+30
  %v100 = vsel %vm98, %v92, -1e+30
  %vm101 = vcmask 130048
  %v102 = vsel %vm101, %v99, -inf
  %103 = vmax.xlane.f32.xlu0 %v102
  %v104 = vpop.xlane.xlu0 %103
  %v105 = vsel %vm101, %v100, -inf
  %106 = vmax.xlane.f32.xlu0 %v105
  %v107 = vpop.xlane.xlu0 %106
  %v108 = vsub.f32 %v99, %v104
  %v109 = vsub.f32 %v100, %v107
  %v110 = vmul.f32 %v108, 1.442695
  %v111 = vpow.pop %v110
  %v112 = vmul.f32 %v109, 1.442695
  %v113 = vpow.pop %v112
  %v114 = vsel %vm101, %v111, 0.0
  %115 = vadd.xlane.f32.xlu0 %v114
  %v116 = vpop.xlane.xlu0 %115
  %v117 = vsel %vm101, %v113, 0.0
  %118 = vadd.xlane.f32.xlu0 %v117
  %v119 = vpop.xlane.xlu0 %118
  %v120 = vpack.c.bf16 %v113, %v111
  %v123 = vunpack.c.l.b16 %v27
  %v124 = vunpack.c.l.b16 %v28
  %v125 = vpack.c.b16 %v124, %v123
  %v128 = vsel %vm101, %v120, 0
  %130 = vmatprep.subr.bf16.mxu0 0
  %131 = vmatpush1.bf16.msra.mxu0 %v125
  %132 = vmatprep.subr.bf16.mxu0 0
  %133 = vmatpush1.bf16.msra.mxu0 0
  %134 = vmatprep.subr.bf16.mxu0 0
  %135 = vmatpush1.bf16.msra.mxu0 0
  %136 = vmatprep.subr.bf16.mxu0 0
  %137 = vmatpush1.bf16.msra.mxu0 0
  %138 = vmatprep.subr.bf16.mxu0 0
  %139 = vmatpush1.bf16.msra.mxu0 0
  %140 = vmatprep.subr.bf16.mxu0 0
  %141 = vmatpush1.bf16.msra.mxu0 0
  %142 = vmatprep.subr.bf16.mxu0 0
  %143 = vmatpush1.bf16.msra.mxu0 0
  %144 = vmatprep.subr.bf16.mxu0 0
  %145 = vmatpush1.bf16.msra.mxu0 0
  %146 = vmatprep.subr.bf16.mxu0 0
  %147 = vmatpush1.bf16.msra.mxu0 0
  %148 = vmatprep.subr.bf16.mxu0 0
  %149 = vmatpush1.bf16.msra.mxu0 0
  %150 = vmatprep.subr.bf16.mxu0 0
  %151 = vmatpush1.bf16.msra.mxu0 0
  %152 = vmatprep.subr.bf16.mxu0 0
  %153 = vmatpush1.bf16.msra.mxu0 0
  %154 = vmatprep.subr.bf16.mxu0 0
  %155 = vmatpush1.bf16.msra.mxu0 0
  %156 = vmatprep.subr.bf16.mxu0 0
  %157 = vmatpush1.bf16.msra.mxu0 0
  %158 = vmatprep.subr.bf16.mxu0 0
  %159 = vmatpush1.bf16.msra.mxu0 0
  %160 = vmatprep.subr.bf16.mxu0 0
  %161 = vmatpush1.bf16.msra.mxu0 0
  %162 = vmatprep.mubr.bf16.mxu0 0
  %163 = vmatmul.mubr.bf16.gmra.mrb[0].mxu0 %v128
  %v164 = vpop.f32.mrb[0].mxu0
  %v165 = vadd.f32 0.0, %v164
  %v166 = vpop.f32.mrb[0].mxu0
  %v167 = vpop.f32.mrb[0].mxu0
  %v168 = vadd.f32 0.0, %v167
  %v169 = vpop.f32.mrb[0].mxu0
  %170 = vdwg.mxu0
  %v171 = vrcp.pop %v116
  %v172 = vrcp.pop %v119
  %v173 = vmul.f32 %v165, %v171
  %v174 = vmul.f32 %v168, %v172
  %175 = vset.pattern.permute.xlu0 1
  %176 = vperm.xlu0 %175, %v29
  %v177 = vpop.permute.xlu0 %176
  %179 = vset.pattern.permute.xlu0 1
  %180 = vperm.xlu0 %179, %v30
  %v181 = vpop.permute.xlu0 %180
  %v183 = vlaneseq
  %v184 = vshrl.u32 %v183, 7
  %v185 = vsub.s32 1, %v184
  %v186 = vrot.slane %v57, %v185
  %v187 = vadd.f32 %v177, %v186
  %v188 = vadd.f32 %v181, %v186
  %v189 = vmul.f32 %v187, 0.2
  %v190 = vmul.f32 %v188, 0.2
  %v191 = vmax.f32 %v187, %v189
  %v192 = vmax.f32 %v188, %v190
  %v193 = vsel %vm97, %v191, -1e+30
  %v194 = vsel %vm98, %v192, -1e+30
  %v195 = vsel %vm101, %v193, -inf
  %196 = vmax.xlane.f32.xlu0 %v195
  %v197 = vpop.xlane.xlu0 %196
  %v198 = vsel %vm101, %v194, -inf
  %199 = vmax.xlane.f32.xlu0 %v198
  %v200 = vpop.xlane.xlu0 %199
  %v201 = vsub.f32 %v193, %v197
  %v202 = vsub.f32 %v194, %v200
  %v203 = vmul.f32 %v201, 1.442695
  %v204 = vpow.pop %v203
  %v205 = vmul.f32 %v202, 1.442695
  %v206 = vpow.pop %v205
  %v207 = vsel %vm101, %v204, 0.0
  %208 = vadd.xlane.f32.xlu0 %v207
  %v209 = vpop.xlane.xlu0 %208
  %v210 = vsel %vm101, %v206, 0.0
  %211 = vadd.xlane.f32.xlu0 %v210
  %v212 = vpop.xlane.xlu0 %211
  %v213 = vpack.c.bf16 %v206, %v204
  %214 = vrot.lane.b32.xlu0 %v125, 120
  %v215 = vpop.permute.xlu0 %214
  %v218 = vsel %vm101, %v213, 0
  %220 = vmatprep.subr.bf16.mxu0 0
  %221 = vmatpush1.bf16.msra.mxu0 %v215
  %222 = vmatprep.subr.bf16.mxu0 0
  %223 = vmatpush1.bf16.msra.mxu0 0
  %224 = vmatprep.subr.bf16.mxu0 0
  %225 = vmatpush1.bf16.msra.mxu0 0
  %226 = vmatprep.subr.bf16.mxu0 0
  %227 = vmatpush1.bf16.msra.mxu0 0
  %228 = vmatprep.subr.bf16.mxu0 0
  %229 = vmatpush1.bf16.msra.mxu0 0
  %230 = vmatprep.subr.bf16.mxu0 0
  %231 = vmatpush1.bf16.msra.mxu0 0
  %232 = vmatprep.subr.bf16.mxu0 0
  %233 = vmatpush1.bf16.msra.mxu0 0
  %234 = vmatprep.subr.bf16.mxu0 0
  %235 = vmatpush1.bf16.msra.mxu0 0
  %236 = vmatprep.subr.bf16.mxu0 0
  %237 = vmatpush1.bf16.msra.mxu0 0
  %238 = vmatprep.subr.bf16.mxu0 0
  %239 = vmatpush1.bf16.msra.mxu0 0
  %240 = vmatprep.subr.bf16.mxu0 0
  %241 = vmatpush1.bf16.msra.mxu0 0
  %242 = vmatprep.subr.bf16.mxu0 0
  %243 = vmatpush1.bf16.msra.mxu0 0
  %244 = vmatprep.subr.bf16.mxu0 0
  %245 = vmatpush1.bf16.msra.mxu0 0
  %246 = vmatprep.subr.bf16.mxu0 0
  %247 = vmatpush1.bf16.msra.mxu0 0
  %248 = vmatprep.subr.bf16.mxu0 0
  %249 = vmatpush1.bf16.msra.mxu0 0
  %250 = vmatprep.subr.bf16.mxu0 0
  %251 = vmatpush1.bf16.msra.mxu0 0
  %252 = vmatprep.mubr.bf16.mxu0 0
  %253 = vmatmul.mubr.bf16.gmra.mrb[0].mxu0 %v218
  %v254 = vpop.f32.mrb[0].mxu0
  %v255 = vadd.f32 0.0, %v254
  %v256 = vpop.f32.mrb[0].mxu0
  %v257 = vpop.f32.mrb[0].mxu0
  %v258 = vadd.f32 0.0, %v257
  %v259 = vpop.f32.mrb[0].mxu0
  %260 = vdwg.mxu0
  %v261 = vrcp.pop %v209
  %v262 = vrcp.pop %v212
  %v263 = vmul.f32 %v255, %v261
  %v264 = vmul.f32 %v258, %v262
  %v265 = vadd.f32 %v173, %v263
  %v266 = vadd.f32 %v174, %v264
  %267 = vset.pattern.permute.xlu0 2
  %268 = vperm.xlu0 %267, %v29
  %v269 = vpop.permute.xlu0 %268
  %271 = vset.pattern.permute.xlu0 2
  %272 = vperm.xlu0 %271, %v30
  %v273 = vpop.permute.xlu0 %272
  %v275 = vlaneseq
  %v276 = vshrl.u32 %v275, 7
  %v277 = vsub.s32 2, %v276
  %v278 = vrot.slane %v57, %v277
  %v279 = vadd.f32 %v269, %v278
  %v280 = vadd.f32 %v273, %v278
  %v281 = vmul.f32 %v279, 0.2
  %v282 = vmul.f32 %v280, 0.2
  %v283 = vmax.f32 %v279, %v281
  %v284 = vmax.f32 %v280, %v282
  %v285 = vsel %vm97, %v283, -1e+30
  %v286 = vsel %vm98, %v284, -1e+30
  %v287 = vsel %vm101, %v285, -inf
  %288 = vmax.xlane.f32.xlu0 %v287
  %v289 = vpop.xlane.xlu0 %288
  %v290 = vsel %vm101, %v286, -inf
  %291 = vmax.xlane.f32.xlu0 %v290
  %v292 = vpop.xlane.xlu0 %291
  %v293 = vsub.f32 %v285, %v289
  %v294 = vsub.f32 %v286, %v292
  %v295 = vmul.f32 %v293, 1.442695
  %v296 = vpow.pop %v295
  %v297 = vmul.f32 %v294, 1.442695
  %v298 = vpow.pop %v297
  %v299 = vsel %vm101, %v296, 0.0
  %300 = vadd.xlane.f32.xlu0 %v299
  %v301 = vpop.xlane.xlu0 %300
  %v302 = vsel %vm101, %v298, 0.0
  %303 = vadd.xlane.f32.xlu0 %v302
  %v304 = vpop.xlane.xlu0 %303
  %v305 = vpack.c.bf16 %v298, %v296
  %306 = vrot.lane.b32.xlu0 %v125, 112
  %v307 = vpop.permute.xlu0 %306
  %v310 = vsel %vm101, %v305, 0
  %312 = vmatprep.subr.bf16.mxu0 0
  %313 = vmatpush1.bf16.msra.mxu0 %v307
  %314 = vmatprep.subr.bf16.mxu0 0
  %315 = vmatpush1.bf16.msra.mxu0 0
  %316 = vmatprep.subr.bf16.mxu0 0
  %317 = vmatpush1.bf16.msra.mxu0 0
  %318 = vmatprep.subr.bf16.mxu0 0
  %319 = vmatpush1.bf16.msra.mxu0 0
  %320 = vmatprep.subr.bf16.mxu0 0
  %321 = vmatpush1.bf16.msra.mxu0 0
  %322 = vmatprep.subr.bf16.mxu0 0
  %323 = vmatpush1.bf16.msra.mxu0 0
  %324 = vmatprep.subr.bf16.mxu0 0
  %325 = vmatpush1.bf16.msra.mxu0 0
  %326 = vmatprep.subr.bf16.mxu0 0
  %327 = vmatpush1.bf16.msra.mxu0 0
  %328 = vmatprep.subr.bf16.mxu0 0
  %329 = vmatpush1.bf16.msra.mxu0 0
  %330 = vmatprep.subr.bf16.mxu0 0
  %331 = vmatpush1.bf16.msra.mxu0 0
  %332 = vmatprep.subr.bf16.mxu0 0
  %333 = vmatpush1.bf16.msra.mxu0 0
  %334 = vmatprep.subr.bf16.mxu0 0
  %335 = vmatpush1.bf16.msra.mxu0 0
  %336 = vmatprep.subr.bf16.mxu0 0
  %337 = vmatpush1.bf16.msra.mxu0 0
  %338 = vmatprep.subr.bf16.mxu0 0
  %339 = vmatpush1.bf16.msra.mxu0 0
  %340 = vmatprep.subr.bf16.mxu0 0
  %341 = vmatpush1.bf16.msra.mxu0 0
  %342 = vmatprep.subr.bf16.mxu0 0
  %343 = vmatpush1.bf16.msra.mxu0 0
  %344 = vmatprep.mubr.bf16.mxu0 0
  %345 = vmatmul.mubr.bf16.gmra.mrb[0].mxu0 %v310
  %v346 = vpop.f32.mrb[0].mxu0
  %v347 = vadd.f32 0.0, %v346
  %v348 = vpop.f32.mrb[0].mxu0
  %v349 = vpop.f32.mrb[0].mxu0
  %v350 = vadd.f32 0.0, %v349
  %v351 = vpop.f32.mrb[0].mxu0
  %352 = vdwg.mxu0
  %v353 = vrcp.pop %v301
  %v354 = vrcp.pop %v304
  %v355 = vmul.f32 %v347, %v353
  %v356 = vmul.f32 %v350, %v354
  %v357 = vadd.f32 %v265, %v355
  %v358 = vadd.f32 %v266, %v356
  %359 = vset.pattern.permute.xlu0 3
  %360 = vperm.xlu0 %359, %v29
  %v361 = vpop.permute.xlu0 %360
  %363 = vset.pattern.permute.xlu0 3
  %364 = vperm.xlu0 %363, %v30
  %v365 = vpop.permute.xlu0 %364
  %v367 = vlaneseq
  %v368 = vshrl.u32 %v367, 7
  %v369 = vsub.s32 3, %v368
  %v370 = vrot.slane %v57, %v369
  %v371 = vadd.f32 %v361, %v370
  %v372 = vadd.f32 %v365, %v370
  %v373 = vmul.f32 %v371, 0.2
  %v374 = vmul.f32 %v372, 0.2
  %v375 = vmax.f32 %v371, %v373
  %v376 = vmax.f32 %v372, %v374
  %v377 = vsel %vm97, %v375, -1e+30
  %v378 = vsel %vm98, %v376, -1e+30
  %v379 = vsel %vm101, %v377, -inf
  %380 = vmax.xlane.f32.xlu0 %v379
  %v381 = vpop.xlane.xlu0 %380
  %v382 = vsel %vm101, %v378, -inf
  %383 = vmax.xlane.f32.xlu0 %v382
  %v384 = vpop.xlane.xlu0 %383
  %v385 = vsub.f32 %v377, %v381
  %v386 = vsub.f32 %v378, %v384
  %v387 = vmul.f32 %v385, 1.442695
  %v388 = vpow.pop %v387
  %v389 = vmul.f32 %v386, 1.442695
  %v390 = vpow.pop %v389
  %v391 = vsel %vm101, %v388, 0.0
  %392 = vadd.xlane.f32.xlu0 %v391
  %v393 = vpop.xlane.xlu0 %392
  %v394 = vsel %vm101, %v390, 0.0
  %395 = vadd.xlane.f32.xlu0 %v394
  %v396 = vpop.xlane.xlu0 %395
  %v397 = vpack.c.bf16 %v390, %v388
  %398 = vrot.lane.b32.xlu0 %v125, 104
  %v399 = vpop.permute.xlu0 %398
  %v402 = vsel %vm101, %v397, 0
  %404 = vmatprep.subr.bf16.mxu0 0
  %405 = vmatpush1.bf16.msra.mxu0 %v399
  %406 = vmatprep.subr.bf16.mxu0 0
  %407 = vmatpush1.bf16.msra.mxu0 0
  %408 = vmatprep.subr.bf16.mxu0 0
  %409 = vmatpush1.bf16.msra.mxu0 0
  %410 = vmatprep.subr.bf16.mxu0 0
  %411 = vmatpush1.bf16.msra.mxu0 0
  %412 = vmatprep.subr.bf16.mxu0 0
  %413 = vmatpush1.bf16.msra.mxu0 0
  %414 = vmatprep.subr.bf16.mxu0 0
  %415 = vmatpush1.bf16.msra.mxu0 0
  %416 = vmatprep.subr.bf16.mxu0 0
  %417 = vmatpush1.bf16.msra.mxu0 0
  %418 = vmatprep.subr.bf16.mxu0 0
  %419 = vmatpush1.bf16.msra.mxu0 0
  %420 = vmatprep.subr.bf16.mxu0 0
  %421 = vmatpush1.bf16.msra.mxu0 0
  %422 = vmatprep.subr.bf16.mxu0 0
  %423 = vmatpush1.bf16.msra.mxu0 0
  %424 = vmatprep.subr.bf16.mxu0 0
  %425 = vmatpush1.bf16.msra.mxu0 0
  %426 = vmatprep.subr.bf16.mxu0 0
  %427 = vmatpush1.bf16.msra.mxu0 0
  %428 = vmatprep.subr.bf16.mxu0 0
  %429 = vmatpush1.bf16.msra.mxu0 0
  %430 = vmatprep.subr.bf16.mxu0 0
  %431 = vmatpush1.bf16.msra.mxu0 0
  %432 = vmatprep.subr.bf16.mxu0 0
  %433 = vmatpush1.bf16.msra.mxu0 0
  %434 = vmatprep.subr.bf16.mxu0 0
  %435 = vmatpush1.bf16.msra.mxu0 0
  %436 = vmatprep.mubr.bf16.mxu0 0
  %437 = vmatmul.mubr.bf16.gmra.mrb[0].mxu0 %v402
  %v438 = vpop.f32.mrb[0].mxu0
  %v439 = vadd.f32 0.0, %v438
  %v440 = vpop.f32.mrb[0].mxu0
  %v441 = vpop.f32.mrb[0].mxu0
  %v442 = vadd.f32 0.0, %v441
  %v443 = vpop.f32.mrb[0].mxu0
  %444 = vdwg.mxu0
  %v445 = vrcp.pop %v393
  %v446 = vrcp.pop %v396
  %v447 = vmul.f32 %v439, %v445
  %v448 = vmul.f32 %v442, %v446
  %v449 = vadd.f32 %v357, %v447
  %v450 = vadd.f32 %v358, %v448
  %v451 = vmul.f32 %v449, 0.25
  %v452 = vmul.f32 %v450, 0.25
  %v453 = vld [vmem:[%s4] sm:$0x1]
  %v455 = vlaneseq
  %v456 = vshrl.u32 %v455, 7
  %v457 = vsub.s32 0, %v456
  %v458 = vrot.slane %v453, %v457
  %v460 = vadd.f32 %v451, %v458
  %v461 = vadd.f32 %v452, %v458
  %vm462 = vcmask 64512
  %463 = vst.msk [vmem:[%s5] sm:$0xff] %vm462, %v460
  %464 = vst.msk [vmem:[%s5 + $0x8] sm:$0xff] %vm462, %v461
  // Predicated region
  $region22: #{gat_model_forward.10} parent=0 // pred_check
    _
  $region23: #{gat_model_forward.10} parent=0 // pred_check_branch
    %466 = sbr.rel (0) target = $region25
  $region24: #{gat_model_forward.10} parent=0 // pred_region
    _
  $region25: #{gat_model_forward.10} parent=0 // pred_fallthru
    _
  // Predicated region
  $region26: #{gat_model_forward.10} parent=0 // pred_check
    _
  $region27: #{gat_model_forward.10} parent=0 // pred_check_branch
    %468 = sbr.rel (0) target = $region29
  $region28: #{gat_model_forward.10} parent=0 // pred_region
    _
  $region29: #{gat_model_forward.10} parent=0 // pred_fallthru
    _

</llo_original>
